<compile_context>
chip_gen: v7x
topology: tpu7x:2x2x1
jax: 0.10.0
libtpu: 0.0.40
codegen_flags: <defaults>
</compile_context>

<pallas_src>
import numpy as np
import jax
import jax.numpy as jnp
from jax.experimental import pallas as pl
from jax.experimental.pallas import tpu as pltpu

_PAD = 16   # zero-pad rows in front of each image slab; multiple of 16 so that
            # bf16-packed interior stores start on a full sublane tile.


# ------------------------------ fused kernel ---------------------------------
def _p_model_kernel(x_ref, w_rb_ref, w_fin_ref, b_ref, out_ref,
                    act_a, act_b, skip):
    """x_ref: (B, H, W*M) f32.  All 7 convs run here; activations stay in VMEM.

    Stacked layout: image i occupies scratch rows [i*P+OFF, i*P+OFF+H) with
    P = H + _PAD, OFF = _PAD.  Everything outside the interiors is zero pad.
    """
    B, H, CW = x_ref.shape
    CWO = out_ref.shape[2]                       # W * 2M
    P = H + _PAD
    OFF = _PAD
    R = (B - 1) * P + H                          # matmul M rows (all images)
    TOT = act_a.shape[0]

    # ---- zero only the pad chunks (interiors are always overwritten) --------
    zbf = jnp.zeros((OFF, CW), jnp.bfloat16)
    zf32 = jnp.zeros((OFF, CW), jnp.float32)
    for i in range(B):
        r0 = i * P
        act_a[r0:r0 + OFF, :] = zbf
        act_b[r0:r0 + OFF, :] = zbf
        skip[r0:r0 + OFF, :] = zf32
    tail = TOT - B * P
    if tail > 0:
        act_a[B * P:, :] = jnp.zeros((tail, CW), jnp.bfloat16)
        act_b[B * P:, :] = jnp.zeros((tail, CW), jnp.bfloat16)
        skip[B * P:, :] = jnp.zeros((tail, CW), jnp.float32)

    # ---- load input interiors: f32 skip plane + bf16 matmul plane -----------
    for i in range(B):
        xi = x_ref[i]                            # (H, CW) f32
        lo = i * P + OFF
        skip[lo:lo + H, :] = xi
        act_a[lo:lo + H, :] = xi.astype(jnp.bfloat16)

    def band_conv(src, w_of_ky, bias_row, relu=False, add_skip=False):
        """3x3 'same' conv over all stacked images = 3 banded MXU matmuls."""
        acc = None
        for ky in range(3):
            lhs = src[OFF - 1 + ky:OFF - 1 + ky + R, :]        # (R, CW) bf16
            part = jnp.dot(lhs, w_of_ky(ky),
                           preferred_element_type=jnp.float32)
            acc = part if acc is None else acc + part
        acc = acc + bias_row                                   # (1, cout) bcast
        if relu:
            acc = jnp.maximum(acc, 0.0)
        if add_skip:
            acc = acc + skip[OFF:OFF + R, :]                   # exact f32 skip
        return acc

    def store_interiors(dst, val, cast_bf16=False):
        v = val.astype(jnp.bfloat16) if cast_bf16 else val
        for i in range(B):
            lo = i * P + OFF
            dst[lo:lo + H, :] = v[i * P:i * P + H, :]

    # ---- 3 ResBlocks:  h <- h + conv2(relu(conv1(h))) ------------------------
    for blk in range(3):
        l1, l2 = 2 * blk, 2 * blk + 1
        t = band_conv(act_a, lambda ky: w_rb_ref[l1, ky],
                      b_ref[l1:l1 + 1, :CW], relu=True)
        store_interiors(act_b, t, cast_bf16=True)
        h = band_conv(act_b, lambda ky: w_rb_ref[l2, ky],
                      b_ref[l2:l2 + 1, :CW], add_skip=True)
        store_interiors(skip, h)                 # exact f32 residual source
        store_interiors(act_a, h, cast_bf16=True)

    # ---- final Conv2d(M, 2M) : lane-dense (H, W*2M) store --------------------
    y = band_conv(act_a, lambda ky: w_fin_ref[ky], b_ref[6:7, :CWO])
    for i in range(B):
        out_ref[i] = y[i * P:i * P + H, :].astype(out_ref.dtype)


# ------------------------- weight preparation (host) --------------------------
def _band_weight(w_hwio, W):
    """(3, 3, Cin, Cout) HWIO conv weight -> (3, W*Cin, W*Cout) banded matrices.

    B_ky[(wi+kx-1)*Cin + ci, wi*Cout + co] = w[ky, kx, ci, co]   (in-range only)
    so that  out_row = sum_ky P_padded[row+ky, :] @ B_ky  reproduces the
    'same'-padded convolution along W (out-of-range taps hit the zero pad).
    """
    kh, kw, cin, _ = w_hwio.shape
    eye = jnp.eye(W, dtype=w_hwio.dtype)
    bands = []
    for ky in range(kh):
        acc = None
        for kx in range(kw):
            blockdiag = jnp.kron(eye, w_hwio[ky, kx])     # (W*Cin, W*Cout)
            shift = (kx - 1) * cin
            shifted = jnp.roll(blockdiag, shift, axis=0)
            if shift < 0:                                 # drop wrapped rows
                shifted = shifted.at[shift:, :].set(0.0)
            elif shift > 0:
                shifted = shifted.at[:shift, :].set(0.0)
            acc = shifted if acc is None else acc + shifted
        bands.append(acc)
    return jnp.stack(bands)                               # (3, W*Cin, W*Cout)


def _prepare_params(params, W):
    """Pack all constants into 3 tensors (2 weight DMAs + 1 bias DMA).

    Returns:
      w_rb : (6, 3, W*M, W*M)   bf16  banded weights of the 6 ResBlock convs
      w_fin: (3, W*M, W*2M)     bf16  banded weight of the final conv
      b_all: (7, W*2M)          f32   tiled biases (rows 0..5 zero-padded)
    """
    rb_bands, rb_biases = [], []
    for i in range(3):
        p = params[f"rb{i + 1}"]
        rb_bands += [_band_weight(p["w1"], W), _band_weight(p["w2"], W)]
        rb_biases += [p["b1"], p["b2"]]
    w_rb = jnp.stack(rb_bands).astype(jnp.bfloat16)            # (6,3,CW,CW)
    w_fin = _band_weight(params["final"]["w"], W).astype(jnp.bfloat16)

    cw = w_rb.shape[-1]
    cwo = w_fin.shape[-1]
    rows = []
    for b in rb_biases:
        bt = jnp.tile(b.astype(jnp.float32), W)                # (CW,)
        rows.append(jnp.pad(bt, (0, cwo - cw)))
    rows.append(jnp.tile(params["final"]["b"].astype(jnp.float32), W))
    b_all = jnp.stack(rows)                                    # (7, CWO)
    return w_rb, w_fin, b_all


# ------------------------------ public forward --------------------------------
def p_model_forward(x_nhwc, params, *, batch_block=None):
    """x: (N, H, W, M) NHWC -> (N, H, W, 2M). Single fused Pallas kernel."""
    N, H, W, M = x_nhwc.shape
    CW = W * M                                    # folded lane width (=128 here)
    assert H % 8 == 0, "H must be a multiple of 8 (sublane tiling)"
    assert CW % 128 == 0, "W*M must be a multiple of 128 (lane tiling)"

    if batch_block is None:
        # Default: one grid step with the whole batch stacked (best on v5e/v6e).
        # On v7x with larger N, pass batch_block = N//2 so the two 'parallel'
        # grid steps land one on each TensorCore.
        batch_block = N
    assert N % batch_block == 0
    B = batch_block
    n_blocks = N // B
    P = H + _PAD
    R = (B - 1) * P + H
    TOT = ((R + _PAD + 1 + 7) // 8) * 8           # stacked scratch rows

    w_rb, w_fin, b_all = _prepare_params(params, W)
    x_folded = x_nhwc.reshape(N, H, CW)           # row-major consistent, free

    out = pl.pallas_call(
        _p_model_kernel,
        out_shape=jax.ShapeDtypeStruct((N, H, 2 * CW), jnp.float32),
        grid=(n_blocks,),
        in_specs=[
            pl.BlockSpec((B, H, CW), lambda n: (n, 0, 0)),
            pl.BlockSpec(w_rb.shape, lambda n: (0, 0, 0, 0)),
            pl.BlockSpec(w_fin.shape, lambda n: (0, 0, 0)),
            pl.BlockSpec(b_all.shape, lambda n: (0, 0)),
        ],
        out_specs=pl.BlockSpec((B, H, 2 * CW), lambda n: (n, 0, 0)),
        scratch_shapes=[
            pltpu.VMEM((TOT, CW), jnp.bfloat16),  # act_a: h (bf16 matmul LHS)
            pltpu.VMEM((TOT, CW), jnp.bfloat16),  # act_b: relu(conv1(h))
            pltpu.VMEM((TOT, CW), jnp.float32),   # skip : h in f32 (exact residual)
        ],
        compiler_params=pltpu.CompilerParams(
            dimension_semantics=("parallel",)),
    )(x_folded, w_rb, w_fin, b_all)
    # VMEM footprint per step: ~0.8 MiB packed weights + <0.1 MiB activations,
    # far under the scoped default on v5e/v6e/v7x.
    return out.reshape(N, H, W, 2 * M)


# ---------------- pure-JAX reference (for correctness check) -----------------
def _conv_ref(x, w, b):
    y = jax.lax.conv_general_dilated(
        x, w, window_strides=(1, 1), padding="SAME",
        dimension_numbers=("NHWC", "HWIO", "NHWC"))
    return y + b[None, None, None, :]


def p_model_ref(x, params):
    def resblock(h, p):
        t = jax.nn.relu(_conv_ref(h, p["w1"], p["b1"]))
        return h + _conv_ref(t, p["w2"], p["b2"])

    h = x
    for i in range(3):
        h = resblock(h, params[f"rb{i + 1}"])
    return _conv_ref(h, params["final"]["w"], params["final"]["b"])


# ---------------------------- parameter init ---------------------------------
def init_params(key, M):
    keys = jax.random.split(key, 14)

    def conv_init(kw, kb, cin, cout):
        w = 0.1 * jax.random.normal(kw, (3, 3, cin, cout), jnp.float32)  # HWIO
        b = 0.1 * jax.random.normal(kb, (cout,), jnp.float32)
        return w, b

    params = {}
    for i in range(3):
        w1, b1 = conv_init(keys[4 * i + 0], keys[4 * i + 1], M, M)
        w2, b2 = conv_init(keys[4 * i + 2], keys[4 * i + 3], M, M)
        params[f"rb{i + 1}"] = dict(w1=w1, b1=b1, w2=w2, b2=b2)
    wf, bf = conv_init(keys[12], keys[13], M, 2 * M)
    params["final"] = dict(w=wf, b=bf)
    return params


if __name__ == "__main__":
    M, N, H, W = 8, 2, 16, 16
    key = jax.random.PRNGKey(0)
    kx, kp = jax.random.split(key)

    # PyTorch-style NCHW input, then transpose to the kernel's NHWC layout.
    x_nchw = jax.random.normal(kx, (N, M, H, W), jnp.float32)
    params = init_params(kp, M)

    x_nhwc = jnp.transpose(x_nchw, (0, 2, 3, 1))
    y_nhwc = jax.block_until_ready(p_model_forward(x_nhwc, params))
    y_nchw = jnp.transpose(y_nhwc, (0, 3, 1, 2))           # (N, 2M, H, W)
    assert y_nchw.shape == (N, 2 * M, H, W)

    # Correctness vs f32 XLA reference (kernel uses bf16 matmul operands with
    # f32 accumulation + exact f32 residual path, well within this tolerance).
    y_ref = p_model_ref(x_nhwc, params)
    np.testing.assert_allclose(np.asarray(y_nhwc), np.asarray(y_ref),
                               atol=5e-2, rtol=5e-2)
    print("KERNEL_OK")
</pallas_src>

<mosaic_0001>
module attributes {stable_mosaic.version = 11 : i64} {
  func.func @_p_model_kernel(%arg0: i32, %arg1: memref<2x16x128xf32, #tpu.memory_space<vmem>>, %arg2: memref<6x3x128x128xbf16, #tpu.memory_space<vmem>>, %arg3: memref<3x128x256xbf16, #tpu.memory_space<vmem>>, %arg4: memref<7x256xf32, #tpu.memory_space<vmem>>, %arg5: memref<2x16x256xf32, #tpu.memory_space<vmem>>, %arg6: memref<72x128xbf16, #tpu.memory_space<vmem>>, %arg7: memref<72x128xbf16, #tpu.memory_space<vmem>>, %arg8: memref<72x128xf32, #tpu.memory_space<vmem>>) attributes {dimension_semantics = [#tpu.dimension_semantics<parallel>], iteration_bounds = array<i64: 1>, scalar_prefetch = 0 : i64, scratch_operands = 3 : i64, tpu.core_type = #tpu.core_type<tc>, window_params = [{transform_indices = @transform_0, window_bounds = array<i64: 2, 16, 128>}, {pipeline_mode = #tpu.pipeline_mode<synchronous>, transform_indices = @transform_1, window_bounds = array<i64: 6, 3, 128, 128>}, {pipeline_mode = #tpu.pipeline_mode<synchronous>, transform_indices = @transform_2, window_bounds = array<i64: 3, 128, 256>}, {pipeline_mode = #tpu.pipeline_mode<synchronous>, transform_indices = @transform_3, window_bounds = array<i64: 7, 256>}, {transform_indices = @transform_4, window_bounds = array<i64: 2, 16, 256>}]} {
    %cst = arith.constant 0.000000e+00 : bf16
    %0 = vector.broadcast %cst : bf16 to vector<16x128xbf16>
    %cst_0 = arith.constant 0.000000e+00 : f32
    %1 = vector.broadcast %cst_0 : f32 to vector<16x128xf32>
    %c0 = arith.constant 0 : index
    %c0_1 = arith.constant 0 : index
    %2 = vector.load %arg6[%c0, %c0_1] : memref<72x128xbf16, #tpu.memory_space<vmem>>, vector<16x128xbf16>
    tpu.vector_store %arg6[%c0, %c0_1], %0 {strides = array<i32>} : memref<72x128xbf16, #tpu.memory_space<vmem>>, vector<16x128xbf16>,
    %c0_2 = arith.constant 0 : index
    %c0_3 = arith.constant 0 : index
    %3 = vector.load %arg7[%c0_2, %c0_3] : memref<72x128xbf16, #tpu.memory_space<vmem>>, vector<16x128xbf16>
    tpu.vector_store %arg7[%c0_2, %c0_3], %0 {strides = array<i32>} : memref<72x128xbf16, #tpu.memory_space<vmem>>, vector<16x128xbf16>,
    %c0_4 = arith.constant 0 : index
    %c0_5 = arith.constant 0 : index
    %4 = vector.load %arg8[%c0_4, %c0_5] : memref<72x128xf32, #tpu.memory_space<vmem>>, vector<16x128xf32>
    tpu.vector_store %arg8[%c0_4, %c0_5], %1 {strides = array<i32>} : memref<72x128xf32, #tpu.memory_space<vmem>>, vector<16x128xf32>,
    %c32 = arith.constant 32 : index
    %c0_6 = arith.constant 0 : index
    %5 = vector.load %arg6[%c32, %c0_6] : memref<72x128xbf16, #tpu.memory_space<vmem>>, vector<16x128xbf16>
    tpu.vector_store %arg6[%c32, %c0_6], %0 {strides = array<i32>} : memref<72x128xbf16, #tpu.memory_space<vmem>>, vector<16x128xbf16>,
    %c32_7 = arith.constant 32 : index
    %c0_8 = arith.constant 0 : index
    %6 = vector.load %arg7[%c32_7, %c0_8] : memref<72x128xbf16, #tpu.memory_space<vmem>>, vector<16x128xbf16>
    tpu.vector_store %arg7[%c32_7, %c0_8], %0 {strides = array<i32>} : memref<72x128xbf16, #tpu.memory_space<vmem>>, vector<16x128xbf16>,
    %c32_9 = arith.constant 32 : index
    %c0_10 = arith.constant 0 : index
    %7 = vector.load %arg8[%c32_9, %c0_10] : memref<72x128xf32, #tpu.memory_space<vmem>>, vector<16x128xf32>
    tpu.vector_store %arg8[%c32_9, %c0_10], %1 {strides = array<i32>} : memref<72x128xf32, #tpu.memory_space<vmem>>, vector<16x128xf32>,
    %cst_11 = arith.constant 0.000000e+00 : bf16
    %8 = vector.broadcast %cst_11 : bf16 to vector<8x128xbf16>
    %c64 = arith.constant 64 : index
    %c0_12 = arith.constant 0 : index
    %9 = vector.load %arg6[%c64, %c0_12] : memref<72x128xbf16, #tpu.memory_space<vmem>>, vector<8x128xbf16>
    tpu.vector_store %arg6[%c64, %c0_12], %8 {strides = array<i32>} : memref<72x128xbf16, #tpu.memory_space<vmem>>, vector<8x128xbf16>,
    %cst_13 = arith.constant 0.000000e+00 : bf16
    %10 = vector.broadcast %cst_13 : bf16 to vector<8x128xbf16>
    %c64_14 = arith.constant 64 : index
    %c0_15 = arith.constant 0 : index
    %11 = vector.load %arg7[%c64_14, %c0_15] : memref<72x128xbf16, #tpu.memory_space<vmem>>, vector<8x128xbf16>
    tpu.vector_store %arg7[%c64_14, %c0_15], %10 {strides = array<i32>} : memref<72x128xbf16, #tpu.memory_space<vmem>>, vector<8x128xbf16>,
    %cst_16 = arith.constant 0.000000e+00 : f32
    %12 = vector.broadcast %cst_16 : f32 to vector<8x128xf32>
    %c64_17 = arith.constant 64 : index
    %c0_18 = arith.constant 0 : index
    %13 = vector.load %arg8[%c64_17, %c0_18] : memref<72x128xf32, #tpu.memory_space<vmem>>, vector<8x128xf32>
    tpu.vector_store %arg8[%c64_17, %c0_18], %12 {strides = array<i32>} : memref<72x128xf32, #tpu.memory_space<vmem>>, vector<8x128xf32>,
    %c0_19 = arith.constant 0 : index
    %c0_20 = arith.constant 0 : index
    %c0_21 = arith.constant 0 : index
    %14 = vector.load %arg1[%c0_19, %c0_20, %c0_21] : memref<2x16x128xf32, #tpu.memory_space<vmem>>, vector<1x16x128xf32>
    %15 = vector.shape_cast %14 : vector<1x16x128xf32> to vector<16x128xf32>
    %c16 = arith.constant 16 : index
    %c0_22 = arith.constant 0 : index
    %16 = vector.load %arg8[%c16, %c0_22] : memref<72x128xf32, #tpu.memory_space<vmem>>, vector<16x128xf32>
    tpu.vector_store %arg8[%c16, %c0_22], %15 {strides = array<i32>} : memref<72x128xf32, #tpu.memory_space<vmem>>, vector<16x128xf32>,
    %17 = arith.truncf %15 : vector<16x128xf32> to vector<16x128xbf16>
    %c16_23 = arith.constant 16 : index
    %c0_24 = arith.constant 0 : index
    %18 = vector.load %arg6[%c16_23, %c0_24] : memref<72x128xbf16, #tpu.memory_space<vmem>>, vector<16x128xbf16>
    tpu.vector_store %arg6[%c16_23, %c0_24], %17 {strides = array<i32>} : memref<72x128xbf16, #tpu.memory_space<vmem>>, vector<16x128xbf16>,
    %c1 = arith.constant 1 : index
    %c0_25 = arith.constant 0 : index
    %c0_26 = arith.constant 0 : index
    %19 = vector.load %arg1[%c1, %c0_25, %c0_26] : memref<2x16x128xf32, #tpu.memory_space<vmem>>, vector<1x16x128xf32>
    %20 = vector.shape_cast %19 : vector<1x16x128xf32> to vector<16x128xf32>
    %c48 = arith.constant 48 : index
    %c0_27 = arith.constant 0 : index
    %21 = vector.load %arg8[%c48, %c0_27] : memref<72x128xf32, #tpu.memory_space<vmem>>, vector<16x128xf32>
    tpu.vector_store %arg8[%c48, %c0_27], %20 {strides = array<i32>} : memref<72x128xf32, #tpu.memory_space<vmem>>, vector<16x128xf32>,
    %22 = arith.truncf %20 : vector<16x128xf32> to vector<16x128xbf16>
    %c48_28 = arith.constant 48 : index
    %c0_29 = arith.constant 0 : index
    %23 = vector.load %arg6[%c48_28, %c0_29] : memref<72x128xbf16, #tpu.memory_space<vmem>>, vector<16x128xbf16>
    tpu.vector_store %arg6[%c48_28, %c0_29], %22 {strides = array<i32>} : memref<72x128xbf16, #tpu.memory_space<vmem>>, vector<16x128xbf16>,
    %c0_30 = arith.constant 0 : index
    %c0_31 = arith.constant 0 : index
    %24 = vector.load %arg4[%c0_30, %c0_31] : memref<7x256xf32, #tpu.memory_space<vmem>>, vector<1x128xf32>
    %c15 = arith.constant 15 : index
    %c0_32 = arith.constant 0 : index
    %25 = vector.load %arg6[%c15, %c0_32] : memref<72x128xbf16, #tpu.memory_space<vmem>>, vector<48x128xbf16>
    %c0_33 = arith.constant 0 : index
    %c0_34 = arith.constant 0 : index
    %c0_35 = arith.constant 0 : index
    %c0_36 = arith.constant 0 : index
    %26 = vector.load %arg2[%c0_33, %c0_34, %c0_35, %c0_36] : memref<6x3x128x128xbf16, #tpu.memory_space<vmem>>, vector<1x1x128x128xbf16>
    %27 = vector.shape_cast %26 : vector<1x1x128x128xbf16> to vector<128x128xbf16>
    %cst_37 = arith.constant dense<0.000000e+00> : vector<48x128xf32>
    %28 = tpu.matmul %25, %27, %cst_37 {dimension_numbers = #tpu.dot_dimension_numbers<[1], [0], [0], [1], [0, 0, 1, 1], [], []>} : vector<48x128xbf16>, vector<128x128xbf16>, vector<48x128xf32> -> vector<48x128xf32>
    %c16_38 = arith.constant 16 : index
    %c0_39 = arith.constant 0 : index
    %29 = vector.load %arg6[%c16_38, %c0_39] : memref<72x128xbf16, #tpu.memory_space<vmem>>, vector<48x128xbf16>
    %c0_40 = arith.constant 0 : index
    %c1_41 = arith.constant 1 : index
    %c0_42 = arith.constant 0 : index
    %c0_43 = arith.constant 0 : index
    %30 = vector.load %arg2[%c0_40, %c1_41, %c0_42, %c0_43] : memref<6x3x128x128xbf16, #tpu.memory_space<vmem>>, vector<1x1x128x128xbf16>
    %31 = vector.shape_cast %30 : vector<1x1x128x128xbf16> to vector<128x128xbf16>
    %cst_44 = arith.constant dense<0.000000e+00> : vector<48x128xf32>
    %32 = tpu.matmul %29, %31, %cst_44 {dimension_numbers = #tpu.dot_dimension_numbers<[1], [0], [0], [1], [0, 0, 1, 1], [], []>} : vector<48x128xbf16>, vector<128x128xbf16>, vector<48x128xf32> -> vector<48x128xf32>
    %33 = arith.addf %28, %32 : vector<48x128xf32>
    %c17 = arith.constant 17 : index
    %c0_45 = arith.constant 0 : index
    %34 = vector.load %arg6[%c17, %c0_45] : memref<72x128xbf16, #tpu.memory_space<vmem>>, vector<48x128xbf16>
    %c0_46 = arith.constant 0 : index
    %c2 = arith.constant 2 : index
    %c0_47 = arith.constant 0 : index
    %c0_48 = arith.constant 0 : index
    %35 = vector.load %arg2[%c0_46, %c2, %c0_47, %c0_48] : memref<6x3x128x128xbf16, #tpu.memory_space<vmem>>, vector<1x1x128x128xbf16>
    %36 = vector.shape_cast %35 : vector<1x1x128x128xbf16> to vector<128x128xbf16>
    %cst_49 = arith.constant dense<0.000000e+00> : vector<48x128xf32>
    %37 = tpu.matmul %34, %36, %cst_49 {dimension_numbers = #tpu.dot_dimension_numbers<[1], [0], [0], [1], [0, 0, 1, 1], [], []>} : vector<48x128xbf16>, vector<128x128xbf16>, vector<48x128xf32> -> vector<48x128xf32>
    %38 = arith.addf %33, %37 : vector<48x128xf32>
    %39 = vector.broadcast %24 : vector<1x128xf32> to vector<48x128xf32>
    %40 = arith.addf %38, %39 : vector<48x128xf32>
    %cst_50 = arith.constant 0.000000e+00 : f32
    %41 = vector.broadcast %cst_50 : f32 to vector<48x128xf32>
    %42 = arith.maximumf %40, %41 : vector<48x128xf32>
    %43 = arith.truncf %42 : vector<48x128xf32> to vector<48x128xbf16>
    %44 = vector.extract_strided_slice %43 {offsets = [0, 0], sizes = [16, 128], strides = [1, 1]} : vector<48x128xbf16> to vector<16x128xbf16>
    %c16_51 = arith.constant 16 : index
    %c0_52 = arith.constant 0 : index
    %45 = vector.load %arg7[%c16_51, %c0_52] : memref<72x128xbf16, #tpu.memory_space<vmem>>, vector<16x128xbf16>
    tpu.vector_store %arg7[%c16_51, %c0_52], %44 {strides = array<i32>} : memref<72x128xbf16, #tpu.memory_space<vmem>>, vector<16x128xbf16>,
    %46 = vector.extract_strided_slice %43 {offsets = [32, 0], sizes = [16, 128], strides = [1, 1]} : vector<48x128xbf16> to vector<16x128xbf16>
    %c48_53 = arith.constant 48 : index
    %c0_54 = arith.constant 0 : index
    %47 = vector.load %arg7[%c48_53, %c0_54] : memref<72x128xbf16, #tpu.memory_space<vmem>>, vector<16x128xbf16>
    tpu.vector_store %arg7[%c48_53, %c0_54], %46 {strides = array<i32>} : memref<72x128xbf16, #tpu.memory_space<vmem>>, vector<16x128xbf16>,
    %c1_55 = arith.constant 1 : index
    %c0_56 = arith.constant 0 : index
    %48 = vector.load %arg4[%c1_55, %c0_56] : memref<7x256xf32, #tpu.memory_space<vmem>>, vector<1x128xf32>
    %c15_57 = arith.constant 15 : index
    %c0_58 = arith.constant 0 : index
    %49 = vector.load %arg7[%c15_57, %c0_58] : memref<72x128xbf16, #tpu.memory_space<vmem>>, vector<48x128xbf16>
    %c1_59 = arith.constant 1 : index
    %c0_60 = arith.constant 0 : index
    %c0_61 = arith.constant 0 : index
    %c0_62 = arith.constant 0 : index
    %50 = vector.load %arg2[%c1_59, %c0_60, %c0_61, %c0_62] : memref<6x3x128x128xbf16, #tpu.memory_space<vmem>>, vector<1x1x128x128xbf16>
    %51 = vector.shape_cast %50 : vector<1x1x128x128xbf16> to vector<128x128xbf16>
    %cst_63 = arith.constant dense<0.000000e+00> : vector<48x128xf32>
    %52 = tpu.matmul %49, %51, %cst_63 {dimension_numbers = #tpu.dot_dimension_numbers<[1], [0], [0], [1], [0, 0, 1, 1], [], []>} : vector<48x128xbf16>, vector<128x128xbf16>, vector<48x128xf32> -> vector<48x128xf32>
    %c16_64 = arith.constant 16 : index
    %c0_65 = arith.constant 0 : index
    %53 = vector.load %arg7[%c16_64, %c0_65] : memref<72x128xbf16, #tpu.memory_space<vmem>>, vector<48x128xbf16>
    %c1_66 = arith.constant 1 : index
    %c1_67 = arith.constant 1 : index
    %c0_68 = arith.constant 0 : index
    %c0_69 = arith.constant 0 : index
    %54 = vector.load %arg2[%c1_66, %c1_67, %c0_68, %c0_69] : memref<6x3x128x128xbf16, #tpu.memory_space<vmem>>, vector<1x1x128x128xbf16>
    %55 = vector.shape_cast %54 : vector<1x1x128x128xbf16> to vector<128x128xbf16>
    %cst_70 = arith.constant dense<0.000000e+00> : vector<48x128xf32>
    %56 = tpu.matmul %53, %55, %cst_70 {dimension_numbers = #tpu.dot_dimension_numbers<[1], [0], [0], [1], [0, 0, 1, 1], [], []>} : vector<48x128xbf16>, vector<128x128xbf16>, vector<48x128xf32> -> vector<48x128xf32>
    %57 = arith.addf %52, %56 : vector<48x128xf32>
    %c17_71 = arith.constant 17 : index
    %c0_72 = arith.constant 0 : index
    %58 = vector.load %arg7[%c17_71, %c0_72] : memref<72x128xbf16, #tpu.memory_space<vmem>>, vector<48x128xbf16>
    %c1_73 = arith.constant 1 : index
    %c2_74 = arith.constant 2 : index
    %c0_75 = arith.constant 0 : index
    %c0_76 = arith.constant 0 : index
    %59 = vector.load %arg2[%c1_73, %c2_74, %c0_75, %c0_76] : memref<6x3x128x128xbf16, #tpu.memory_space<vmem>>, vector<1x1x128x128xbf16>
    %60 = vector.shape_cast %59 : vector<1x1x128x128xbf16> to vector<128x128xbf16>
    %cst_77 = arith.constant dense<0.000000e+00> : vector<48x128xf32>
    %61 = tpu.matmul %58, %60, %cst_77 {dimension_numbers = #tpu.dot_dimension_numbers<[1], [0], [0], [1], [0, 0, 1, 1], [], []>} : vector<48x128xbf16>, vector<128x128xbf16>, vector<48x128xf32> -> vector<48x128xf32>
    %62 = arith.addf %57, %61 : vector<48x128xf32>
    %63 = vector.broadcast %48 : vector<1x128xf32> to vector<48x128xf32>
    %64 = arith.addf %62, %63 : vector<48x128xf32>
    %c16_78 = arith.constant 16 : index
    %c0_79 = arith.constant 0 : index
    %65 = vector.load %arg8[%c16_78, %c0_79] : memref<72x128xf32, #tpu.memory_space<vmem>>, vector<48x128xf32>
    %66 = arith.addf %64, %65 : vector<48x128xf32>
    %67 = vector.extract_strided_slice %66 {offsets = [0, 0], sizes = [16, 128], strides = [1, 1]} : vector<48x128xf32> to vector<16x128xf32>
    %c16_80 = arith.constant 16 : index
    %c0_81 = arith.constant 0 : index
    %68 = vector.load %arg8[%c16_80, %c0_81] : memref<72x128xf32, #tpu.memory_space<vmem>>, vector<16x128xf32>
    tpu.vector_store %arg8[%c16_80, %c0_81], %67 {strides = array<i32>} : memref<72x128xf32, #tpu.memory_space<vmem>>, vector<16x128xf32>,
    %69 = vector.extract_strided_slice %66 {offsets = [32, 0], sizes = [16, 128], strides = [1, 1]} : vector<48x128xf32> to vector<16x128xf32>
    %c48_82 = arith.constant 48 : index
    %c0_83 = arith.constant 0 : index
    %70 = vector.load %arg8[%c48_82, %c0_83] : memref<72x128xf32, #tpu.memory_space<vmem>>, vector<16x128xf32>
    tpu.vector_store %arg8[%c48_82, %c0_83], %69 {strides = array<i32>} : memref<72x128xf32, #tpu.memory_space<vmem>>, vector<16x128xf32>,
    %71 = arith.truncf %66 : vector<48x128xf32> to vector<48x128xbf16>
    %72 = vector.extract_strided_slice %71 {offsets = [0, 0], sizes = [16, 128], strides = [1, 1]} : vector<48x128xbf16> to vector<16x128xbf16>
    %c16_84 = arith.constant 16 : index
    %c0_85 = arith.constant 0 : index
    %73 = vector.load %arg6[%c16_84, %c0_85] : memref<72x128xbf16, #tpu.memory_space<vmem>>, vector<16x128xbf16>
    tpu.vector_store %arg6[%c16_84, %c0_85], %72 {strides = array<i32>} : memref<72x128xbf16, #tpu.memory_space<vmem>>, vector<16x128xbf16>,
    %74 = vector.extract_strided_slice %71 {offsets = [32, 0], sizes = [16, 128], strides = [1, 1]} : vector<48x128xbf16> to vector<16x128xbf16>
    %c48_86 = arith.constant 48 : index
    %c0_87 = arith.constant 0 : index
    %75 = vector.load %arg6[%c48_86, %c0_87] : memref<72x128xbf16, #tpu.memory_space<vmem>>, vector<16x128xbf16>
    tpu.vector_store %arg6[%c48_86, %c0_87], %74 {strides = array<i32>} : memref<72x128xbf16, #tpu.memory_space<vmem>>, vector<16x128xbf16>,
    %c2_88 = arith.constant 2 : index
    %c0_89 = arith.constant 0 : index
    %76 = vector.load %arg4[%c2_88, %c0_89] : memref<7x256xf32, #tpu.memory_space<vmem>>, vector<1x128xf32>
    %c15_90 = arith.constant 15 : index
    %c0_91 = arith.constant 0 : index
    %77 = vector.load %arg6[%c15_90, %c0_91] : memref<72x128xbf16, #tpu.memory_space<vmem>>, vector<48x128xbf16>
    %c2_92 = arith.constant 2 : index
    %c0_93 = arith.constant 0 : index
    %c0_94 = arith.constant 0 : index
    %c0_95 = arith.constant 0 : index
    %78 = vector.load %arg2[%c2_92, %c0_93, %c0_94, %c0_95] : memref<6x3x128x128xbf16, #tpu.memory_space<vmem>>, vector<1x1x128x128xbf16>
    %79 = vector.shape_cast %78 : vector<1x1x128x128xbf16> to vector<128x128xbf16>
    %cst_96 = arith.constant dense<0.000000e+00> : vector<48x128xf32>
    %80 = tpu.matmul %77, %79, %cst_96 {dimension_numbers = #tpu.dot_dimension_numbers<[1], [0], [0], [1], [0, 0, 1, 1], [], []>} : vector<48x128xbf16>, vector<128x128xbf16>, vector<48x128xf32> -> vector<48x128xf32>
    %c16_97 = arith.constant 16 : index
    %c0_98 = arith.constant 0 : index
    %81 = vector.load %arg6[%c16_97, %c0_98] : memref<72x128xbf16, #tpu.memory_space<vmem>>, vector<48x128xbf16>
    %c2_99 = arith.constant 2 : index
    %c1_100 = arith.constant 1 : index
    %c0_101 = arith.constant 0 : index
    %c0_102 = arith.constant 0 : index
    %82 = vector.load %arg2[%c2_99, %c1_100, %c0_101, %c0_102] : memref<6x3x128x128xbf16, #tpu.memory_space<vmem>>, vector<1x1x128x128xbf16>
    %83 = vector.shape_cast %82 : vector<1x1x128x128xbf16> to vector<128x128xbf16>
    %cst_103 = arith.constant dense<0.000000e+00> : vector<48x128xf32>
    %84 = tpu.matmul %81, %83, %cst_103 {dimension_numbers = #tpu.dot_dimension_numbers<[1], [0], [0], [1], [0, 0, 1, 1], [], []>} : vector<48x128xbf16>, vector<128x128xbf16>, vector<48x128xf32> -> vector<48x128xf32>
    %85 = arith.addf %80, %84 : vector<48x128xf32>
    %c17_104 = arith.constant 17 : index
    %c0_105 = arith.constant 0 : index
    %86 = vector.load %arg6[%c17_104, %c0_105] : memref<72x128xbf16, #tpu.memory_space<vmem>>, vector<48x128xbf16>
    %c2_106 = arith.constant 2 : index
    %c2_107 = arith.constant 2 : index
    %c0_108 = arith.constant 0 : index
    %c0_109 = arith.constant 0 : index
    %87 = vector.load %arg2[%c2_106, %c2_107, %c0_108, %c0_109] : memref<6x3x128x128xbf16, #tpu.memory_space<vmem>>, vector<1x1x128x128xbf16>
    %88 = vector.shape_cast %87 : vector<1x1x128x128xbf16> to vector<128x128xbf16>
    %cst_110 = arith.constant dense<0.000000e+00> : vector<48x128xf32>
    %89 = tpu.matmul %86, %88, %cst_110 {dimension_numbers = #tpu.dot_dimension_numbers<[1], [0], [0], [1], [0, 0, 1, 1], [], []>} : vector<48x128xbf16>, vector<128x128xbf16>, vector<48x128xf32> -> vector<48x128xf32>
    %90 = arith.addf %85, %89 : vector<48x128xf32>
    %91 = vector.broadcast %76 : vector<1x128xf32> to vector<48x128xf32>
    %92 = arith.addf %90, %91 : vector<48x128xf32>
    %cst_111 = arith.constant 0.000000e+00 : f32
    %93 = vector.broadcast %cst_111 : f32 to vector<48x128xf32>
    %94 = arith.maximumf %92, %93 : vector<48x128xf32>
    %95 = arith.truncf %94 : vector<48x128xf32> to vector<48x128xbf16>
    %96 = vector.extract_strided_slice %95 {offsets = [0, 0], sizes = [16, 128], strides = [1, 1]} : vector<48x128xbf16> to vector<16x128xbf16>
    %c16_112 = arith.constant 16 : index
    %c0_113 = arith.constant 0 : index
    %97 = vector.load %arg7[%c16_112, %c0_113] : memref<72x128xbf16, #tpu.memory_space<vmem>>, vector<16x128xbf16>
    tpu.vector_store %arg7[%c16_112, %c0_113], %96 {strides = array<i32>} : memref<72x128xbf16, #tpu.memory_space<vmem>>, vector<16x128xbf16>,
    %98 = vector.extract_strided_slice %95 {offsets = [32, 0], sizes = [16, 128], strides = [1, 1]} : vector<48x128xbf16> to vector<16x128xbf16>
    %c48_114 = arith.constant 48 : index
    %c0_115 = arith.constant 0 : index
    %99 = vector.load %arg7[%c48_114, %c0_115] : memref<72x128xbf16, #tpu.memory_space<vmem>>, vector<16x128xbf16>
    tpu.vector_store %arg7[%c48_114, %c0_115], %98 {strides = array<i32>} : memref<72x128xbf16, #tpu.memory_space<vmem>>, vector<16x128xbf16>,
    %c3 = arith.constant 3 : index
    %c0_116 = arith.constant 0 : index
    %100 = vector.load %arg4[%c3, %c0_116] : memref<7x256xf32, #tpu.memory_space<vmem>>, vector<1x128xf32>
    %c15_117 = arith.constant 15 : index
    %c0_118 = arith.constant 0 : index
    %101 = vector.load %arg7[%c15_117, %c0_118] : memref<72x128xbf16, #tpu.memory_space<vmem>>, vector<48x128xbf16>
    %c3_119 = arith.constant 3 : index
    %c0_120 = arith.constant 0 : index
    %c0_121 = arith.constant 0 : index
    %c0_122 = arith.constant 0 : index
    %102 = vector.load %arg2[%c3_119, %c0_120, %c0_121, %c0_122] : memref<6x3x128x128xbf16, #tpu.memory_space<vmem>>, vector<1x1x128x128xbf16>
    %103 = vector.shape_cast %102 : vector<1x1x128x128xbf16> to vector<128x128xbf16>
    %cst_123 = arith.constant dense<0.000000e+00> : vector<48x128xf32>
    %104 = tpu.matmul %101, %103, %cst_123 {dimension_numbers = #tpu.dot_dimension_numbers<[1], [0], [0], [1], [0, 0, 1, 1], [], []>} : vector<48x128xbf16>, vector<128x128xbf16>, vector<48x128xf32> -> vector<48x128xf32>
    %c16_124 = arith.constant 16 : index
    %c0_125 = arith.constant 0 : index
    %105 = vector.load %arg7[%c16_124, %c0_125] : memref<72x128xbf16, #tpu.memory_space<vmem>>, vector<48x128xbf16>
    %c3_126 = arith.constant 3 : index
    %c1_127 = arith.constant 1 : index
    %c0_128 = arith.constant 0 : index
    %c0_129 = arith.constant 0 : index
    %106 = vector.load %arg2[%c3_126, %c1_127, %c0_128, %c0_129] : memref<6x3x128x128xbf16, #tpu.memory_space<vmem>>, vector<1x1x128x128xbf16>
    %107 = vector.shape_cast %106 : vector<1x1x128x128xbf16> to vector<128x128xbf16>
    %cst_130 = arith.constant dense<0.000000e+00> : vector<48x128xf32>
    %108 = tpu.matmul %105, %107, %cst_130 {dimension_numbers = #tpu.dot_dimension_numbers<[1], [0], [0], [1], [0, 0, 1, 1], [], []>} : vector<48x128xbf16>, vector<128x128xbf16>, vector<48x128xf32> -> vector<48x128xf32>
    %109 = arith.addf %104, %108 : vector<48x128xf32>
    %c17_131 = arith.constant 17 : index
    %c0_132 = arith.constant 0 : index
    %110 = vector.load %arg7[%c17_131, %c0_132] : memref<72x128xbf16, #tpu.memory_space<vmem>>, vector<48x128xbf16>
    %c3_133 = arith.constant 3 : index
    %c2_134 = arith.constant 2 : index
    %c0_135 = arith.constant 0 : index
    %c0_136 = arith.constant 0 : index
    %111 = vector.load %arg2[%c3_133, %c2_134, %c0_135, %c0_136] : memref<6x3x128x128xbf16, #tpu.memory_space<vmem>>, vector<1x1x128x128xbf16>
    %112 = vector.shape_cast %111 : vector<1x1x128x128xbf16> to vector<128x128xbf16>
    %cst_137 = arith.constant dense<0.000000e+00> : vector<48x128xf32>
    %113 = tpu.matmul %110, %112, %cst_137 {dimension_numbers = #tpu.dot_dimension_numbers<[1], [0], [0], [1], [0, 0, 1, 1], [], []>} : vector<48x128xbf16>, vector<128x128xbf16>, vector<48x128xf32> -> vector<48x128xf32>
    %114 = arith.addf %109, %113 : vector<48x128xf32>
    %115 = vector.broadcast %100 : vector<1x128xf32> to vector<48x128xf32>
    %116 = arith.addf %114, %115 : vector<48x128xf32>
    %c16_138 = arith.constant 16 : index
    %c0_139 = arith.constant 0 : index
    %117 = vector.load %arg8[%c16_138, %c0_139] : memref<72x128xf32, #tpu.memory_space<vmem>>, vector<48x128xf32>
    %118 = arith.addf %116, %117 : vector<48x128xf32>
    %119 = vector.extract_strided_slice %118 {offsets = [0, 0], sizes = [16, 128], strides = [1, 1]} : vector<48x128xf32> to vector<16x128xf32>
    %c16_140 = arith.constant 16 : index
    %c0_141 = arith.constant 0 : index
    %120 = vector.load %arg8[%c16_140, %c0_141] : memref<72x128xf32, #tpu.memory_space<vmem>>, vector<16x128xf32>
    tpu.vector_store %arg8[%c16_140, %c0_141], %119 {strides = array<i32>} : memref<72x128xf32, #tpu.memory_space<vmem>>, vector<16x128xf32>,
    %121 = vector.extract_strided_slice %118 {offsets = [32, 0], sizes = [16, 128], strides = [1, 1]} : vector<48x128xf32> to vector<16x128xf32>
    %c48_142 = arith.constant 48 : index
    %c0_143 = arith.constant 0 : index
    %122 = vector.load %arg8[%c48_142, %c0_143] : memref<72x128xf32, #tpu.memory_space<vmem>>, vector<16x128xf32>
    tpu.vector_store %arg8[%c48_142, %c0_143], %121 {strides = array<i32>} : memref<72x128xf32, #tpu.memory_space<vmem>>, vector<16x128xf32>,
    %123 = arith.truncf %118 : vector<48x128xf32> to vector<48x128xbf16>
    %124 = vector.extract_strided_slice %123 {offsets = [0, 0], sizes = [16, 128], strides = [1, 1]} : vector<48x128xbf16> to vector<16x128xbf16>
    %c16_144 = arith.constant 16 : index
    %c0_145 = arith.constant 0 : index
    %125 = vector.load %arg6[%c16_144, %c0_145] : memref<72x128xbf16, #tpu.memory_space<vmem>>, vector<16x128xbf16>
    tpu.vector_store %arg6[%c16_144, %c0_145], %124 {strides = array<i32>} : memref<72x128xbf16, #tpu.memory_space<vmem>>, vector<16x128xbf16>,
    %126 = vector.extract_strided_slice %123 {offsets = [32, 0], sizes = [16, 128], strides = [1, 1]} : vector<48x128xbf16> to vector<16x128xbf16>
    %c48_146 = arith.constant 48 : index
    %c0_147 = arith.constant 0 : index
    %127 = vector.load %arg6[%c48_146, %c0_147] : memref<72x128xbf16, #tpu.memory_space<vmem>>, vector<16x128xbf16>
    tpu.vector_store %arg6[%c48_146, %c0_147], %126 {strides = array<i32>} : memref<72x128xbf16, #tpu.memory_space<vmem>>, vector<16x128xbf16>,
    %c4 = arith.constant 4 : index
    %c0_148 = arith.constant 0 : index
    %128 = vector.load %arg4[%c4, %c0_148] : memref<7x256xf32, #tpu.memory_space<vmem>>, vector<1x128xf32>
    %c15_149 = arith.constant 15 : index
    %c0_150 = arith.constant 0 : index
    %129 = vector.load %arg6[%c15_149, %c0_150] : memref<72x128xbf16, #tpu.memory_space<vmem>>, vector<48x128xbf16>
    %c4_151 = arith.constant 4 : index
    %c0_152 = arith.constant 0 : index
    %c0_153 = arith.constant 0 : index
    %c0_154 = arith.constant 0 : index
    %130 = vector.load %arg2[%c4_151, %c0_152, %c0_153, %c0_154] : memref<6x3x128x128xbf16, #tpu.memory_space<vmem>>, vector<1x1x128x128xbf16>
    %131 = vector.shape_cast %130 : vector<1x1x128x128xbf16> to vector<128x128xbf16>
    %cst_155 = arith.constant dense<0.000000e+00> : vector<48x128xf32>
    %132 = tpu.matmul %129, %131, %cst_155 {dimension_numbers = #tpu.dot_dimension_numbers<[1], [0], [0], [1], [0, 0, 1, 1], [], []>} : vector<48x128xbf16>, vector<128x128xbf16>, vector<48x128xf32> -> vector<48x128xf32>
    %c16_156 = arith.constant 16 : index
    %c0_157 = arith.constant 0 : index
    %133 = vector.load %arg6[%c16_156, %c0_157] : memref<72x128xbf16, #tpu.memory_space<vmem>>, vector<48x128xbf16>
    %c4_158 = arith.constant 4 : index
    %c1_159 = arith.constant 1 : index
    %c0_160 = arith.constant 0 : index
    %c0_161 = arith.constant 0 : index
    %134 = vector.load %arg2[%c4_158, %c1_159, %c0_160, %c0_161] : memref<6x3x128x128xbf16, #tpu.memory_space<vmem>>, vector<1x1x128x128xbf16>
    %135 = vector.shape_cast %134 : vector<1x1x128x128xbf16> to vector<128x128xbf16>
    %cst_162 = arith.constant dense<0.000000e+00> : vector<48x128xf32>
    %136 = tpu.matmul %133, %135, %cst_162 {dimension_numbers = #tpu.dot_dimension_numbers<[1], [0], [0], [1], [0, 0, 1, 1], [], []>} : vector<48x128xbf16>, vector<128x128xbf16>, vector<48x128xf32> -> vector<48x128xf32>
    %137 = arith.addf %132, %136 : vector<48x128xf32>
    %c17_163 = arith.constant 17 : index
    %c0_164 = arith.constant 0 : index
    %138 = vector.load %arg6[%c17_163, %c0_164] : memref<72x128xbf16, #tpu.memory_space<vmem>>, vector<48x128xbf16>
    %c4_165 = arith.constant 4 : index
    %c2_166 = arith.constant 2 : index
    %c0_167 = arith.constant 0 : index
    %c0_168 = arith.constant 0 : index
    %139 = vector.load %arg2[%c4_165, %c2_166, %c0_167, %c0_168] : memref<6x3x128x128xbf16, #tpu.memory_space<vmem>>, vector<1x1x128x128xbf16>
    %140 = vector.shape_cast %139 : vector<1x1x128x128xbf16> to vector<128x128xbf16>
    %cst_169 = arith.constant dense<0.000000e+00> : vector<48x128xf32>
    %141 = tpu.matmul %138, %140, %cst_169 {dimension_numbers = #tpu.dot_dimension_numbers<[1], [0], [0], [1], [0, 0, 1, 1], [], []>} : vector<48x128xbf16>, vector<128x128xbf16>, vector<48x128xf32> -> vector<48x128xf32>
    %142 = arith.addf %137, %141 : vector<48x128xf32>
    %143 = vector.broadcast %128 : vector<1x128xf32> to vector<48x128xf32>
    %144 = arith.addf %142, %143 : vector<48x128xf32>
    %cst_170 = arith.constant 0.000000e+00 : f32
    %145 = vector.broadcast %cst_170 : f32 to vector<48x128xf32>
    %146 = arith.maximumf %144, %145 : vector<48x128xf32>
    %147 = arith.truncf %146 : vector<48x128xf32> to vector<48x128xbf16>
    %148 = vector.extract_strided_slice %147 {offsets = [0, 0], sizes = [16, 128], strides = [1, 1]} : vector<48x128xbf16> to vector<16x128xbf16>
    %c16_171 = arith.constant 16 : index
    %c0_172 = arith.constant 0 : index
    %149 = vector.load %arg7[%c16_171, %c0_172] : memref<72x128xbf16, #tpu.memory_space<vmem>>, vector<16x128xbf16>
    tpu.vector_store %arg7[%c16_171, %c0_172], %148 {strides = array<i32>} : memref<72x128xbf16, #tpu.memory_space<vmem>>, vector<16x128xbf16>,
    %150 = vector.extract_strided_slice %147 {offsets = [32, 0], sizes = [16, 128], strides = [1, 1]} : vector<48x128xbf16> to vector<16x128xbf16>
    %c48_173 = arith.constant 48 : index
    %c0_174 = arith.constant 0 : index
    %151 = vector.load %arg7[%c48_173, %c0_174] : memref<72x128xbf16, #tpu.memory_space<vmem>>, vector<16x128xbf16>
    tpu.vector_store %arg7[%c48_173, %c0_174], %150 {strides = array<i32>} : memref<72x128xbf16, #tpu.memory_space<vmem>>, vector<16x128xbf16>,
    %c5 = arith.constant 5 : index
    %c0_175 = arith.constant 0 : index
    %152 = vector.load %arg4[%c5, %c0_175] : memref<7x256xf32, #tpu.memory_space<vmem>>, vector<1x128xf32>
    %c15_176 = arith.constant 15 : index
    %c0_177 = arith.constant 0 : index
    %153 = vector.load %arg7[%c15_176, %c0_177] : memref<72x128xbf16, #tpu.memory_space<vmem>>, vector<48x128xbf16>
    %c5_178 = arith.constant 5 : index
    %c0_179 = arith.constant 0 : index
    %c0_180 = arith.constant 0 : index
    %c0_181 = arith.constant 0 : index
    %154 = vector.load %arg2[%c5_178, %c0_179, %c0_180, %c0_181] : memref<6x3x128x128xbf16, #tpu.memory_space<vmem>>, vector<1x1x128x128xbf16>
    %155 = vector.shape_cast %154 : vector<1x1x128x128xbf16> to vector<128x128xbf16>
    %cst_182 = arith.constant dense<0.000000e+00> : vector<48x128xf32>
    %156 = tpu.matmul %153, %155, %cst_182 {dimension_numbers = #tpu.dot_dimension_numbers<[1], [0], [0], [1], [0, 0, 1, 1], [], []>} : vector<48x128xbf16>, vector<128x128xbf16>, vector<48x128xf32> -> vector<48x128xf32>
    %c16_183 = arith.constant 16 : index
    %c0_184 = arith.constant 0 : index
    %157 = vector.load %arg7[%c16_183, %c0_184] : memref<72x128xbf16, #tpu.memory_space<vmem>>, vector<48x128xbf16>
    %c5_185 = arith.constant 5 : index
    %c1_186 = arith.constant 1 : index
    %c0_187 = arith.constant 0 : index
    %c0_188 = arith.constant 0 : index
    %158 = vector.load %arg2[%c5_185, %c1_186, %c0_187, %c0_188] : memref<6x3x128x128xbf16, #tpu.memory_space<vmem>>, vector<1x1x128x128xbf16>
    %159 = vector.shape_cast %158 : vector<1x1x128x128xbf16> to vector<128x128xbf16>
    %cst_189 = arith.constant dense<0.000000e+00> : vector<48x128xf32>
    %160 = tpu.matmul %157, %159, %cst_189 {dimension_numbers = #tpu.dot_dimension_numbers<[1], [0], [0], [1], [0, 0, 1, 1], [], []>} : vector<48x128xbf16>, vector<128x128xbf16>, vector<48x128xf32> -> vector<48x128xf32>
    %161 = arith.addf %156, %160 : vector<48x128xf32>
    %c17_190 = arith.constant 17 : index
    %c0_191 = arith.constant 0 : index
    %162 = vector.load %arg7[%c17_190, %c0_191] : memref<72x128xbf16, #tpu.memory_space<vmem>>, vector<48x128xbf16>
    %c5_192 = arith.constant 5 : index
    %c2_193 = arith.constant 2 : index
    %c0_194 = arith.constant 0 : index
    %c0_195 = arith.constant 0 : index
    %163 = vector.load %arg2[%c5_192, %c2_193, %c0_194, %c0_195] : memref<6x3x128x128xbf16, #tpu.memory_space<vmem>>, vector<1x1x128x128xbf16>
    %164 = vector.shape_cast %163 : vector<1x1x128x128xbf16> to vector<128x128xbf16>
    %cst_196 = arith.constant dense<0.000000e+00> : vector<48x128xf32>
    %165 = tpu.matmul %162, %164, %cst_196 {dimension_numbers = #tpu.dot_dimension_numbers<[1], [0], [0], [1], [0, 0, 1, 1], [], []>} : vector<48x128xbf16>, vector<128x128xbf16>, vector<48x128xf32> -> vector<48x128xf32>
    %166 = arith.addf %161, %165 : vector<48x128xf32>
    %167 = vector.broadcast %152 : vector<1x128xf32> to vector<48x128xf32>
    %168 = arith.addf %166, %167 : vector<48x128xf32>
    %c16_197 = arith.constant 16 : index
    %c0_198 = arith.constant 0 : index
    %169 = vector.load %arg8[%c16_197, %c0_198] : memref<72x128xf32, #tpu.memory_space<vmem>>, vector<48x128xf32>
    %170 = arith.addf %168, %169 : vector<48x128xf32>
    %171 = vector.extract_strided_slice %170 {offsets = [0, 0], sizes = [16, 128], strides = [1, 1]} : vector<48x128xf32> to vector<16x128xf32>
    %c16_199 = arith.constant 16 : index
    %c0_200 = arith.constant 0 : index
    %172 = vector.load %arg8[%c16_199, %c0_200] : memref<72x128xf32, #tpu.memory_space<vmem>>, vector<16x128xf32>
    tpu.vector_store %arg8[%c16_199, %c0_200], %171 {strides = array<i32>} : memref<72x128xf32, #tpu.memory_space<vmem>>, vector<16x128xf32>,
    %173 = vector.extract_strided_slice %170 {offsets = [32, 0], sizes = [16, 128], strides = [1, 1]} : vector<48x128xf32> to vector<16x128xf32>
    %c48_201 = arith.constant 48 : index
    %c0_202 = arith.constant 0 : index
    %174 = vector.load %arg8[%c48_201, %c0_202] : memref<72x128xf32, #tpu.memory_space<vmem>>, vector<16x128xf32>
    tpu.vector_store %arg8[%c48_201, %c0_202], %173 {strides = array<i32>} : memref<72x128xf32, #tpu.memory_space<vmem>>, vector<16x128xf32>,
    %175 = arith.truncf %170 : vector<48x128xf32> to vector<48x128xbf16>
    %176 = vector.extract_strided_slice %175 {offsets = [0, 0], sizes = [16, 128], strides = [1, 1]} : vector<48x128xbf16> to vector<16x128xbf16>
    %c16_203 = arith.constant 16 : index
    %c0_204 = arith.constant 0 : index
    %177 = vector.load %arg6[%c16_203, %c0_204] : memref<72x128xbf16, #tpu.memory_space<vmem>>, vector<16x128xbf16>
    tpu.vector_store %arg6[%c16_203, %c0_204], %176 {strides = array<i32>} : memref<72x128xbf16, #tpu.memory_space<vmem>>, vector<16x128xbf16>,
    %178 = vector.extract_strided_slice %175 {offsets = [32, 0], sizes = [16, 128], strides = [1, 1]} : vector<48x128xbf16> to vector<16x128xbf16>
    %c48_205 = arith.constant 48 : index
    %c0_206 = arith.constant 0 : index
    %179 = vector.load %arg6[%c48_205, %c0_206] : memref<72x128xbf16, #tpu.memory_space<vmem>>, vector<16x128xbf16>
    tpu.vector_store %arg6[%c48_205, %c0_206], %178 {strides = array<i32>} : memref<72x128xbf16, #tpu.memory_space<vmem>>, vector<16x128xbf16>,
    %c6 = arith.constant 6 : index
    %c0_207 = arith.constant 0 : index
    %180 = vector.load %arg4[%c6, %c0_207] : memref<7x256xf32, #tpu.memory_space<vmem>>, vector<1x256xf32>
    %c15_208 = arith.constant 15 : index
    %c0_209 = arith.constant 0 : index
    %181 = vector.load %arg6[%c15_208, %c0_209] : memref<72x128xbf16, #tpu.memory_space<vmem>>, vector<48x128xbf16>
    %c0_210 = arith.constant 0 : index
    %c0_211 = arith.constant 0 : index
    %c0_212 = arith.constant 0 : index
    %182 = vector.load %arg3[%c0_210, %c0_211, %c0_212] : memref<3x128x256xbf16, #tpu.memory_space<vmem>>, vector<1x128x256xbf16>
    %183 = vector.shape_cast %182 : vector<1x128x256xbf16> to vector<128x256xbf16>
    %cst_213 = arith.constant dense<0.000000e+00> : vector<48x256xf32>
    %184 = tpu.matmul %181, %183, %cst_213 {dimension_numbers = #tpu.dot_dimension_numbers<[1], [0], [0], [1], [0, 0, 1, 1], [], []>} : vector<48x128xbf16>, vector<128x256xbf16>, vector<48x256xf32> -> vector<48x256xf32>
    %c16_214 = arith.constant 16 : index
    %c0_215 = arith.constant 0 : index
    %185 = vector.load %arg6[%c16_214, %c0_215] : memref<72x128xbf16, #tpu.memory_space<vmem>>, vector<48x128xbf16>
    %c1_216 = arith.constant 1 : index
    %c0_217 = arith.constant 0 : index
    %c0_218 = arith.constant 0 : index
    %186 = vector.load %arg3[%c1_216, %c0_217, %c0_218] : memref<3x128x256xbf16, #tpu.memory_space<vmem>>, vector<1x128x256xbf16>
    %187 = vector.shape_cast %186 : vector<1x128x256xbf16> to vector<128x256xbf16>
    %cst_219 = arith.constant dense<0.000000e+00> : vector<48x256xf32>
    %188 = tpu.matmul %185, %187, %cst_219 {dimension_numbers = #tpu.dot_dimension_numbers<[1], [0], [0], [1], [0, 0, 1, 1], [], []>} : vector<48x128xbf16>, vector<128x256xbf16>, vector<48x256xf32> -> vector<48x256xf32>
    %189 = arith.addf %184, %188 : vector<48x256xf32>
    %c17_220 = arith.constant 17 : index
    %c0_221 = arith.constant 0 : index
    %190 = vector.load %arg6[%c17_220, %c0_221] : memref<72x128xbf16, #tpu.memory_space<vmem>>, vector<48x128xbf16>
    %c2_222 = arith.constant 2 : index
    %c0_223 = arith.constant 0 : index
    %c0_224 = arith.constant 0 : index
    %191 = vector.load %arg3[%c2_222, %c0_223, %c0_224] : memref<3x128x256xbf16, #tpu.memory_space<vmem>>, vector<1x128x256xbf16>
    %192 = vector.shape_cast %191 : vector<1x128x256xbf16> to vector<128x256xbf16>
    %cst_225 = arith.constant dense<0.000000e+00> : vector<48x256xf32>
    %193 = tpu.matmul %190, %192, %cst_225 {dimension_numbers = #tpu.dot_dimension_numbers<[1], [0], [0], [1], [0, 0, 1, 1], [], []>} : vector<48x128xbf16>, vector<128x256xbf16>, vector<48x256xf32> -> vector<48x256xf32>
    %194 = arith.addf %189, %193 : vector<48x256xf32>
    %195 = vector.broadcast %180 : vector<1x256xf32> to vector<48x256xf32>
    %196 = arith.addf %194, %195 : vector<48x256xf32>
    %197 = vector.extract_strided_slice %196 {offsets = [0, 0], sizes = [16, 256], strides = [1, 1]} : vector<48x256xf32> to vector<16x256xf32>
    %c0_226 = arith.constant 0 : index
    %c0_227 = arith.constant 0 : index
    %c0_228 = arith.constant 0 : index
    %198 = vector.load %arg5[%c0_226, %c0_227, %c0_228] : memref<2x16x256xf32, #tpu.memory_space<vmem>>, vector<1x16x256xf32>
    %199 = vector.shape_cast %198 : vector<1x16x256xf32> to vector<16x256xf32>
    %200 = vector.shape_cast %197 : vector<16x256xf32> to vector<1x16x256xf32>
    tpu.vector_store %arg5[%c0_226, %c0_227, %c0_228], %200 {strides = array<i32>} : memref<2x16x256xf32, #tpu.memory_space<vmem>>, vector<1x16x256xf32>,
    %201 = vector.extract_strided_slice %196 {offsets = [32, 0], sizes = [16, 256], strides = [1, 1]} : vector<48x256xf32> to vector<16x256xf32>
    %c1_229 = arith.constant 1 : index
    %c0_230 = arith.constant 0 : index
    %c0_231 = arith.constant 0 : index
    %202 = vector.load %arg5[%c1_229, %c0_230, %c0_231] : memref<2x16x256xf32, #tpu.memory_space<vmem>>, vector<1x16x256xf32>
    %203 = vector.shape_cast %202 : vector<1x16x256xf32> to vector<16x256xf32>
    %204 = vector.shape_cast %201 : vector<16x256xf32> to vector<1x16x256xf32>
    tpu.vector_store %arg5[%c1_229, %c0_230, %c0_231], %204 {strides = array<i32>} : memref<2x16x256xf32, #tpu.memory_space<vmem>>, vector<1x16x256xf32>,
    return
  }
  func.func @transform_0(%arg0: i32) -> (i32, i32, i32) {
    %c0_i32 = arith.constant 0 : i32
    %c0_i32_0 = arith.constant 0 : i32
    %c0_i32_1 = arith.constant 0 : i32
    return %arg0, %c0_i32, %c0_i32_0 : i32, i32, i32
  }
  func.func @transform_1(%arg0: i32) -> (i32, i32, i32, i32) {
    %c0_i32 = arith.constant 0 : i32
    %c0_i32_0 = arith.constant 0 : i32
    %c0_i32_1 = arith.constant 0 : i32
    %c0_i32_2 = arith.constant 0 : i32
    %c0_i32_3 = arith.constant 0 : i32
    return %c0_i32, %c0_i32_0, %c0_i32_1, %c0_i32_2 : i32, i32, i32, i32
  }
  func.func @transform_2(%arg0: i32) -> (i32, i32, i32) {
    %c0_i32 = arith.constant 0 : i32
    %c0_i32_0 = arith.constant 0 : i32
    %c0_i32_1 = arith.constant 0 : i32
    %c0_i32_2 = arith.constant 0 : i32
    return %c0_i32, %c0_i32_0, %c0_i32_1 : i32, i32, i32
  }
  func.func @transform_3(%arg0: i32) -> (i32, i32) {
    %c0_i32 = arith.constant 0 : i32
    %c0_i32_0 = arith.constant 0 : i32
    %c0_i32_1 = arith.constant 0 : i32
    return %c0_i32, %c0_i32_0 : i32, i32
  }
  func.func @transform_4(%arg0: i32) -> (i32, i32, i32) {
    %c0_i32 = arith.constant 0 : i32
    %c0_i32_0 = arith.constant 0 : i32
    %c0_i32_1 = arith.constant 0 : i32
    return %arg0, %c0_i32, %c0_i32_0 : i32, i32, i32
  }
}

</mosaic_0001>

<llo_original>
// kernel: tpu_custom_call.1
$region0: #{tpu_custom_call.1}
  #allocation0 [shape = 'u32[]', space=smem, size = 0x4, offset = 0x4, fixed_abs, tag = 'smem constant byte address 0x4 - core index']
  #allocation1 [shape = 'u32[144,128]{1,0:T(1,128)}', space=vmem, size = 0x12000, scoped, tag = 'internal scratch']
  #allocation2 [shape = 'bf16[72,128]{1,0:T(8,128)(2,1)}', space=vmem, size = 0x4800, scoped, tag = 'scratch operand']
  #allocation3 [shape = 'bf16[72,128]{1,0:T(8,128)(2,1)}', space=vmem, size = 0x4800, scoped, tag = 'scratch operand']
  #allocation4 [shape = 'f32[72,128]{1,0:T(8,128)}', space=vmem, size = 0x9000, scoped, tag = 'scratch operand']
  %s0 = inlined_call_operand.hbm [shape: f32[2,16,128], index: 0, kind: input, shape index: {}]
  %s1 = inlined_call_operand.hbm [shape: bf16[6,3,128,128], index: 1, kind: input, shape index: {}]
  %s2 = inlined_call_operand.hbm [shape: bf16[3,128,256], index: 2, kind: input, shape index: {}]
  %s3 = inlined_call_operand.hbm [shape: f32[7,256], index: 3, kind: input, shape index: {}]
  %s4 = inlined_call_operand.hbm [shape: f32[2,16,256], index: 4, kind: output, shape index: {}]
  %s5 = sld [smem:[#allocation0]]
  $region42: #{tpu_custom_call.1} parent=0
    _
  %s7 = ssub.s32 1, %s5
  %s8 = scalar_select 0, %s7, %s5
  $region1: #{tpu_custom_call.1} parent=0
    #allocation5 [shape = 'u8[16384]{0}', space=vmem, size = 0x4000, scoped, tag = 'input window, operand 0, single buffered']
    #allocation6 [shape = 's32[1]{0}', space=sflag, size = 0x4, scoped, tag = 'scoped memory for tpu_custom_call.1']
    #allocation7 [shape = 's32[1]{0}', space=sflag, size = 0x4, scoped, tag = 'scoped memory for tpu_custom_call.1']
    #allocation8 [shape = 'u8[589824]{0}', space=vmem, size = 0x90000, scoped, tag = 'input window, operand 1, single buffered']
    #allocation9 [shape = 's32[1]{0}', space=sflag, size = 0x4, scoped, tag = 'scoped memory for tpu_custom_call.1']
    #allocation10 [shape = 'u8[196608]{0}', space=vmem, size = 0x30000, scoped, tag = 'input window, operand 2, single buffered']
    #allocation11 [shape = 'u8[8192]{0}', space=vmem, size = 0x2000, scoped, tag = 'input window, operand 3, single buffered']
    #allocation12 [shape = 's32[1]{0}', space=sflag, size = 0x4, scoped, tag = 'scoped memory for tpu_custom_call.1']
    #allocation13 [shape = 'u8[32768]{0}', space=vmem, size = 0x8000, scoped, tag = 'output window, operand 0, single buffered']
    %9 = vsyncpa [#allocation6], 0
    %10 = vsyncpa [#allocation9], 0
    %11 = vsyncpa [#allocation12], 0
    %12 = vsyncpa [#allocation7], 0
    // Predicated region
    $region2: #{tpu_custom_call.1} parent=1 // pred_check
      _
    $region3: #{tpu_custom_call.1} parent=1 // pred_check_branch
      %14 = sbr.rel (0) target = $region5
    $region4: #{tpu_custom_call.1} parent=1 // pred_region
      %s16 = ssub.s32 512, 512
      %17 = vsyncadd [#allocation6], %s16
      %s18 = sshll.u32 [#allocation5], 4
      %s19 = int_to_ptr.vmem [resolvable:$true] %s18
      %24 = dma.hbm_to_vmem [thread:$0]  %s0, 512, %s19, [#allocation6], 128, 128, 8
    $region5: #{tpu_custom_call.1} parent=1 // pred_fallthru
      _
    // Predicated region
    $region6: #{tpu_custom_call.1} parent=1 // pred_check
      _
    $region7: #{tpu_custom_call.1} parent=1 // pred_check_branch
      %26 = sbr.rel (0) target = $region9
    $region8: #{tpu_custom_call.1} parent=1 // pred_region
      %s28 = ssub.s32 18432, 18432
      %29 = vsyncadd [#allocation9], %s28
      %s30 = sshll.u32 [#allocation8], 4
      %s31 = int_to_ptr.vmem [resolvable:$true] %s30
      %36 = dma.hbm_to_vmem [thread:$0]  %s1, 18432, %s31, [#allocation9], 64, 64, 4
    $region9: #{tpu_custom_call.1} parent=1 // pred_fallthru
      _
    // Predicated region
    $region10: #{tpu_custom_call.1} parent=1 // pred_check
      _
    $region11: #{tpu_custom_call.1} parent=1 // pred_check_branch
      %38 = sbr.rel (0) target = $region13
    $region12: #{tpu_custom_call.1} parent=1 // pred_region
      %s40 = ssub.s32 6144, 6144
      %41 = vsyncadd [#allocation9], %s40
      %s42 = sshll.u32 [#allocation10], 4
      %s43 = int_to_ptr.vmem [resolvable:$true] %s42
      %48 = dma.hbm_to_vmem [thread:$0]  %s2, 6144, %s43, [#allocation9], 128, 128, 8
    $region13: #{tpu_custom_call.1} parent=1 // pred_fallthru
      _
    // Predicated region
    $region14: #{tpu_custom_call.1} parent=1 // pred_check
      _
    $region15: #{tpu_custom_call.1} parent=1 // pred_check_branch
      %50 = sbr.rel (0) target = $region17
    $region16: #{tpu_custom_call.1} parent=1 // pred_region
      %s52 = ssub.s32 256, 256
      %53 = vsyncadd [#allocation12], %s52
      %s55 = sshll.u32 [#allocation11], 4
      %s56 = int_to_ptr.vmem [resolvable:$true] %s55
      %58 = dma.hbm_to_vmem [thread:$0]  %s3, 256, %s56, [#allocation12]
    $region17: #{tpu_custom_call.1} parent=1 // pred_fallthru
      _
    // Predicated region
    $region18: #{tpu_custom_call.1} parent=1 // pred_check
      _
    $region19: #{tpu_custom_call.1} parent=1 // pred_check_branch
      %60 = sbr.rel (0) target = $region21
    $region20: #{tpu_custom_call.1} parent=1 // pred_region
      %61 = dma.done [#allocation6], 512
    $region21: #{tpu_custom_call.1} parent=1 // pred_fallthru
      _
    // Predicated region
    $region22: #{tpu_custom_call.1} parent=1 // pred_check
      _
    $region23: #{tpu_custom_call.1} parent=1 // pred_check_branch
      %63 = sbr.rel (0) target = $region25
    $region24: #{tpu_custom_call.1} parent=1 // pred_region
      %64 = dma.done [#allocation9], 18432
    $region25: #{tpu_custom_call.1} parent=1 // pred_fallthru
      _
    // Predicated region
    $region26: #{tpu_custom_call.1} parent=1 // pred_check
      _
    $region27: #{tpu_custom_call.1} parent=1 // pred_check_branch
      %66 = sbr.rel (0) target = $region29
    $region28: #{tpu_custom_call.1} parent=1 // pred_region
      %67 = dma.done [#allocation9], 6144
    $region29: #{tpu_custom_call.1} parent=1 // pred_fallthru
      _
    // Predicated region
    $region30: #{tpu_custom_call.1} parent=1 // pred_check
      _
    $region31: #{tpu_custom_call.1} parent=1 // pred_check_branch
      %69 = sbr.rel (0) target = $region33
    $region32: #{tpu_custom_call.1} parent=1 // pred_region
      %70 = dma.done [#allocation12], 256
    $region33: #{tpu_custom_call.1} parent=1 // pred_fallthru
      _
    %72 = vst [vmem:[#allocation2] sm:$0xf] 0
    %73 = vst [vmem:[#allocation2 + $0x4] sm:$0xf] 0
    %74 = vst [vmem:[#allocation3] sm:$0xf] 0
    %75 = vst [vmem:[#allocation3 + $0x4] sm:$0xf] 0
    %76 = vst [vmem:[#allocation4] sm:$0xff] 0.0
    %77 = vst [vmem:[#allocation4 + $0x8] sm:$0xff] 0.0
    %78 = vst [vmem:[#allocation2 + $0x10] sm:$0xf] 0
    %79 = vst [vmem:[#allocation2 + $0x14] sm:$0xf] 0
    %80 = vst [vmem:[#allocation3 + $0x10] sm:$0xf] 0
    %81 = vst [vmem:[#allocation3 + $0x14] sm:$0xf] 0
    %82 = vst [vmem:[#allocation4 + $0x20] sm:$0xff] 0.0
    %83 = vst [vmem:[#allocation4 + $0x28] sm:$0xff] 0.0
    %84 = vst [vmem:[#allocation2 + $0x20] sm:$0xf] 0
    %85 = vst [vmem:[#allocation3 + $0x20] sm:$0xf] 0
    %86 = vst [vmem:[#allocation4 + $0x40] sm:$0xff] 0.0
    %v87 = vld [vmem:[#allocation5] sm:$0xff]
    %v88 = vld [vmem:[#allocation5 + $0x8] sm:$0xff]
    %89 = vst [vmem:[#allocation4 + $0x10] sm:$0xff] %v87
    %90 = vst [vmem:[#allocation4 + $0x18] sm:$0xff] %v88
    %v91 = vpack.c.bf16 %v88, %v87
    %v93 = vunpack.c.l.b16 %v91
    %v94 = vunpack.c.h.b16 %v91
    %v95 = vpack.c.b16 %v93, %v93
    %v96 = vpack.c.b16 %v94, %v94
    %99 = vst [vmem:[#allocation2 + $0x8] sm:$0xf] %v95
    %100 = vst [vmem:[#allocation2 + $0xc] sm:$0xf] %v96
    %s101 = scalar_lea.vmem [#allocation5], 16
    %v102 = vld [vmem:[%s101] sm:$0xff]
    %v103 = vld [vmem:[%s101 + $0x8] sm:$0xff]
    %104 = vst [vmem:[#allocation4 + $0x30] sm:$0xff] %v102
    %105 = vst [vmem:[#allocation4 + $0x38] sm:$0xff] %v103
    %v106 = vpack.c.bf16 %v103, %v102
    %v108 = vunpack.c.l.b16 %v106
    %v109 = vunpack.c.h.b16 %v106
    %v110 = vpack.c.b16 %v108, %v108
    %v111 = vpack.c.b16 %v109, %v109
    %114 = vst [vmem:[#allocation2 + $0x18] sm:$0xf] %v110
    %115 = vst [vmem:[#allocation2 + $0x1c] sm:$0xf] %v111
    %v116 = vld [vmem:[#allocation11] ss:$0 sm:$0xff]
    %v117 = vld [vmem:[#allocation2 + $0x4] sm:$0x8]
    %v118 = vld [vmem:[#allocation2 + $0x8] sm:$0xf]
    %v119 = vld [vmem:[#allocation2 + $0xc] sm:$0xf]
    %v120 = vld [vmem:[#allocation2 + $0x10] sm:$0xf]
    %v121 = vld [vmem:[#allocation2 + $0x14] sm:$0xf]
    %v122 = vld [vmem:[#allocation2 + $0x18] sm:$0xf]
    %v123 = vld [vmem:[#allocation2 + $0x1c] sm:$0xf]
    %v124 = vld [vmem:[#allocation8] sm:$0xf]
    %v125 = vld [vmem:[#allocation8 + $0x4] sm:$0xf]
    %v126 = vld [vmem:[#allocation8 + $0x8] sm:$0xf]
    %v127 = vld [vmem:[#allocation8 + $0xc] sm:$0xf]
    %v128 = vld [vmem:[#allocation8 + $0x10] sm:$0xf]
    %v129 = vld [vmem:[#allocation8 + $0x14] sm:$0xf]
    %v130 = vld [vmem:[#allocation8 + $0x18] sm:$0xf]
    %v131 = vld [vmem:[#allocation8 + $0x1c] sm:$0xf]
    %v132 = vld [vmem:[#allocation8 + $0x20] sm:$0xf]
    %v133 = vld [vmem:[#allocation8 + $0x24] sm:$0xf]
    %v134 = vld [vmem:[#allocation8 + $0x28] sm:$0xf]
    %v135 = vld [vmem:[#allocation8 + $0x2c] sm:$0xf]
    %v136 = vld [vmem:[#allocation8 + $0x30] sm:$0xf]
    %v137 = vld [vmem:[#allocation8 + $0x34] sm:$0xf]
    %v138 = vld [vmem:[#allocation8 + $0x38] sm:$0xf]
    %v139 = vld [vmem:[#allocation8 + $0x3c] sm:$0xf]
    %s140 = scalar_lea.vmem [#allocation8], 64
    %v141 = vld [vmem:[%s140] sm:$0xf]
    %v142 = vld [vmem:[%s140 + $0x4] sm:$0xf]
    %v143 = vld [vmem:[%s140 + $0x8] sm:$0xf]
    %v144 = vld [vmem:[%s140 + $0xc] sm:$0xf]
    %v145 = vld [vmem:[%s140 + $0x10] sm:$0xf]
    %v146 = vld [vmem:[%s140 + $0x14] sm:$0xf]
    %v147 = vld [vmem:[%s140 + $0x18] sm:$0xf]
    %v148 = vld [vmem:[%s140 + $0x1c] sm:$0xf]
    %v149 = vld [vmem:[%s140 + $0x20] sm:$0xf]
    %v150 = vld [vmem:[%s140 + $0x24] sm:$0xf]
    %v151 = vld [vmem:[%s140 + $0x28] sm:$0xf]
    %v152 = vld [vmem:[%s140 + $0x2c] sm:$0xf]
    %v153 = vld [vmem:[%s140 + $0x30] sm:$0xf]
    %v154 = vld [vmem:[%s140 + $0x34] sm:$0xf]
    %v155 = vld [vmem:[%s140 + $0x38] sm:$0xf]
    %v156 = vld [vmem:[%s140 + $0x3c] sm:$0xf]
    %v163 = vunpack.c.l.b16 %v118
    %v164 = vunpack.c.l.b16 %v119
    %v165 = vunpack.c.l.b16 %v120
    %v166 = vunpack.c.l.b16 %v121
    %v167 = vunpack.c.l.b16 %v122
    %v168 = vunpack.c.l.b16 %v123
    %v169 = vpack.c.b16 %v164, %v163
    %v170 = vpack.c.b16 %v166, %v165
    %v171 = vpack.c.b16 %v168, %v167
    %v191 = vunpack.c.l.b16 %v141
    %v192 = vunpack.c.l.b16 %v142
    %v193 = vunpack.c.l.b16 %v143
    %v194 = vunpack.c.l.b16 %v144
    %v195 = vunpack.c.l.b16 %v145
    %v196 = vunpack.c.l.b16 %v146
    %v197 = vunpack.c.l.b16 %v147
    %v198 = vunpack.c.l.b16 %v148
    %v199 = vunpack.c.l.b16 %v149
    %v200 = vunpack.c.l.b16 %v150
    %v201 = vunpack.c.l.b16 %v151
    %v202 = vunpack.c.l.b16 %v152
    %v203 = vunpack.c.l.b16 %v153
    %v204 = vunpack.c.l.b16 %v154
    %v205 = vunpack.c.l.b16 %v155
    %v206 = vunpack.c.l.b16 %v156
    %v207 = vpack.c.b16 %v192, %v191
    %v208 = vpack.c.b16 %v194, %v193
    %v209 = vpack.c.b16 %v196, %v195
    %v210 = vpack.c.b16 %v198, %v197
    %v211 = vpack.c.b16 %v200, %v199
    %v212 = vpack.c.b16 %v202, %v201
    %v213 = vpack.c.b16 %v204, %v203
    %v214 = vpack.c.b16 %v206, %v205
    %223 = vmatprep.subr.bf16.mxu0 0
    %224 = vmatpush1.bf16.msra.mxu0 %v207
    %225 = vmatprep.subr.bf16.mxu0 0
    %226 = vmatpush1.bf16.msra.mxu0 %v208
    %227 = vmatprep.subr.bf16.mxu0 0
    %228 = vmatpush1.bf16.msra.mxu0 %v209
    %229 = vmatprep.subr.bf16.mxu0 0
    %230 = vmatpush1.bf16.msra.mxu0 %v210
    %231 = vmatprep.subr.bf16.mxu0 0
    %232 = vmatpush1.bf16.msra.mxu0 %v211
    %233 = vmatprep.subr.bf16.mxu0 0
    %234 = vmatpush1.bf16.msra.mxu0 %v212
    %235 = vmatprep.subr.bf16.mxu0 0
    %236 = vmatpush1.bf16.msra.mxu0 %v213
    %237 = vmatprep.subr.bf16.mxu0 0
    %238 = vmatpush1.bf16.msra.mxu0 %v214
    %239 = vmatprep.subr.bf16.mxu0 0
    %240 = vmatpush1.bf16.msra.mxu0 0
    %241 = vmatprep.subr.bf16.mxu0 0
    %242 = vmatpush1.bf16.msra.mxu0 0
    %243 = vmatprep.subr.bf16.mxu0 0
    %244 = vmatpush1.bf16.msra.mxu0 0
    %245 = vmatprep.subr.bf16.mxu0 0
    %246 = vmatpush1.bf16.msra.mxu0 0
    %247 = vmatprep.subr.bf16.mxu0 0
    %248 = vmatpush1.bf16.msra.mxu0 0
    %249 = vmatprep.subr.bf16.mxu0 0
    %250 = vmatpush1.bf16.msra.mxu0 0
    %251 = vmatprep.subr.bf16.mxu0 0
    %252 = vmatpush1.bf16.msra.mxu0 0
    %253 = vmatprep.subr.bf16.mxu0 0
    %254 = vmatpush1.bf16.msra.mxu0 0
    %255 = vmatprep.mubr.bf16.mxu0 0
    %256 = vmatmul.mubr.bf16.gmra.mrb[0].mxu0 %v169
    %v257 = vpop.f32.mrb[0].mxu0
    %v258 = vadd.f32 0.0, %v257
    %v259 = vpop.f32.mrb[0].mxu0
    %v260 = vpop.f32.mrb[0].mxu0
    %v261 = vadd.f32 0.0, %v260
    %v262 = vpop.f32.mrb[0].mxu0
    %263 = vmatprep.mubr.bf16.mxu0 0
    %264 = vmatmul.mubr.bf16.gmra.mrb[0].mxu0 %v170
    %v265 = vpop.f32.mrb[0].mxu0
    %v266 = vpop.f32.mrb[0].mxu0
    %v267 = vpop.f32.mrb[0].mxu0
    %v268 = vpop.f32.mrb[0].mxu0
    %269 = vmatprep.mubr.bf16.mxu0 0
    %270 = vmatmul.mubr.bf16.gmra.mrb[0].mxu0 %v171
    %v271 = vpop.f32.mrb[0].mxu0
    %v272 = vadd.f32 0.0, %v271
    %v273 = vpop.f32.mrb[0].mxu0
    %v274 = vpop.f32.mrb[0].mxu0
    %v275 = vadd.f32 0.0, %v274
    %v276 = vpop.f32.mrb[0].mxu0
    %277 = vdwg.mxu0
    %v279 = vunpack.c.l.b16 %v117
    %v280 = vpack.c.b16 %v163, %v279
    %v281 = vpack.c.b16 %v165, %v164
    %v282 = vpack.c.b16 %v167, %v166
    %v283 = vpack.c.b16 %v168, %v168
    %vm284 = vsmask.f32 4352
    %v286 = vshrl.u32 %v280, 16
    %v288 = vrot.slane %v286, 3
    %v289 = vshll.u32 %v280, 16
    %v291 = vrot.slane %v289, 4
    %v292 = vor.u32 %v288, %v291
    %v294 = vshrl.u32 %v281, 16
    %v296 = vrot.slane %v294, 3
    %v297 = vshll.u32 %v281, 16
    %v299 = vrot.slane %v297, 4
    %v300 = vor.u32 %v296, %v299
    %v301 = vsel %vm284, %v292, %v300
    %v303 = vshrl.u32 %v282, 16
    %v305 = vrot.slane %v303, 3
    %v306 = vshll.u32 %v282, 16
    %v308 = vrot.slane %v306, 4
    %v309 = vor.u32 %v305, %v308
    %v310 = vsel %vm284, %v300, %v309
    %v312 = vshrl.u32 %v283, 16
    %v314 = vrot.slane %v312, 3
    %v315 = vshll.u32 %v283, 16
    %v317 = vrot.slane %v315, 4
    %v318 = vor.u32 %v314, %v317
    %v319 = vsel %vm284, %v309, %v318
    %v339 = vunpack.c.l.b16 %v124
    %v340 = vunpack.c.l.b16 %v125
    %v341 = vunpack.c.l.b16 %v126
    %v342 = vunpack.c.l.b16 %v127
    %v343 = vunpack.c.l.b16 %v128
    %v344 = vunpack.c.l.b16 %v129
    %v345 = vunpack.c.l.b16 %v130
    %v346 = vunpack.c.l.b16 %v131
    %v347 = vunpack.c.l.b16 %v132
    %v348 = vunpack.c.l.b16 %v133
    %v349 = vunpack.c.l.b16 %v134
    %v350 = vunpack.c.l.b16 %v135
    %v351 = vunpack.c.l.b16 %v136
    %v352 = vunpack.c.l.b16 %v137
    %v353 = vunpack.c.l.b16 %v138
    %v354 = vunpack.c.l.b16 %v139
    %v355 = vpack.c.b16 %v340, %v339
    %v356 = vpack.c.b16 %v342, %v341
    %v357 = vpack.c.b16 %v344, %v343
    %v358 = vpack.c.b16 %v346, %v345
    %v359 = vpack.c.b16 %v348, %v347
    %v360 = vpack.c.b16 %v350, %v349
    %v361 = vpack.c.b16 %v352, %v351
    %v362 = vpack.c.b16 %v354, %v353
    %371 = vmatprep.subr.bf16.mxu0 0
    %372 = vmatpush1.bf16.msra.mxu0 %v355
    %373 = vmatprep.subr.bf16.mxu0 0
    %374 = vmatpush1.bf16.msra.mxu0 %v356
    %375 = vmatprep.subr.bf16.mxu0 0
    %376 = vmatpush1.bf16.msra.mxu0 %v357
    %377 = vmatprep.subr.bf16.mxu0 0
    %378 = vmatpush1.bf16.msra.mxu0 %v358
    %379 = vmatprep.subr.bf16.mxu0 0
    %380 = vmatpush1.bf16.msra.mxu0 %v359
    %381 = vmatprep.subr.bf16.mxu0 0
    %382 = vmatpush1.bf16.msra.mxu0 %v360
    %383 = vmatprep.subr.bf16.mxu0 0
    %384 = vmatpush1.bf16.msra.mxu0 %v361
    %385 = vmatprep.subr.bf16.mxu0 0
    %386 = vmatpush1.bf16.msra.mxu0 %v362
    %387 = vmatprep.subr.bf16.mxu0 0
    %388 = vmatpush1.bf16.msra.mxu0 0
    %389 = vmatprep.subr.bf16.mxu0 0
    %390 = vmatpush1.bf16.msra.mxu0 0
    %391 = vmatprep.subr.bf16.mxu0 0
    %392 = vmatpush1.bf16.msra.mxu0 0
    %393 = vmatprep.subr.bf16.mxu0 0
    %394 = vmatpush1.bf16.msra.mxu0 0
    %395 = vmatprep.subr.bf16.mxu0 0
    %396 = vmatpush1.bf16.msra.mxu0 0
    %397 = vmatprep.subr.bf16.mxu0 0
    %398 = vmatpush1.bf16.msra.mxu0 0
    %399 = vmatprep.subr.bf16.mxu0 0
    %400 = vmatpush1.bf16.msra.mxu0 0
    %401 = vmatprep.subr.bf16.mxu0 0
    %402 = vmatpush1.bf16.msra.mxu0 0
    %403 = vmatprep.mubr.bf16.mxu0 0
    %404 = vmatmul.mubr.bf16.gmra.mrb[0].mxu0 %v301
    %v405 = vpop.f32.mrb[0].mxu0
    %v406 = vadd.f32 %v258, %v405
    %v407 = vpop.f32.mrb[0].mxu0
    %v408 = vpop.f32.mrb[0].mxu0
    %v409 = vadd.f32 %v261, %v408
    %v410 = vpop.f32.mrb[0].mxu0
    %411 = vmatprep.mubr.bf16.mxu0 0
    %412 = vmatmul.mubr.bf16.gmra.mrb[0].mxu0 %v310
    %v413 = vpop.f32.mrb[0].mxu0
    %v414 = vpop.f32.mrb[0].mxu0
    %v415 = vpop.f32.mrb[0].mxu0
    %v416 = vpop.f32.mrb[0].mxu0
    %417 = vmatprep.mubr.bf16.mxu0 0
    %418 = vmatmul.mubr.bf16.gmra.mrb[0].mxu0 %v319
    %v419 = vpop.f32.mrb[0].mxu0
    %v420 = vadd.f32 %v272, %v419
    %v421 = vpop.f32.mrb[0].mxu0
    %v422 = vpop.f32.mrb[0].mxu0
    %v423 = vadd.f32 %v275, %v422
    %v424 = vpop.f32.mrb[0].mxu0
    %425 = vdwg.mxu0
    %v426 = vld [vmem:[#allocation2 + $0x8] sm:$0xf]
    %v427 = vld [vmem:[#allocation2 + $0xc] sm:$0xf]
    %v428 = vld [vmem:[#allocation2 + $0x10] sm:$0xf]
    %v429 = vld [vmem:[#allocation2 + $0x14] sm:$0xf]
    %v430 = vld [vmem:[#allocation2 + $0x18] sm:$0xf]
    %v431 = vld [vmem:[#allocation2 + $0x1c] sm:$0xf]
    %v432 = vld [vmem:[#allocation2 + $0x20] sm:$0x1]
    %s433 = scalar_lea.vmem [#allocation8], 128
    %v434 = vld [vmem:[%s433] sm:$0xf]
    %v435 = vld [vmem:[%s433 + $0x4] sm:$0xf]
    %v436 = vld [vmem:[%s433 + $0x8] sm:$0xf]
    %v437 = vld [vmem:[%s433 + $0xc] sm:$0xf]
    %v438 = vld [vmem:[%s433 + $0x10] sm:$0xf]
    %v439 = vld [vmem:[%s433 + $0x14] sm:$0xf]
    %v440 = vld [vmem:[%s433 + $0x18] sm:$0xf]
    %v441 = vld [vmem:[%s433 + $0x1c] sm:$0xf]
    %v442 = vld [vmem:[%s433 + $0x20] sm:$0xf]
    %v443 = vld [vmem:[%s433 + $0x24] sm:$0xf]
    %v444 = vld [vmem:[%s433 + $0x28] sm:$0xf]
    %v445 = vld [vmem:[%s433 + $0x2c] sm:$0xf]
    %v446 = vld [vmem:[%s433 + $0x30] sm:$0xf]
    %v447 = vld [vmem:[%s433 + $0x34] sm:$0xf]
    %v448 = vld [vmem:[%s433 + $0x38] sm:$0xf]
    %v449 = vld [vmem:[%s433 + $0x3c] sm:$0xf]
    %v457 = vunpack.c.l.b16 %v426
    %v458 = vunpack.c.l.b16 %v427
    %v459 = vunpack.c.l.b16 %v428
    %v460 = vunpack.c.l.b16 %v429
    %v461 = vunpack.c.l.b16 %v430
    %v462 = vunpack.c.l.b16 %v431
    %v463 = vunpack.c.l.b16 %v432
    %v464 = vpack.c.b16 %v458, %v457
    %v465 = vpack.c.b16 %v460, %v459
    %v466 = vpack.c.b16 %v462, %v461
    %v467 = vpack.c.b16 %v463, %v463
    %vm468 = vsmask.f32 7424
    %v470 = vshrl.u32 %v464, 16
    %v472 = vshll.u32 %v464, 16
    %v474 = vrot.slane %v472, 1
    %v475 = vor.u32 %v470, %v474
    %v477 = vshll.u32 %v465, 16
    %v479 = vrot.slane %v477, 1
    %v480 = vsel %vm468, %v475, %v479
    %v481 = vshrl.u32 %v465, 16
    %v483 = vor.u32 %v481, %v479
    %v485 = vshll.u32 %v466, 16
    %v487 = vrot.slane %v485, 1
    %v488 = vsel %vm468, %v483, %v487
    %v489 = vshrl.u32 %v466, 16
    %v491 = vor.u32 %v489, %v487
    %v493 = vshll.u32 %v467, 16
    %v495 = vrot.slane %v493, 1
    %v496 = vsel %vm468, %v491, %v495
    %v516 = vunpack.c.l.b16 %v434
    %v517 = vunpack.c.l.b16 %v435
    %v518 = vunpack.c.l.b16 %v436
    %v519 = vunpack.c.l.b16 %v437
    %v520 = vunpack.c.l.b16 %v438
    %v521 = vunpack.c.l.b16 %v439
    %v522 = vunpack.c.l.b16 %v440
    %v523 = vunpack.c.l.b16 %v441
    %v524 = vunpack.c.l.b16 %v442
    %v525 = vunpack.c.l.b16 %v443
    %v526 = vunpack.c.l.b16 %v444
    %v527 = vunpack.c.l.b16 %v445
    %v528 = vunpack.c.l.b16 %v446
    %v529 = vunpack.c.l.b16 %v447
    %v530 = vunpack.c.l.b16 %v448
    %v531 = vunpack.c.l.b16 %v449
    %v532 = vpack.c.b16 %v517, %v516
    %v533 = vpack.c.b16 %v519, %v518
    %v534 = vpack.c.b16 %v521, %v520
    %v535 = vpack.c.b16 %v523, %v522
    %v536 = vpack.c.b16 %v525, %v524
    %v537 = vpack.c.b16 %v527, %v526
    %v538 = vpack.c.b16 %v529, %v528
    %v539 = vpack.c.b16 %v531, %v530
    %548 = vmatprep.subr.bf16.mxu0 0
    %549 = vmatpush1.bf16.msra.mxu0 %v532
    %550 = vmatprep.subr.bf16.mxu0 0
    %551 = vmatpush1.bf16.msra.mxu0 %v533
    %552 = vmatprep.subr.bf16.mxu0 0
    %553 = vmatpush1.bf16.msra.mxu0 %v534
    %554 = vmatprep.subr.bf16.mxu0 0
    %555 = vmatpush1.bf16.msra.mxu0 %v535
    %556 = vmatprep.subr.bf16.mxu0 0
    %557 = vmatpush1.bf16.msra.mxu0 %v536
    %558 = vmatprep.subr.bf16.mxu0 0
    %559 = vmatpush1.bf16.msra.mxu0 %v537
    %560 = vmatprep.subr.bf16.mxu0 0
    %561 = vmatpush1.bf16.msra.mxu0 %v538
    %562 = vmatprep.subr.bf16.mxu0 0
    %563 = vmatpush1.bf16.msra.mxu0 %v539
    %564 = vmatprep.subr.bf16.mxu0 0
    %565 = vmatpush1.bf16.msra.mxu0 0
    %566 = vmatprep.subr.bf16.mxu0 0
    %567 = vmatpush1.bf16.msra.mxu0 0
    %568 = vmatprep.subr.bf16.mxu0 0
    %569 = vmatpush1.bf16.msra.mxu0 0
    %570 = vmatprep.subr.bf16.mxu0 0
    %571 = vmatpush1.bf16.msra.mxu0 0
    %572 = vmatprep.subr.bf16.mxu0 0
    %573 = vmatpush1.bf16.msra.mxu0 0
    %574 = vmatprep.subr.bf16.mxu0 0
    %575 = vmatpush1.bf16.msra.mxu0 0
    %576 = vmatprep.subr.bf16.mxu0 0
    %577 = vmatpush1.bf16.msra.mxu0 0
    %578 = vmatprep.subr.bf16.mxu0 0
    %579 = vmatpush1.bf16.msra.mxu0 0
    %580 = vmatprep.mubr.bf16.mxu0 0
    %581 = vmatmul.mubr.bf16.gmra.mrb[0].mxu0 %v480
    %v582 = vpop.f32.mrb[0].mxu0
    %v583 = vadd.f32 0.0, %v582
    %v584 = vpop.f32.mrb[0].mxu0
    %v585 = vpop.f32.mrb[0].mxu0
    %v586 = vadd.f32 0.0, %v585
    %v587 = vpop.f32.mrb[0].mxu0
    %588 = vmatprep.mubr.bf16.mxu0 0
    %589 = vmatmul.mubr.bf16.gmra.mrb[0].mxu0 %v488
    %v590 = vpop.f32.mrb[0].mxu0
    %v591 = vpop.f32.mrb[0].mxu0
    %v592 = vpop.f32.mrb[0].mxu0
    %v593 = vpop.f32.mrb[0].mxu0
    %594 = vmatprep.mubr.bf16.mxu0 0
    %595 = vmatmul.mubr.bf16.gmra.mrb[0].mxu0 %v496
    %v596 = vpop.f32.mrb[0].mxu0
    %v597 = vadd.f32 0.0, %v596
    %v598 = vpop.f32.mrb[0].mxu0
    %v599 = vpop.f32.mrb[0].mxu0
    %v600 = vadd.f32 0.0, %v599
    %v601 = vpop.f32.mrb[0].mxu0
    %602 = vdwg.mxu0
    %v603 = vadd.f32 %v406, %v583
    %v604 = vadd.f32 %v409, %v586
    %v605 = vadd.f32 %v420, %v597
    %v606 = vadd.f32 %v423, %v600
    %v607 = vadd.f32 %v603, %v116
    %v608 = vadd.f32 %v604, %v116
    %v609 = vadd.f32 %v605, %v116
    %v610 = vadd.f32 %v606, %v116
    %v611 = vmax.f32 %v607, 0.0
    %v612 = vmax.f32 %v608, 0.0
    %v613 = vmax.f32 %v609, 0.0
    %v614 = vmax.f32 %v610, 0.0
    %v615 = vpack.c.bf16 %v612, %v611
    %v616 = vpack.c.bf16 %v614, %v613
    %v618 = vunpack.c.l.b16 %v615
    %v619 = vunpack.c.h.b16 %v615
    %v620 = vpack.c.b16 %v618, %v618
    %v621 = vpack.c.b16 %v619, %v619
    %624 = vst [vmem:[#allocation3 + $0x8] sm:$0xf] %v620
    %625 = vst [vmem:[#allocation3 + $0xc] sm:$0xf] %v621
    %v627 = vunpack.c.l.b16 %v616
    %v628 = vunpack.c.h.b16 %v616
    %v629 = vpack.c.b16 %v627, %v627
    %v630 = vpack.c.b16 %v628, %v628
    %633 = vst [vmem:[#allocation3 + $0x18] sm:$0xf] %v629
    %634 = vst [vmem:[#allocation3 + $0x1c] sm:$0xf] %v630
    %v635 = vld [vmem:[#allocation11 + $0x1] ss:$0 sm:$0xff]
    %v636 = vld [vmem:[#allocation3 + $0x4] sm:$0x8]
    %v637 = vld [vmem:[#allocation3 + $0x8] sm:$0xf]
    %v638 = vld [vmem:[#allocation3 + $0xc] sm:$0xf]
    %v639 = vld [vmem:[#allocation3 + $0x10] sm:$0xf]
    %v640 = vld [vmem:[#allocation3 + $0x14] sm:$0xf]
    %v641 = vld [vmem:[#allocation3 + $0x18] sm:$0xf]
    %v642 = vld [vmem:[#allocation3 + $0x1c] sm:$0xf]
    %s643 = scalar_lea.vmem [#allocation8], 192
    %v644 = vld [vmem:[%s643] sm:$0xf]
    %v645 = vld [vmem:[%s643 + $0x4] sm:$0xf]
    %v646 = vld [vmem:[%s643 + $0x8] sm:$0xf]
    %v647 = vld [vmem:[%s643 + $0xc] sm:$0xf]
    %v648 = vld [vmem:[%s643 + $0x10] sm:$0xf]
    %v649 = vld [vmem:[%s643 + $0x14] sm:$0xf]
    %v650 = vld [vmem:[%s643 + $0x18] sm:$0xf]
    %v651 = vld [vmem:[%s643 + $0x1c] sm:$0xf]
    %v652 = vld [vmem:[%s643 + $0x20] sm:$0xf]
    %v653 = vld [vmem:[%s643 + $0x24] sm:$0xf]
    %v654 = vld [vmem:[%s643 + $0x28] sm:$0xf]
    %v655 = vld [vmem:[%s643 + $0x2c] sm:$0xf]
    %v656 = vld [vmem:[%s643 + $0x30] sm:$0xf]
    %v657 = vld [vmem:[%s643 + $0x34] sm:$0xf]
    %v658 = vld [vmem:[%s643 + $0x38] sm:$0xf]
    %v659 = vld [vmem:[%s643 + $0x3c] sm:$0xf]
    %s660 = scalar_lea.vmem [#allocation8], 256
    %v661 = vld [vmem:[%s660] sm:$0xf]
    %v662 = vld [vmem:[%s660 + $0x4] sm:$0xf]
    %v663 = vld [vmem:[%s660 + $0x8] sm:$0xf]
    %v664 = vld [vmem:[%s660 + $0xc] sm:$0xf]
    %v665 = vld [vmem:[%s660 + $0x10] sm:$0xf]
    %v666 = vld [vmem:[%s660 + $0x14] sm:$0xf]
    %v667 = vld [vmem:[%s660 + $0x18] sm:$0xf]
    %v668 = vld [vmem:[%s660 + $0x1c] sm:$0xf]
    %v669 = vld [vmem:[%s660 + $0x20] sm:$0xf]
    %v670 = vld [vmem:[%s660 + $0x24] sm:$0xf]
    %v671 = vld [vmem:[%s660 + $0x28] sm:$0xf]
    %v672 = vld [vmem:[%s660 + $0x2c] sm:$0xf]
    %v673 = vld [vmem:[%s660 + $0x30] sm:$0xf]
    %v674 = vld [vmem:[%s660 + $0x34] sm:$0xf]
    %v675 = vld [vmem:[%s660 + $0x38] sm:$0xf]
    %v676 = vld [vmem:[%s660 + $0x3c] sm:$0xf]
    %v683 = vunpack.c.l.b16 %v637
    %v684 = vunpack.c.l.b16 %v638
    %v685 = vunpack.c.l.b16 %v639
    %v686 = vunpack.c.l.b16 %v640
    %v687 = vunpack.c.l.b16 %v641
    %v688 = vunpack.c.l.b16 %v642
    %v689 = vpack.c.b16 %v684, %v683
    %v690 = vpack.c.b16 %v686, %v685
    %v691 = vpack.c.b16 %v688, %v687
    %v711 = vunpack.c.l.b16 %v661
    %v712 = vunpack.c.l.b16 %v662
    %v713 = vunpack.c.l.b16 %v663
    %v714 = vunpack.c.l.b16 %v664
    %v715 = vunpack.c.l.b16 %v665
    %v716 = vunpack.c.l.b16 %v666
    %v717 = vunpack.c.l.b16 %v667
    %v718 = vunpack.c.l.b16 %v668
    %v719 = vunpack.c.l.b16 %v669
    %v720 = vunpack.c.l.b16 %v670
    %v721 = vunpack.c.l.b16 %v671
    %v722 = vunpack.c.l.b16 %v672
    %v723 = vunpack.c.l.b16 %v673
    %v724 = vunpack.c.l.b16 %v674
    %v725 = vunpack.c.l.b16 %v675
    %v726 = vunpack.c.l.b16 %v676
    %v727 = vpack.c.b16 %v712, %v711
    %v728 = vpack.c.b16 %v714, %v713
    %v729 = vpack.c.b16 %v716, %v715
    %v730 = vpack.c.b16 %v718, %v717
    %v731 = vpack.c.b16 %v720, %v719
    %v732 = vpack.c.b16 %v722, %v721
    %v733 = vpack.c.b16 %v724, %v723
    %v734 = vpack.c.b16 %v726, %v725
    %743 = vmatprep.subr.bf16.mxu0 0
    %744 = vmatpush1.bf16.msra.mxu0 %v727
    %745 = vmatprep.subr.bf16.mxu0 0
    %746 = vmatpush1.bf16.msra.mxu0 %v728
    %747 = vmatprep.subr.bf16.mxu0 0
    %748 = vmatpush1.bf16.msra.mxu0 %v729
    %749 = vmatprep.subr.bf16.mxu0 0
    %750 = vmatpush1.bf16.msra.mxu0 %v730
    %751 = vmatprep.subr.bf16.mxu0 0
    %752 = vmatpush1.bf16.msra.mxu0 %v731
    %753 = vmatprep.subr.bf16.mxu0 0
    %754 = vmatpush1.bf16.msra.mxu0 %v732
    %755 = vmatprep.subr.bf16.mxu0 0
    %756 = vmatpush1.bf16.msra.mxu0 %v733
    %757 = vmatprep.subr.bf16.mxu0 0
    %758 = vmatpush1.bf16.msra.mxu0 %v734
    %759 = vmatprep.subr.bf16.mxu0 0
    %760 = vmatpush1.bf16.msra.mxu0 0
    %761 = vmatprep.subr.bf16.mxu0 0
    %762 = vmatpush1.bf16.msra.mxu0 0
    %763 = vmatprep.subr.bf16.mxu0 0
    %764 = vmatpush1.bf16.msra.mxu0 0
    %765 = vmatprep.subr.bf16.mxu0 0
    %766 = vmatpush1.bf16.msra.mxu0 0
    %767 = vmatprep.subr.bf16.mxu0 0
    %768 = vmatpush1.bf16.msra.mxu0 0
    %769 = vmatprep.subr.bf16.mxu0 0
    %770 = vmatpush1.bf16.msra.mxu0 0
    %771 = vmatprep.subr.bf16.mxu0 0
    %772 = vmatpush1.bf16.msra.mxu0 0
    %773 = vmatprep.subr.bf16.mxu0 0
    %774 = vmatpush1.bf16.msra.mxu0 0
    %775 = vmatprep.mubr.bf16.mxu0 0
    %776 = vmatmul.mubr.bf16.gmra.mrb[0].mxu0 %v689
    %v777 = vpop.f32.mrb[0].mxu0
    %v778 = vadd.f32 0.0, %v777
    %v779 = vpop.f32.mrb[0].mxu0
    %v780 = vpop.f32.mrb[0].mxu0
    %v781 = vadd.f32 0.0, %v780
    %v782 = vpop.f32.mrb[0].mxu0
    %783 = vmatprep.mubr.bf16.mxu0 0
    %784 = vmatmul.mubr.bf16.gmra.mrb[0].mxu0 %v690
    %v785 = vpop.f32.mrb[0].mxu0
    %v786 = vpop.f32.mrb[0].mxu0
    %v787 = vpop.f32.mrb[0].mxu0
    %v788 = vpop.f32.mrb[0].mxu0
    %789 = vmatprep.mubr.bf16.mxu0 0
    %790 = vmatmul.mubr.bf16.gmra.mrb[0].mxu0 %v691
    %v791 = vpop.f32.mrb[0].mxu0
    %v792 = vadd.f32 0.0, %v791
    %v793 = vpop.f32.mrb[0].mxu0
    %v794 = vpop.f32.mrb[0].mxu0
    %v795 = vadd.f32 0.0, %v794
    %v796 = vpop.f32.mrb[0].mxu0
    %797 = vdwg.mxu0
    %v799 = vunpack.c.l.b16 %v636
    %v800 = vpack.c.b16 %v683, %v799
    %v801 = vpack.c.b16 %v685, %v684
    %v802 = vpack.c.b16 %v687, %v686
    %v803 = vpack.c.b16 %v688, %v688
    %v805 = vshrl.u32 %v800, 16
    %v807 = vrot.slane %v805, 3
    %v808 = vshll.u32 %v800, 16
    %v810 = vrot.slane %v808, 4
    %v811 = vor.u32 %v807, %v810
    %v813 = vshrl.u32 %v801, 16
    %v815 = vrot.slane %v813, 3
    %v816 = vshll.u32 %v801, 16
    %v818 = vrot.slane %v816, 4
    %v819 = vor.u32 %v815, %v818
    %v820 = vsel %vm284, %v811, %v819
    %v822 = vshrl.u32 %v802, 16
    %v824 = vrot.slane %v822, 3
    %v825 = vshll.u32 %v802, 16
    %v827 = vrot.slane %v825, 4
    %v828 = vor.u32 %v824, %v827
    %v829 = vsel %vm284, %v819, %v828
    %v831 = vshrl.u32 %v803, 16
    %v833 = vrot.slane %v831, 3
    %v834 = vshll.u32 %v803, 16
    %v836 = vrot.slane %v834, 4
    %v837 = vor.u32 %v833, %v836
    %v838 = vsel %vm284, %v828, %v837
    %v858 = vunpack.c.l.b16 %v644
    %v859 = vunpack.c.l.b16 %v645
    %v860 = vunpack.c.l.b16 %v646
    %v861 = vunpack.c.l.b16 %v647
    %v862 = vunpack.c.l.b16 %v648
    %v863 = vunpack.c.l.b16 %v649
    %v864 = vunpack.c.l.b16 %v650
    %v865 = vunpack.c.l.b16 %v651
    %v866 = vunpack.c.l.b16 %v652
    %v867 = vunpack.c.l.b16 %v653
    %v868 = vunpack.c.l.b16 %v654
    %v869 = vunpack.c.l.b16 %v655
    %v870 = vunpack.c.l.b16 %v656
    %v871 = vunpack.c.l.b16 %v657
    %v872 = vunpack.c.l.b16 %v658
    %v873 = vunpack.c.l.b16 %v659
    %v874 = vpack.c.b16 %v859, %v858
    %v875 = vpack.c.b16 %v861, %v860
    %v876 = vpack.c.b16 %v863, %v862
    %v877 = vpack.c.b16 %v865, %v864
    %v878 = vpack.c.b16 %v867, %v866
    %v879 = vpack.c.b16 %v869, %v868
    %v880 = vpack.c.b16 %v871, %v870
    %v881 = vpack.c.b16 %v873, %v872
    %890 = vmatprep.subr.bf16.mxu0 0
    %891 = vmatpush1.bf16.msra.mxu0 %v874
    %892 = vmatprep.subr.bf16.mxu0 0
    %893 = vmatpush1.bf16.msra.mxu0 %v875
    %894 = vmatprep.subr.bf16.mxu0 0
    %895 = vmatpush1.bf16.msra.mxu0 %v876
    %896 = vmatprep.subr.bf16.mxu0 0
    %897 = vmatpush1.bf16.msra.mxu0 %v877
    %898 = vmatprep.subr.bf16.mxu0 0
    %899 = vmatpush1.bf16.msra.mxu0 %v878
    %900 = vmatprep.subr.bf16.mxu0 0
    %901 = vmatpush1.bf16.msra.mxu0 %v879
    %902 = vmatprep.subr.bf16.mxu0 0
    %903 = vmatpush1.bf16.msra.mxu0 %v880
    %904 = vmatprep.subr.bf16.mxu0 0
    %905 = vmatpush1.bf16.msra.mxu0 %v881
    %906 = vmatprep.subr.bf16.mxu0 0
    %907 = vmatpush1.bf16.msra.mxu0 0
    %908 = vmatprep.subr.bf16.mxu0 0
    %909 = vmatpush1.bf16.msra.mxu0 0
    %910 = vmatprep.subr.bf16.mxu0 0
    %911 = vmatpush1.bf16.msra.mxu0 0
    %912 = vmatprep.subr.bf16.mxu0 0
    %913 = vmatpush1.bf16.msra.mxu0 0
    %914 = vmatprep.subr.bf16.mxu0 0
    %915 = vmatpush1.bf16.msra.mxu0 0
    %916 = vmatprep.subr.bf16.mxu0 0
    %917 = vmatpush1.bf16.msra.mxu0 0
    %918 = vmatprep.subr.bf16.mxu0 0
    %919 = vmatpush1.bf16.msra.mxu0 0
    %920 = vmatprep.subr.bf16.mxu0 0
    %921 = vmatpush1.bf16.msra.mxu0 0
    %922 = vmatprep.mubr.bf16.mxu0 0
    %923 = vmatmul.mubr.bf16.gmra.mrb[0].mxu0 %v820
    %v924 = vpop.f32.mrb[0].mxu0
    %v925 = vadd.f32 %v778, %v924
    %v926 = vpop.f32.mrb[0].mxu0
    %v927 = vpop.f32.mrb[0].mxu0
    %v928 = vadd.f32 %v781, %v927
    %v929 = vpop.f32.mrb[0].mxu0
    %930 = vmatprep.mubr.bf16.mxu0 0
    %931 = vmatmul.mubr.bf16.gmra.mrb[0].mxu0 %v829
    %v932 = vpop.f32.mrb[0].mxu0
    %v933 = vpop.f32.mrb[0].mxu0
    %v934 = vpop.f32.mrb[0].mxu0
    %v935 = vpop.f32.mrb[0].mxu0
    %936 = vmatprep.mubr.bf16.mxu0 0
    %937 = vmatmul.mubr.bf16.gmra.mrb[0].mxu0 %v838
    %v938 = vpop.f32.mrb[0].mxu0
    %v939 = vadd.f32 %v792, %v938
    %v940 = vpop.f32.mrb[0].mxu0
    %v941 = vpop.f32.mrb[0].mxu0
    %v942 = vadd.f32 %v795, %v941
    %v943 = vpop.f32.mrb[0].mxu0
    %944 = vdwg.mxu0
    %v945 = vld [vmem:[#allocation3 + $0x8] sm:$0xf]
    %v946 = vld [vmem:[#allocation3 + $0xc] sm:$0xf]
    %v947 = vld [vmem:[#allocation3 + $0x10] sm:$0xf]
    %v948 = vld [vmem:[#allocation3 + $0x14] sm:$0xf]
    %v949 = vld [vmem:[#allocation3 + $0x18] sm:$0xf]
    %v950 = vld [vmem:[#allocation3 + $0x1c] sm:$0xf]
    %v951 = vld [vmem:[#allocation3 + $0x20] sm:$0x1]
    %s952 = scalar_lea.vmem [#allocation8], 320
    %v953 = vld [vmem:[%s952] sm:$0xf]
    %v954 = vld [vmem:[%s952 + $0x4] sm:$0xf]
    %v955 = vld [vmem:[%s952 + $0x8] sm:$0xf]
    %v956 = vld [vmem:[%s952 + $0xc] sm:$0xf]
    %v957 = vld [vmem:[%s952 + $0x10] sm:$0xf]
    %v958 = vld [vmem:[%s952 + $0x14] sm:$0xf]
    %v959 = vld [vmem:[%s952 + $0x18] sm:$0xf]
    %v960 = vld [vmem:[%s952 + $0x1c] sm:$0xf]
    %v961 = vld [vmem:[%s952 + $0x20] sm:$0xf]
    %v962 = vld [vmem:[%s952 + $0x24] sm:$0xf]
    %v963 = vld [vmem:[%s952 + $0x28] sm:$0xf]
    %v964 = vld [vmem:[%s952 + $0x2c] sm:$0xf]
    %v965 = vld [vmem:[%s952 + $0x30] sm:$0xf]
    %v966 = vld [vmem:[%s952 + $0x34] sm:$0xf]
    %v967 = vld [vmem:[%s952 + $0x38] sm:$0xf]
    %v968 = vld [vmem:[%s952 + $0x3c] sm:$0xf]
    %v976 = vunpack.c.l.b16 %v945
    %v977 = vunpack.c.l.b16 %v946
    %v978 = vunpack.c.l.b16 %v947
    %v979 = vunpack.c.l.b16 %v948
    %v980 = vunpack.c.l.b16 %v949
    %v981 = vunpack.c.l.b16 %v950
    %v982 = vunpack.c.l.b16 %v951
    %v983 = vpack.c.b16 %v977, %v976
    %v984 = vpack.c.b16 %v979, %v978
    %v985 = vpack.c.b16 %v981, %v980
    %v986 = vpack.c.b16 %v982, %v982
    %v988 = vshrl.u32 %v983, 16
    %v990 = vshll.u32 %v983, 16
    %v992 = vrot.slane %v990, 1
    %v993 = vor.u32 %v988, %v992
    %v995 = vshll.u32 %v984, 16
    %v997 = vrot.slane %v995, 1
    %v998 = vsel %vm468, %v993, %v997
    %v999 = vshrl.u32 %v984, 16
    %v1001 = vor.u32 %v999, %v997
    %v1003 = vshll.u32 %v985, 16
    %v1005 = vrot.slane %v1003, 1
    %v1006 = vsel %vm468, %v1001, %v1005
    %v1007 = vshrl.u32 %v985, 16
    %v1009 = vor.u32 %v1007, %v1005
    %v1011 = vshll.u32 %v986, 16
    %v1013 = vrot.slane %v1011, 1
    %v1014 = vsel %vm468, %v1009, %v1013
    %v1034 = vunpack.c.l.b16 %v953
    %v1035 = vunpack.c.l.b16 %v954
    %v1036 = vunpack.c.l.b16 %v955
    %v1037 = vunpack.c.l.b16 %v956
    %v1038 = vunpack.c.l.b16 %v957
    %v1039 = vunpack.c.l.b16 %v958
    %v1040 = vunpack.c.l.b16 %v959
    %v1041 = vunpack.c.l.b16 %v960
    %v1042 = vunpack.c.l.b16 %v961
    %v1043 = vunpack.c.l.b16 %v962
    %v1044 = vunpack.c.l.b16 %v963
    %v1045 = vunpack.c.l.b16 %v964
    %v1046 = vunpack.c.l.b16 %v965
    %v1047 = vunpack.c.l.b16 %v966
    %v1048 = vunpack.c.l.b16 %v967
    %v1049 = vunpack.c.l.b16 %v968
    %v1050 = vpack.c.b16 %v1035, %v1034
    %v1051 = vpack.c.b16 %v1037, %v1036
    %v1052 = vpack.c.b16 %v1039, %v1038
    %v1053 = vpack.c.b16 %v1041, %v1040
    %v1054 = vpack.c.b16 %v1043, %v1042
    %v1055 = vpack.c.b16 %v1045, %v1044
    %v1056 = vpack.c.b16 %v1047, %v1046
    %v1057 = vpack.c.b16 %v1049, %v1048
    %1066 = vmatprep.subr.bf16.mxu0 0
    %1067 = vmatpush1.bf16.msra.mxu0 %v1050
    %1068 = vmatprep.subr.bf16.mxu0 0
    %1069 = vmatpush1.bf16.msra.mxu0 %v1051
    %1070 = vmatprep.subr.bf16.mxu0 0
    %1071 = vmatpush1.bf16.msra.mxu0 %v1052
    %1072 = vmatprep.subr.bf16.mxu0 0
    %1073 = vmatpush1.bf16.msra.mxu0 %v1053
    %1074 = vmatprep.subr.bf16.mxu0 0
    %1075 = vmatpush1.bf16.msra.mxu0 %v1054
    %1076 = vmatprep.subr.bf16.mxu0 0
    %1077 = vmatpush1.bf16.msra.mxu0 %v1055
    %1078 = vmatprep.subr.bf16.mxu0 0
    %1079 = vmatpush1.bf16.msra.mxu0 %v1056
    %1080 = vmatprep.subr.bf16.mxu0 0
    %1081 = vmatpush1.bf16.msra.mxu0 %v1057
    %1082 = vmatprep.subr.bf16.mxu0 0
    %1083 = vmatpush1.bf16.msra.mxu0 0
    %1084 = vmatprep.subr.bf16.mxu0 0
    %1085 = vmatpush1.bf16.msra.mxu0 0
    %1086 = vmatprep.subr.bf16.mxu0 0
    %1087 = vmatpush1.bf16.msra.mxu0 0
    %1088 = vmatprep.subr.bf16.mxu0 0
    %1089 = vmatpush1.bf16.msra.mxu0 0
    %1090 = vmatprep.subr.bf16.mxu0 0
    %1091 = vmatpush1.bf16.msra.mxu0 0
    %1092 = vmatprep.subr.bf16.mxu0 0
    %1093 = vmatpush1.bf16.msra.mxu0 0
    %1094 = vmatprep.subr.bf16.mxu0 0
    %1095 = vmatpush1.bf16.msra.mxu0 0
    %1096 = vmatprep.subr.bf16.mxu0 0
    %1097 = vmatpush1.bf16.msra.mxu0 0
    %1098 = vmatprep.mubr.bf16.mxu0 0
    %1099 = vmatmul.mubr.bf16.gmra.mrb[0].mxu0 %v998
    %v1100 = vpop.f32.mrb[0].mxu0
    %v1101 = vadd.f32 0.0, %v1100
    %v1102 = vpop.f32.mrb[0].mxu0
    %v1103 = vpop.f32.mrb[0].mxu0
    %v1104 = vadd.f32 0.0, %v1103
    %v1105 = vpop.f32.mrb[0].mxu0
    %1106 = vmatprep.mubr.bf16.mxu0 0
    %1107 = vmatmul.mubr.bf16.gmra.mrb[0].mxu0 %v1006
    %v1108 = vpop.f32.mrb[0].mxu0
    %v1109 = vpop.f32.mrb[0].mxu0
    %v1110 = vpop.f32.mrb[0].mxu0
    %v1111 = vpop.f32.mrb[0].mxu0
    %1112 = vmatprep.mubr.bf16.mxu0 0
    %1113 = vmatmul.mubr.bf16.gmra.mrb[0].mxu0 %v1014
    %v1114 = vpop.f32.mrb[0].mxu0
    %v1115 = vadd.f32 0.0, %v1114
    %v1116 = vpop.f32.mrb[0].mxu0
    %v1117 = vpop.f32.mrb[0].mxu0
    %v1118 = vadd.f32 0.0, %v1117
    %v1119 = vpop.f32.mrb[0].mxu0
    %1120 = vdwg.mxu0
    %v1121 = vadd.f32 %v925, %v1101
    %v1122 = vadd.f32 %v928, %v1104
    %v1123 = vadd.f32 %v939, %v1115
    %v1124 = vadd.f32 %v942, %v1118
    %v1125 = vadd.f32 %v1121, %v635
    %v1126 = vadd.f32 %v1122, %v635
    %v1127 = vadd.f32 %v1123, %v635
    %v1128 = vadd.f32 %v1124, %v635
    %v1129 = vld [vmem:[#allocation4 + $0x10] sm:$0xff]
    %v1130 = vld [vmem:[#allocation4 + $0x18] sm:$0xff]
    %v1131 = vld [vmem:[#allocation4 + $0x30] sm:$0xff]
    %v1132 = vld [vmem:[#allocation4 + $0x38] sm:$0xff]
    %v1133 = vadd.f32 %v1125, %v1129
    %v1134 = vadd.f32 %v1126, %v1130
    %v1135 = vadd.f32 %v1127, %v1131
    %v1136 = vadd.f32 %v1128, %v1132
    %1137 = vst [vmem:[#allocation4 + $0x10] sm:$0xff] %v1133
    %1138 = vst [vmem:[#allocation4 + $0x18] sm:$0xff] %v1134
    %1139 = vst [vmem:[#allocation4 + $0x30] sm:$0xff] %v1135
    %1140 = vst [vmem:[#allocation4 + $0x38] sm:$0xff] %v1136
    %v1141 = vpack.c.bf16 %v1134, %v1133
    %v1142 = vpack.c.bf16 %v1136, %v1135
    %v1144 = vunpack.c.l.b16 %v1141
    %v1145 = vunpack.c.h.b16 %v1141
    %v1146 = vpack.c.b16 %v1144, %v1144
    %v1147 = vpack.c.b16 %v1145, %v1145
    %1150 = vst [vmem:[#allocation2 + $0x8] sm:$0xf] %v1146
    %1151 = vst [vmem:[#allocation2 + $0xc] sm:$0xf] %v1147
    %v1153 = vunpack.c.l.b16 %v1142
    %v1154 = vunpack.c.h.b16 %v1142
    %v1155 = vpack.c.b16 %v1153, %v1153
    %v1156 = vpack.c.b16 %v1154, %v1154
    %1159 = vst [vmem:[#allocation2 + $0x18] sm:$0xf] %v1155
    %1160 = vst [vmem:[#allocation2 + $0x1c] sm:$0xf] %v1156
    %v1161 = vld [vmem:[#allocation11 + $0x2] ss:$0 sm:$0xff]
    %v1162 = vld [vmem:[#allocation2 + $0x4] sm:$0x8]
    %v1163 = vld [vmem:[#allocation2 + $0x8] sm:$0xf]
    %v1164 = vld [vmem:[#allocation2 + $0xc] sm:$0xf]
    %v1165 = vld [vmem:[#allocation2 + $0x10] sm:$0xf]
    %v1166 = vld [vmem:[#allocation2 + $0x14] sm:$0xf]
    %v1167 = vld [vmem:[#allocation2 + $0x18] sm:$0xf]
    %v1168 = vld [vmem:[#allocation2 + $0x1c] sm:$0xf]
    %s1169 = scalar_lea.vmem [#allocation8], 384
    %v1170 = vld [vmem:[%s1169] sm:$0xf]
    %v1171 = vld [vmem:[%s1169 + $0x4] sm:$0xf]
    %v1172 = vld [vmem:[%s1169 + $0x8] sm:$0xf]
    %v1173 = vld [vmem:[%s1169 + $0xc] sm:$0xf]
    %v1174 = vld [vmem:[%s1169 + $0x10] sm:$0xf]
    %v1175 = vld [vmem:[%s1169 + $0x14] sm:$0xf]
    %v1176 = vld [vmem:[%s1169 + $0x18] sm:$0xf]
    %v1177 = vld [vmem:[%s1169 + $0x1c] sm:$0xf]
    %v1178 = vld [vmem:[%s1169 + $0x20] sm:$0xf]
    %v1179 = vld [vmem:[%s1169 + $0x24] sm:$0xf]
    %v1180 = vld [vmem:[%s1169 + $0x28] sm:$0xf]
    %v1181 = vld [vmem:[%s1169 + $0x2c] sm:$0xf]
    %v1182 = vld [vmem:[%s1169 + $0x30] sm:$0xf]
    %v1183 = vld [vmem:[%s1169 + $0x34] sm:$0xf]
    %v1184 = vld [vmem:[%s1169 + $0x38] sm:$0xf]
    %v1185 = vld [vmem:[%s1169 + $0x3c] sm:$0xf]
    %s1186 = scalar_lea.vmem [#allocation8], 448
    %v1187 = vld [vmem:[%s1186] sm:$0xf]
    %v1188 = vld [vmem:[%s1186 + $0x4] sm:$0xf]
    %v1189 = vld [vmem:[%s1186 + $0x8] sm:$0xf]
    %v1190 = vld [vmem:[%s1186 + $0xc] sm:$0xf]
    %v1191 = vld [vmem:[%s1186 + $0x10] sm:$0xf]
    %v1192 = vld [vmem:[%s1186 + $0x14] sm:$0xf]
    %v1193 = vld [vmem:[%s1186 + $0x18] sm:$0xf]
    %v1194 = vld [vmem:[%s1186 + $0x1c] sm:$0xf]
    %v1195 = vld [vmem:[%s1186 + $0x20] sm:$0xf]
    %v1196 = vld [vmem:[%s1186 + $0x24] sm:$0xf]
    %v1197 = vld [vmem:[%s1186 + $0x28] sm:$0xf]
    %v1198 = vld [vmem:[%s1186 + $0x2c] sm:$0xf]
    %v1199 = vld [vmem:[%s1186 + $0x30] sm:$0xf]
    %v1200 = vld [vmem:[%s1186 + $0x34] sm:$0xf]
    %v1201 = vld [vmem:[%s1186 + $0x38] sm:$0xf]
    %v1202 = vld [vmem:[%s1186 + $0x3c] sm:$0xf]
    %v1209 = vunpack.c.l.b16 %v1163
    %v1210 = vunpack.c.l.b16 %v1164
    %v1211 = vunpack.c.l.b16 %v1165
    %v1212 = vunpack.c.l.b16 %v1166
    %v1213 = vunpack.c.l.b16 %v1167
    %v1214 = vunpack.c.l.b16 %v1168
    %v1215 = vpack.c.b16 %v1210, %v1209
    %v1216 = vpack.c.b16 %v1212, %v1211
    %v1217 = vpack.c.b16 %v1214, %v1213
    %v1237 = vunpack.c.l.b16 %v1187
    %v1238 = vunpack.c.l.b16 %v1188
    %v1239 = vunpack.c.l.b16 %v1189
    %v1240 = vunpack.c.l.b16 %v1190
    %v1241 = vunpack.c.l.b16 %v1191
    %v1242 = vunpack.c.l.b16 %v1192
    %v1243 = vunpack.c.l.b16 %v1193
    %v1244 = vunpack.c.l.b16 %v1194
    %v1245 = vunpack.c.l.b16 %v1195
    %v1246 = vunpack.c.l.b16 %v1196
    %v1247 = vunpack.c.l.b16 %v1197
    %v1248 = vunpack.c.l.b16 %v1198
    %v1249 = vunpack.c.l.b16 %v1199
    %v1250 = vunpack.c.l.b16 %v1200
    %v1251 = vunpack.c.l.b16 %v1201
    %v1252 = vunpack.c.l.b16 %v1202
    %v1253 = vpack.c.b16 %v1238, %v1237
    %v1254 = vpack.c.b16 %v1240, %v1239
    %v1255 = vpack.c.b16 %v1242, %v1241
    %v1256 = vpack.c.b16 %v1244, %v1243
    %v1257 = vpack.c.b16 %v1246, %v1245
    %v1258 = vpack.c.b16 %v1248, %v1247
    %v1259 = vpack.c.b16 %v1250, %v1249
    %v1260 = vpack.c.b16 %v1252, %v1251
    %1269 = vmatprep.subr.bf16.mxu0 0
    %1270 = vmatpush1.bf16.msra.mxu0 %v1253
    %1271 = vmatprep.subr.bf16.mxu0 0
    %1272 = vmatpush1.bf16.msra.mxu0 %v1254
    %1273 = vmatprep.subr.bf16.mxu0 0
    %1274 = vmatpush1.bf16.msra.mxu0 %v1255
    %1275 = vmatprep.subr.bf16.mxu0 0
    %1276 = vmatpush1.bf16.msra.mxu0 %v1256
    %1277 = vmatprep.subr.bf16.mxu0 0
    %1278 = vmatpush1.bf16.msra.mxu0 %v1257
    %1279 = vmatprep.subr.bf16.mxu0 0
    %1280 = vmatpush1.bf16.msra.mxu0 %v1258
    %1281 = vmatprep.subr.bf16.mxu0 0
    %1282 = vmatpush1.bf16.msra.mxu0 %v1259
    %1283 = vmatprep.subr.bf16.mxu0 0
    %1284 = vmatpush1.bf16.msra.mxu0 %v1260
    %1285 = vmatprep.subr.bf16.mxu0 0
    %1286 = vmatpush1.bf16.msra.mxu0 0
    %1287 = vmatprep.subr.bf16.mxu0 0
    %1288 = vmatpush1.bf16.msra.mxu0 0
    %1289 = vmatprep.subr.bf16.mxu0 0
    %1290 = vmatpush1.bf16.msra.mxu0 0
    %1291 = vmatprep.subr.bf16.mxu0 0
    %1292 = vmatpush1.bf16.msra.mxu0 0
    %1293 = vmatprep.subr.bf16.mxu0 0
    %1294 = vmatpush1.bf16.msra.mxu0 0
    %1295 = vmatprep.subr.bf16.mxu0 0
    %1296 = vmatpush1.bf16.msra.mxu0 0
    %1297 = vmatprep.subr.bf16.mxu0 0
    %1298 = vmatpush1.bf16.msra.mxu0 0
    %1299 = vmatprep.subr.bf16.mxu0 0
    %1300 = vmatpush1.bf16.msra.mxu0 0
    %1301 = vmatprep.mubr.bf16.mxu0 0
    %1302 = vmatmul.mubr.bf16.gmra.mrb[0].mxu0 %v1215
    %v1303 = vpop.f32.mrb[0].mxu0
    %v1304 = vadd.f32 0.0, %v1303
    %v1305 = vpop.f32.mrb[0].mxu0
    %v1306 = vpop.f32.mrb[0].mxu0
    %v1307 = vadd.f32 0.0, %v1306
    %v1308 = vpop.f32.mrb[0].mxu0
    %1309 = vmatprep.mubr.bf16.mxu0 0
    %1310 = vmatmul.mubr.bf16.gmra.mrb[0].mxu0 %v1216
    %v1311 = vpop.f32.mrb[0].mxu0
    %v1312 = vpop.f32.mrb[0].mxu0
    %v1313 = vpop.f32.mrb[0].mxu0
    %v1314 = vpop.f32.mrb[0].mxu0
    %1315 = vmatprep.mubr.bf16.mxu0 0
    %1316 = vmatmul.mubr.bf16.gmra.mrb[0].mxu0 %v1217
    %v1317 = vpop.f32.mrb[0].mxu0
    %v1318 = vadd.f32 0.0, %v1317
    %v1319 = vpop.f32.mrb[0].mxu0
    %v1320 = vpop.f32.mrb[0].mxu0
    %v1321 = vadd.f32 0.0, %v1320
    %v1322 = vpop.f32.mrb[0].mxu0
    %1323 = vdwg.mxu0
    %v1325 = vunpack.c.l.b16 %v1162
    %v1326 = vpack.c.b16 %v1209, %v1325
    %v1327 = vpack.c.b16 %v1211, %v1210
    %v1328 = vpack.c.b16 %v1213, %v1212
    %v1329 = vpack.c.b16 %v1214, %v1214
    %v1331 = vshrl.u32 %v1326, 16
    %v1333 = vrot.slane %v1331, 3
    %v1334 = vshll.u32 %v1326, 16
    %v1336 = vrot.slane %v1334, 4
    %v1337 = vor.u32 %v1333, %v1336
    %v1339 = vshrl.u32 %v1327, 16
    %v1341 = vrot.slane %v1339, 3
    %v1342 = vshll.u32 %v1327, 16
    %v1344 = vrot.slane %v1342, 4
    %v1345 = vor.u32 %v1341, %v1344
    %v1346 = vsel %vm284, %v1337, %v1345
    %v1348 = vshrl.u32 %v1328, 16
    %v1350 = vrot.slane %v1348, 3
    %v1351 = vshll.u32 %v1328, 16
    %v1353 = vrot.slane %v1351, 4
    %v1354 = vor.u32 %v1350, %v1353
    %v1355 = vsel %vm284, %v1345, %v1354
    %v1357 = vshrl.u32 %v1329, 16
    %v1359 = vrot.slane %v1357, 3
    %v1360 = vshll.u32 %v1329, 16
    %v1362 = vrot.slane %v1360, 4
    %v1363 = vor.u32 %v1359, %v1362
    %v1364 = vsel %vm284, %v1354, %v1363
    %v1384 = vunpack.c.l.b16 %v1170
    %v1385 = vunpack.c.l.b16 %v1171
    %v1386 = vunpack.c.l.b16 %v1172
    %v1387 = vunpack.c.l.b16 %v1173
    %v1388 = vunpack.c.l.b16 %v1174
    %v1389 = vunpack.c.l.b16 %v1175
    %v1390 = vunpack.c.l.b16 %v1176
    %v1391 = vunpack.c.l.b16 %v1177
    %v1392 = vunpack.c.l.b16 %v1178
    %v1393 = vunpack.c.l.b16 %v1179
    %v1394 = vunpack.c.l.b16 %v1180
    %v1395 = vunpack.c.l.b16 %v1181
    %v1396 = vunpack.c.l.b16 %v1182
    %v1397 = vunpack.c.l.b16 %v1183
    %v1398 = vunpack.c.l.b16 %v1184
    %v1399 = vunpack.c.l.b16 %v1185
    %v1400 = vpack.c.b16 %v1385, %v1384
    %v1401 = vpack.c.b16 %v1387, %v1386
    %v1402 = vpack.c.b16 %v1389, %v1388
    %v1403 = vpack.c.b16 %v1391, %v1390
    %v1404 = vpack.c.b16 %v1393, %v1392
    %v1405 = vpack.c.b16 %v1395, %v1394
    %v1406 = vpack.c.b16 %v1397, %v1396
    %v1407 = vpack.c.b16 %v1399, %v1398
    %1416 = vmatprep.subr.bf16.mxu0 0
    %1417 = vmatpush1.bf16.msra.mxu0 %v1400
    %1418 = vmatprep.subr.bf16.mxu0 0
    %1419 = vmatpush1.bf16.msra.mxu0 %v1401
    %1420 = vmatprep.subr.bf16.mxu0 0
    %1421 = vmatpush1.bf16.msra.mxu0 %v1402
    %1422 = vmatprep.subr.bf16.mxu0 0
    %1423 = vmatpush1.bf16.msra.mxu0 %v1403
    %1424 = vmatprep.subr.bf16.mxu0 0
    %1425 = vmatpush1.bf16.msra.mxu0 %v1404
    %1426 = vmatprep.subr.bf16.mxu0 0
    %1427 = vmatpush1.bf16.msra.mxu0 %v1405
    %1428 = vmatprep.subr.bf16.mxu0 0
    %1429 = vmatpush1.bf16.msra.mxu0 %v1406
    %1430 = vmatprep.subr.bf16.mxu0 0
    %1431 = vmatpush1.bf16.msra.mxu0 %v1407
    %1432 = vmatprep.subr.bf16.mxu0 0
    %1433 = vmatpush1.bf16.msra.mxu0 0
    %1434 = vmatprep.subr.bf16.mxu0 0
    %1435 = vmatpush1.bf16.msra.mxu0 0
    %1436 = vmatprep.subr.bf16.mxu0 0
    %1437 = vmatpush1.bf16.msra.mxu0 0
    %1438 = vmatprep.subr.bf16.mxu0 0
    %1439 = vmatpush1.bf16.msra.mxu0 0
    %1440 = vmatprep.subr.bf16.mxu0 0
    %1441 = vmatpush1.bf16.msra.mxu0 0
    %1442 = vmatprep.subr.bf16.mxu0 0
    %1443 = vmatpush1.bf16.msra.mxu0 0
    %1444 = vmatprep.subr.bf16.mxu0 0
    %1445 = vmatpush1.bf16.msra.mxu0 0
    %1446 = vmatprep.subr.bf16.mxu0 0
    %1447 = vmatpush1.bf16.msra.mxu0 0
    %1448 = vmatprep.mubr.bf16.mxu0 0
    %1449 = vmatmul.mubr.bf16.gmra.mrb[0].mxu0 %v1346
    %v1450 = vpop.f32.mrb[0].mxu0
    %v1451 = vadd.f32 %v1304, %v1450
    %v1452 = vpop.f32.mrb[0].mxu0
    %v1453 = vpop.f32.mrb[0].mxu0
    %v1454 = vadd.f32 %v1307, %v1453
    %v1455 = vpop.f32.mrb[0].mxu0
    %1456 = vmatprep.mubr.bf16.mxu0 0
    %1457 = vmatmul.mubr.bf16.gmra.mrb[0].mxu0 %v1355
    %v1458 = vpop.f32.mrb[0].mxu0
    %v1459 = vpop.f32.mrb[0].mxu0
    %v1460 = vpop.f32.mrb[0].mxu0
    %v1461 = vpop.f32.mrb[0].mxu0
    %1462 = vmatprep.mubr.bf16.mxu0 0
    %1463 = vmatmul.mubr.bf16.gmra.mrb[0].mxu0 %v1364
    %v1464 = vpop.f32.mrb[0].mxu0
    %v1465 = vadd.f32 %v1318, %v1464
    %v1466 = vpop.f32.mrb[0].mxu0
    %v1467 = vpop.f32.mrb[0].mxu0
    %v1468 = vadd.f32 %v1321, %v1467
    %v1469 = vpop.f32.mrb[0].mxu0
    %1470 = vdwg.mxu0
    %v1471 = vld [vmem:[#allocation2 + $0x8] sm:$0xf]
    %v1472 = vld [vmem:[#allocation2 + $0xc] sm:$0xf]
    %v1473 = vld [vmem:[#allocation2 + $0x10] sm:$0xf]
    %v1474 = vld [vmem:[#allocation2 + $0x14] sm:$0xf]
    %v1475 = vld [vmem:[#allocation2 + $0x18] sm:$0xf]
    %v1476 = vld [vmem:[#allocation2 + $0x1c] sm:$0xf]
    %v1477 = vld [vmem:[#allocation2 + $0x20] sm:$0x1]
    %s1478 = scalar_lea.vmem [#allocation8], 512
    %v1479 = vld [vmem:[%s1478] sm:$0xf]
    %v1480 = vld [vmem:[%s1478 + $0x4] sm:$0xf]
    %v1481 = vld [vmem:[%s1478 + $0x8] sm:$0xf]
    %v1482 = vld [vmem:[%s1478 + $0xc] sm:$0xf]
    %v1483 = vld [vmem:[%s1478 + $0x10] sm:$0xf]
    %v1484 = vld [vmem:[%s1478 + $0x14] sm:$0xf]
    %v1485 = vld [vmem:[%s1478 + $0x18] sm:$0xf]
    %v1486 = vld [vmem:[%s1478 + $0x1c] sm:$0xf]
    %v1487 = vld [vmem:[%s1478 + $0x20] sm:$0xf]
    %v1488 = vld [vmem:[%s1478 + $0x24] sm:$0xf]
    %v1489 = vld [vmem:[%s1478 + $0x28] sm:$0xf]
    %v1490 = vld [vmem:[%s1478 + $0x2c] sm:$0xf]
    %v1491 = vld [vmem:[%s1478 + $0x30] sm:$0xf]
    %v1492 = vld [vmem:[%s1478 + $0x34] sm:$0xf]
    %v1493 = vld [vmem:[%s1478 + $0x38] sm:$0xf]
    %v1494 = vld [vmem:[%s1478 + $0x3c] sm:$0xf]
    %v1502 = vunpack.c.l.b16 %v1471
    %v1503 = vunpack.c.l.b16 %v1472
    %v1504 = vunpack.c.l.b16 %v1473
    %v1505 = vunpack.c.l.b16 %v1474
    %v1506 = vunpack.c.l.b16 %v1475
    %v1507 = vunpack.c.l.b16 %v1476
    %v1508 = vunpack.c.l.b16 %v1477
    %v1509 = vpack.c.b16 %v1503, %v1502
    %v1510 = vpack.c.b16 %v1505, %v1504
    %v1511 = vpack.c.b16 %v1507, %v1506
    %v1512 = vpack.c.b16 %v1508, %v1508
    %v1514 = vshrl.u32 %v1509, 16
    %v1516 = vshll.u32 %v1509, 16
    %v1518 = vrot.slane %v1516, 1
    %v1519 = vor.u32 %v1514, %v1518
    %v1521 = vshll.u32 %v1510, 16
    %v1523 = vrot.slane %v1521, 1
    %v1524 = vsel %vm468, %v1519, %v1523
    %v1525 = vshrl.u32 %v1510, 16
    %v1527 = vor.u32 %v1525, %v1523
    %v1529 = vshll.u32 %v1511, 16
    %v1531 = vrot.slane %v1529, 1
    %v1532 = vsel %vm468, %v1527, %v1531
    %v1533 = vshrl.u32 %v1511, 16
    %v1535 = vor.u32 %v1533, %v1531
    %v1537 = vshll.u32 %v1512, 16
    %v1539 = vrot.slane %v1537, 1
    %v1540 = vsel %vm468, %v1535, %v1539
    %v1560 = vunpack.c.l.b16 %v1479
    %v1561 = vunpack.c.l.b16 %v1480
    %v1562 = vunpack.c.l.b16 %v1481
    %v1563 = vunpack.c.l.b16 %v1482
    %v1564 = vunpack.c.l.b16 %v1483
    %v1565 = vunpack.c.l.b16 %v1484
    %v1566 = vunpack.c.l.b16 %v1485
    %v1567 = vunpack.c.l.b16 %v1486
    %v1568 = vunpack.c.l.b16 %v1487
    %v1569 = vunpack.c.l.b16 %v1488
    %v1570 = vunpack.c.l.b16 %v1489
    %v1571 = vunpack.c.l.b16 %v1490
    %v1572 = vunpack.c.l.b16 %v1491
    %v1573 = vunpack.c.l.b16 %v1492
    %v1574 = vunpack.c.l.b16 %v1493
    %v1575 = vunpack.c.l.b16 %v1494
    %v1576 = vpack.c.b16 %v1561, %v1560
    %v1577 = vpack.c.b16 %v1563, %v1562
    %v1578 = vpack.c.b16 %v1565, %v1564
    %v1579 = vpack.c.b16 %v1567, %v1566
    %v1580 = vpack.c.b16 %v1569, %v1568
    %v1581 = vpack.c.b16 %v1571, %v1570
    %v1582 = vpack.c.b16 %v1573, %v1572
    %v1583 = vpack.c.b16 %v1575, %v1574
    %1592 = vmatprep.subr.bf16.mxu0 0
    %1593 = vmatpush1.bf16.msra.mxu0 %v1576
    %1594 = vmatprep.subr.bf16.mxu0 0
    %1595 = vmatpush1.bf16.msra.mxu0 %v1577
    %1596 = vmatprep.subr.bf16.mxu0 0
    %1597 = vmatpush1.bf16.msra.mxu0 %v1578
    %1598 = vmatprep.subr.bf16.mxu0 0
    %1599 = vmatpush1.bf16.msra.mxu0 %v1579
    %1600 = vmatprep.subr.bf16.mxu0 0
    %1601 = vmatpush1.bf16.msra.mxu0 %v1580
    %1602 = vmatprep.subr.bf16.mxu0 0
    %1603 = vmatpush1.bf16.msra.mxu0 %v1581
    %1604 = vmatprep.subr.bf16.mxu0 0
    %1605 = vmatpush1.bf16.msra.mxu0 %v1582
    %1606 = vmatprep.subr.bf16.mxu0 0
    %1607 = vmatpush1.bf16.msra.mxu0 %v1583
    %1608 = vmatprep.subr.bf16.mxu0 0
    %1609 = vmatpush1.bf16.msra.mxu0 0
    %1610 = vmatprep.subr.bf16.mxu0 0
    %1611 = vmatpush1.bf16.msra.mxu0 0
    %1612 = vmatprep.subr.bf16.mxu0 0
    %1613 = vmatpush1.bf16.msra.mxu0 0
    %1614 = vmatprep.subr.bf16.mxu0 0
    %1615 = vmatpush1.bf16.msra.mxu0 0
    %1616 = vmatprep.subr.bf16.mxu0 0
    %1617 = vmatpush1.bf16.msra.mxu0 0
    %1618 = vmatprep.subr.bf16.mxu0 0
    %1619 = vmatpush1.bf16.msra.mxu0 0
    %1620 = vmatprep.subr.bf16.mxu0 0
    %1621 = vmatpush1.bf16.msra.mxu0 0
    %1622 = vmatprep.subr.bf16.mxu0 0
    %1623 = vmatpush1.bf16.msra.mxu0 0
    %1624 = vmatprep.mubr.bf16.mxu0 0
    %1625 = vmatmul.mubr.bf16.gmra.mrb[0].mxu0 %v1524
    %v1626 = vpop.f32.mrb[0].mxu0
    %v1627 = vadd.f32 0.0, %v1626
    %v1628 = vpop.f32.mrb[0].mxu0
    %v1629 = vpop.f32.mrb[0].mxu0
    %v1630 = vadd.f32 0.0, %v1629
    %v1631 = vpop.f32.mrb[0].mxu0
    %1632 = vmatprep.mubr.bf16.mxu0 0
    %1633 = vmatmul.mubr.bf16.gmra.mrb[0].mxu0 %v1532
    %v1634 = vpop.f32.mrb[0].mxu0
    %v1635 = vpop.f32.mrb[0].mxu0
    %v1636 = vpop.f32.mrb[0].mxu0
    %v1637 = vpop.f32.mrb[0].mxu0
    %1638 = vmatprep.mubr.bf16.mxu0 0
    %1639 = vmatmul.mubr.bf16.gmra.mrb[0].mxu0 %v1540
    %v1640 = vpop.f32.mrb[0].mxu0
    %v1641 = vadd.f32 0.0, %v1640
    %v1642 = vpop.f32.mrb[0].mxu0
    %v1643 = vpop.f32.mrb[0].mxu0
    %v1644 = vadd.f32 0.0, %v1643
    %v1645 = vpop.f32.mrb[0].mxu0
    %1646 = vdwg.mxu0
    %v1647 = vadd.f32 %v1451, %v1627
    %v1648 = vadd.f32 %v1454, %v1630
    %v1649 = vadd.f32 %v1465, %v1641
    %v1650 = vadd.f32 %v1468, %v1644
    %v1651 = vadd.f32 %v1647, %v1161
    %v1652 = vadd.f32 %v1648, %v1161
    %v1653 = vadd.f32 %v1649, %v1161
    %v1654 = vadd.f32 %v1650, %v1161
    %v1655 = vmax.f32 %v1651, 0.0
    %v1656 = vmax.f32 %v1652, 0.0
    %v1657 = vmax.f32 %v1653, 0.0
    %v1658 = vmax.f32 %v1654, 0.0
    %v1659 = vpack.c.bf16 %v1656, %v1655
    %v1660 = vpack.c.bf16 %v1658, %v1657
    %v1662 = vunpack.c.l.b16 %v1659
    %v1663 = vunpack.c.h.b16 %v1659
    %v1664 = vpack.c.b16 %v1662, %v1662
    %v1665 = vpack.c.b16 %v1663, %v1663
    %1668 = vst [vmem:[#allocation3 + $0x8] sm:$0xf] %v1664
    %1669 = vst [vmem:[#allocation3 + $0xc] sm:$0xf] %v1665
    %v1671 = vunpack.c.l.b16 %v1660
    %v1672 = vunpack.c.h.b16 %v1660
    %v1673 = vpack.c.b16 %v1671, %v1671
    %v1674 = vpack.c.b16 %v1672, %v1672
    %1677 = vst [vmem:[#allocation3 + $0x18] sm:$0xf] %v1673
    %1678 = vst [vmem:[#allocation3 + $0x1c] sm:$0xf] %v1674
    %v1679 = vld [vmem:[#allocation11 + $0x3] ss:$0 sm:$0xff]
    %v1680 = vld [vmem:[#allocation3 + $0x4] sm:$0x8]
    %v1681 = vld [vmem:[#allocation3 + $0x8] sm:$0xf]
    %v1682 = vld [vmem:[#allocation3 + $0xc] sm:$0xf]
    %v1683 = vld [vmem:[#allocation3 + $0x10] sm:$0xf]
    %v1684 = vld [vmem:[#allocation3 + $0x14] sm:$0xf]
    %v1685 = vld [vmem:[#allocation3 + $0x18] sm:$0xf]
    %v1686 = vld [vmem:[#allocation3 + $0x1c] sm:$0xf]
    %s1687 = scalar_lea.vmem [#allocation8], 576
    %v1688 = vld [vmem:[%s1687] sm:$0xf]
    %v1689 = vld [vmem:[%s1687 + $0x4] sm:$0xf]
    %v1690 = vld [vmem:[%s1687 + $0x8] sm:$0xf]
    %v1691 = vld [vmem:[%s1687 + $0xc] sm:$0xf]
    %v1692 = vld [vmem:[%s1687 + $0x10] sm:$0xf]
    %v1693 = vld [vmem:[%s1687 + $0x14] sm:$0xf]
    %v1694 = vld [vmem:[%s1687 + $0x18] sm:$0xf]
    %v1695 = vld [vmem:[%s1687 + $0x1c] sm:$0xf]
    %v1696 = vld [vmem:[%s1687 + $0x20] sm:$0xf]
    %v1697 = vld [vmem:[%s1687 + $0x24] sm:$0xf]
    %v1698 = vld [vmem:[%s1687 + $0x28] sm:$0xf]
    %v1699 = vld [vmem:[%s1687 + $0x2c] sm:$0xf]
    %v1700 = vld [vmem:[%s1687 + $0x30] sm:$0xf]
    %v1701 = vld [vmem:[%s1687 + $0x34] sm:$0xf]
    %v1702 = vld [vmem:[%s1687 + $0x38] sm:$0xf]
    %v1703 = vld [vmem:[%s1687 + $0x3c] sm:$0xf]
    %s1704 = scalar_lea.vmem [#allocation8], 640
    %v1705 = vld [vmem:[%s1704] sm:$0xf]
    %v1706 = vld [vmem:[%s1704 + $0x4] sm:$0xf]
    %v1707 = vld [vmem:[%s1704 + $0x8] sm:$0xf]
    %v1708 = vld [vmem:[%s1704 + $0xc] sm:$0xf]
    %v1709 = vld [vmem:[%s1704 + $0x10] sm:$0xf]
    %v1710 = vld [vmem:[%s1704 + $0x14] sm:$0xf]
    %v1711 = vld [vmem:[%s1704 + $0x18] sm:$0xf]
    %v1712 = vld [vmem:[%s1704 + $0x1c] sm:$0xf]
    %v1713 = vld [vmem:[%s1704 + $0x20] sm:$0xf]
    %v1714 = vld [vmem:[%s1704 + $0x24] sm:$0xf]
    %v1715 = vld [vmem:[%s1704 + $0x28] sm:$0xf]
    %v1716 = vld [vmem:[%s1704 + $0x2c] sm:$0xf]
    %v1717 = vld [vmem:[%s1704 + $0x30] sm:$0xf]
    %v1718 = vld [vmem:[%s1704 + $0x34] sm:$0xf]
    %v1719 = vld [vmem:[%s1704 + $0x38] sm:$0xf]
    %v1720 = vld [vmem:[%s1704 + $0x3c] sm:$0xf]
    %v1727 = vunpack.c.l.b16 %v1681
    %v1728 = vunpack.c.l.b16 %v1682
    %v1729 = vunpack.c.l.b16 %v1683
    %v1730 = vunpack.c.l.b16 %v1684
    %v1731 = vunpack.c.l.b16 %v1685
    %v1732 = vunpack.c.l.b16 %v1686
    %v1733 = vpack.c.b16 %v1728, %v1727
    %v1734 = vpack.c.b16 %v1730, %v1729
    %v1735 = vpack.c.b16 %v1732, %v1731
    %v1755 = vunpack.c.l.b16 %v1705
    %v1756 = vunpack.c.l.b16 %v1706
    %v1757 = vunpack.c.l.b16 %v1707
    %v1758 = vunpack.c.l.b16 %v1708
    %v1759 = vunpack.c.l.b16 %v1709
    %v1760 = vunpack.c.l.b16 %v1710
    %v1761 = vunpack.c.l.b16 %v1711
    %v1762 = vunpack.c.l.b16 %v1712
    %v1763 = vunpack.c.l.b16 %v1713
    %v1764 = vunpack.c.l.b16 %v1714
    %v1765 = vunpack.c.l.b16 %v1715
    %v1766 = vunpack.c.l.b16 %v1716
    %v1767 = vunpack.c.l.b16 %v1717
    %v1768 = vunpack.c.l.b16 %v1718
    %v1769 = vunpack.c.l.b16 %v1719
    %v1770 = vunpack.c.l.b16 %v1720
    %v1771 = vpack.c.b16 %v1756, %v1755
    %v1772 = vpack.c.b16 %v1758, %v1757
    %v1773 = vpack.c.b16 %v1760, %v1759
    %v1774 = vpack.c.b16 %v1762, %v1761
    %v1775 = vpack.c.b16 %v1764, %v1763
    %v1776 = vpack.c.b16 %v1766, %v1765
    %v1777 = vpack.c.b16 %v1768, %v1767
    %v1778 = vpack.c.b16 %v1770, %v1769
    %1787 = vmatprep.subr.bf16.mxu0 0
    %1788 = vmatpush1.bf16.msra.mxu0 %v1771
    %1789 = vmatprep.subr.bf16.mxu0 0
    %1790 = vmatpush1.bf16.msra.mxu0 %v1772
    %1791 = vmatprep.subr.bf16.mxu0 0
    %1792 = vmatpush1.bf16.msra.mxu0 %v1773
    %1793 = vmatprep.subr.bf16.mxu0 0
    %1794 = vmatpush1.bf16.msra.mxu0 %v1774
    %1795 = vmatprep.subr.bf16.mxu0 0
    %1796 = vmatpush1.bf16.msra.mxu0 %v1775
    %1797 = vmatprep.subr.bf16.mxu0 0
    %1798 = vmatpush1.bf16.msra.mxu0 %v1776
    %1799 = vmatprep.subr.bf16.mxu0 0
    %1800 = vmatpush1.bf16.msra.mxu0 %v1777
    %1801 = vmatprep.subr.bf16.mxu0 0
    %1802 = vmatpush1.bf16.msra.mxu0 %v1778
    %1803 = vmatprep.subr.bf16.mxu0 0
    %1804 = vmatpush1.bf16.msra.mxu0 0
    %1805 = vmatprep.subr.bf16.mxu0 0
    %1806 = vmatpush1.bf16.msra.mxu0 0
    %1807 = vmatprep.subr.bf16.mxu0 0
    %1808 = vmatpush1.bf16.msra.mxu0 0
    %1809 = vmatprep.subr.bf16.mxu0 0
    %1810 = vmatpush1.bf16.msra.mxu0 0
    %1811 = vmatprep.subr.bf16.mxu0 0
    %1812 = vmatpush1.bf16.msra.mxu0 0
    %1813 = vmatprep.subr.bf16.mxu0 0
    %1814 = vmatpush1.bf16.msra.mxu0 0
    %1815 = vmatprep.subr.bf16.mxu0 0
    %1816 = vmatpush1.bf16.msra.mxu0 0
    %1817 = vmatprep.subr.bf16.mxu0 0
    %1818 = vmatpush1.bf16.msra.mxu0 0
    %1819 = vmatprep.mubr.bf16.mxu0 0
    %1820 = vmatmul.mubr.bf16.gmra.mrb[0].mxu0 %v1733
    %v1821 = vpop.f32.mrb[0].mxu0
    %v1822 = vadd.f32 0.0, %v1821
    %v1823 = vpop.f32.mrb[0].mxu0
    %v1824 = vpop.f32.mrb[0].mxu0
    %v1825 = vadd.f32 0.0, %v1824
    %v1826 = vpop.f32.mrb[0].mxu0
    %1827 = vmatprep.mubr.bf16.mxu0 0
    %1828 = vmatmul.mubr.bf16.gmra.mrb[0].mxu0 %v1734
    %v1829 = vpop.f32.mrb[0].mxu0
    %v1830 = vpop.f32.mrb[0].mxu0
    %v1831 = vpop.f32.mrb[0].mxu0
    %v1832 = vpop.f32.mrb[0].mxu0
    %1833 = vmatprep.mubr.bf16.mxu0 0
    %1834 = vmatmul.mubr.bf16.gmra.mrb[0].mxu0 %v1735
    %v1835 = vpop.f32.mrb[0].mxu0
    %v1836 = vadd.f32 0.0, %v1835
    %v1837 = vpop.f32.mrb[0].mxu0
    %v1838 = vpop.f32.mrb[0].mxu0
    %v1839 = vadd.f32 0.0, %v1838
    %v1840 = vpop.f32.mrb[0].mxu0
    %1841 = vdwg.mxu0
    %v1843 = vunpack.c.l.b16 %v1680
    %v1844 = vpack.c.b16 %v1727, %v1843
    %v1845 = vpack.c.b16 %v1729, %v1728
    %v1846 = vpack.c.b16 %v1731, %v1730
    %v1847 = vpack.c.b16 %v1732, %v1732
    %v1849 = vshrl.u32 %v1844, 16
    %v1851 = vrot.slane %v1849, 3
    %v1852 = vshll.u32 %v1844, 16
    %v1854 = vrot.slane %v1852, 4
    %v1855 = vor.u32 %v1851, %v1854
    %v1857 = vshrl.u32 %v1845, 16
    %v1859 = vrot.slane %v1857, 3
    %v1860 = vshll.u32 %v1845, 16
    %v1862 = vrot.slane %v1860, 4
    %v1863 = vor.u32 %v1859, %v1862
    %v1864 = vsel %vm284, %v1855, %v1863
    %v1866 = vshrl.u32 %v1846, 16
    %v1868 = vrot.slane %v1866, 3
    %v1869 = vshll.u32 %v1846, 16
    %v1871 = vrot.slane %v1869, 4
    %v1872 = vor.u32 %v1868, %v1871
    %v1873 = vsel %vm284, %v1863, %v1872
    %v1875 = vshrl.u32 %v1847, 16
    %v1877 = vrot.slane %v1875, 3
    %v1878 = vshll.u32 %v1847, 16
    %v1880 = vrot.slane %v1878, 4
    %v1881 = vor.u32 %v1877, %v1880
    %v1882 = vsel %vm284, %v1872, %v1881
    %v1902 = vunpack.c.l.b16 %v1688
    %v1903 = vunpack.c.l.b16 %v1689
    %v1904 = vunpack.c.l.b16 %v1690
    %v1905 = vunpack.c.l.b16 %v1691
    %v1906 = vunpack.c.l.b16 %v1692
    %v1907 = vunpack.c.l.b16 %v1693
    %v1908 = vunpack.c.l.b16 %v1694
    %v1909 = vunpack.c.l.b16 %v1695
    %v1910 = vunpack.c.l.b16 %v1696
    %v1911 = vunpack.c.l.b16 %v1697
    %v1912 = vunpack.c.l.b16 %v1698
    %v1913 = vunpack.c.l.b16 %v1699
    %v1914 = vunpack.c.l.b16 %v1700
    %v1915 = vunpack.c.l.b16 %v1701
    %v1916 = vunpack.c.l.b16 %v1702
    %v1917 = vunpack.c.l.b16 %v1703
    %v1918 = vpack.c.b16 %v1903, %v1902
    %v1919 = vpack.c.b16 %v1905, %v1904
    %v1920 = vpack.c.b16 %v1907, %v1906
    %v1921 = vpack.c.b16 %v1909, %v1908
    %v1922 = vpack.c.b16 %v1911, %v1910
    %v1923 = vpack.c.b16 %v1913, %v1912
    %v1924 = vpack.c.b16 %v1915, %v1914
    %v1925 = vpack.c.b16 %v1917, %v1916
    %1934 = vmatprep.subr.bf16.mxu0 0
    %1935 = vmatpush1.bf16.msra.mxu0 %v1918
    %1936 = vmatprep.subr.bf16.mxu0 0
    %1937 = vmatpush1.bf16.msra.mxu0 %v1919
    %1938 = vmatprep.subr.bf16.mxu0 0
    %1939 = vmatpush1.bf16.msra.mxu0 %v1920
    %1940 = vmatprep.subr.bf16.mxu0 0
    %1941 = vmatpush1.bf16.msra.mxu0 %v1921
    %1942 = vmatprep.subr.bf16.mxu0 0
    %1943 = vmatpush1.bf16.msra.mxu0 %v1922
    %1944 = vmatprep.subr.bf16.mxu0 0
    %1945 = vmatpush1.bf16.msra.mxu0 %v1923
    %1946 = vmatprep.subr.bf16.mxu0 0
    %1947 = vmatpush1.bf16.msra.mxu0 %v1924
    %1948 = vmatprep.subr.bf16.mxu0 0
    %1949 = vmatpush1.bf16.msra.mxu0 %v1925
    %1950 = vmatprep.subr.bf16.mxu0 0
    %1951 = vmatpush1.bf16.msra.mxu0 0
    %1952 = vmatprep.subr.bf16.mxu0 0
    %1953 = vmatpush1.bf16.msra.mxu0 0
    %1954 = vmatprep.subr.bf16.mxu0 0
    %1955 = vmatpush1.bf16.msra.mxu0 0
    %1956 = vmatprep.subr.bf16.mxu0 0
    %1957 = vmatpush1.bf16.msra.mxu0 0
    %1958 = vmatprep.subr.bf16.mxu0 0
    %1959 = vmatpush1.bf16.msra.mxu0 0
    %1960 = vmatprep.subr.bf16.mxu0 0
    %1961 = vmatpush1.bf16.msra.mxu0 0
    %1962 = vmatprep.subr.bf16.mxu0 0
    %1963 = vmatpush1.bf16.msra.mxu0 0
    %1964 = vmatprep.subr.bf16.mxu0 0
    %1965 = vmatpush1.bf16.msra.mxu0 0
    %1966 = vmatprep.mubr.bf16.mxu0 0
    %1967 = vmatmul.mubr.bf16.gmra.mrb[0].mxu0 %v1864
    %v1968 = vpop.f32.mrb[0].mxu0
    %v1969 = vadd.f32 %v1822, %v1968
    %v1970 = vpop.f32.mrb[0].mxu0
    %v1971 = vpop.f32.mrb[0].mxu0
    %v1972 = vadd.f32 %v1825, %v1971
    %v1973 = vpop.f32.mrb[0].mxu0
    %1974 = vmatprep.mubr.bf16.mxu0 0
    %1975 = vmatmul.mubr.bf16.gmra.mrb[0].mxu0 %v1873
    %v1976 = vpop.f32.mrb[0].mxu0
    %v1977 = vpop.f32.mrb[0].mxu0
    %v1978 = vpop.f32.mrb[0].mxu0
    %v1979 = vpop.f32.mrb[0].mxu0
    %1980 = vmatprep.mubr.bf16.mxu0 0
    %1981 = vmatmul.mubr.bf16.gmra.mrb[0].mxu0 %v1882
    %v1982 = vpop.f32.mrb[0].mxu0
    %v1983 = vadd.f32 %v1836, %v1982
    %v1984 = vpop.f32.mrb[0].mxu0
    %v1985 = vpop.f32.mrb[0].mxu0
    %v1986 = vadd.f32 %v1839, %v1985
    %v1987 = vpop.f32.mrb[0].mxu0
    %1988 = vdwg.mxu0
    %v1989 = vld [vmem:[#allocation3 + $0x8] sm:$0xf]
    %v1990 = vld [vmem:[#allocation3 + $0xc] sm:$0xf]
    %v1991 = vld [vmem:[#allocation3 + $0x10] sm:$0xf]
    %v1992 = vld [vmem:[#allocation3 + $0x14] sm:$0xf]
    %v1993 = vld [vmem:[#allocation3 + $0x18] sm:$0xf]
    %v1994 = vld [vmem:[#allocation3 + $0x1c] sm:$0xf]
    %v1995 = vld [vmem:[#allocation3 + $0x20] sm:$0x1]
    %s1996 = scalar_lea.vmem [#allocation8], 704
    %v1997 = vld [vmem:[%s1996] sm:$0xf]
    %v1998 = vld [vmem:[%s1996 + $0x4] sm:$0xf]
    %v1999 = vld [vmem:[%s1996 + $0x8] sm:$0xf]
    %v2000 = vld [vmem:[%s1996 + $0xc] sm:$0xf]
    %v2001 = vld [vmem:[%s1996 + $0x10] sm:$0xf]
    %v2002 = vld [vmem:[%s1996 + $0x14] sm:$0xf]
    %v2003 = vld [vmem:[%s1996 + $0x18] sm:$0xf]
    %v2004 = vld [vmem:[%s1996 + $0x1c] sm:$0xf]
    %v2005 = vld [vmem:[%s1996 + $0x20] sm:$0xf]
    %v2006 = vld [vmem:[%s1996 + $0x24] sm:$0xf]
    %v2007 = vld [vmem:[%s1996 + $0x28] sm:$0xf]
    %v2008 = vld [vmem:[%s1996 + $0x2c] sm:$0xf]
    %v2009 = vld [vmem:[%s1996 + $0x30] sm:$0xf]
    %v2010 = vld [vmem:[%s1996 + $0x34] sm:$0xf]
    %v2011 = vld [vmem:[%s1996 + $0x38] sm:$0xf]
    %v2012 = vld [vmem:[%s1996 + $0x3c] sm:$0xf]
    %v2020 = vunpack.c.l.b16 %v1989
    %v2021 = vunpack.c.l.b16 %v1990
    %v2022 = vunpack.c.l.b16 %v1991
    %v2023 = vunpack.c.l.b16 %v1992
    %v2024 = vunpack.c.l.b16 %v1993
    %v2025 = vunpack.c.l.b16 %v1994
    %v2026 = vunpack.c.l.b16 %v1995
    %v2027 = vpack.c.b16 %v2021, %v2020
    %v2028 = vpack.c.b16 %v2023, %v2022
    %v2029 = vpack.c.b16 %v2025, %v2024
    %v2030 = vpack.c.b16 %v2026, %v2026
    %v2032 = vshrl.u32 %v2027, 16
    %v2034 = vshll.u32 %v2027, 16
    %v2036 = vrot.slane %v2034, 1
    %v2037 = vor.u32 %v2032, %v2036
    %v2039 = vshll.u32 %v2028, 16
    %v2041 = vrot.slane %v2039, 1
    %v2042 = vsel %vm468, %v2037, %v2041
    %v2043 = vshrl.u32 %v2028, 16
    %v2045 = vor.u32 %v2043, %v2041
    %v2047 = vshll.u32 %v2029, 16
    %v2049 = vrot.slane %v2047, 1
    %v2050 = vsel %vm468, %v2045, %v2049
    %v2051 = vshrl.u32 %v2029, 16
    %v2053 = vor.u32 %v2051, %v2049
    %v2055 = vshll.u32 %v2030, 16
    %v2057 = vrot.slane %v2055, 1
    %v2058 = vsel %vm468, %v2053, %v2057
    %v2078 = vunpack.c.l.b16 %v1997
    %v2079 = vunpack.c.l.b16 %v1998
    %v2080 = vunpack.c.l.b16 %v1999
    %v2081 = vunpack.c.l.b16 %v2000
    %v2082 = vunpack.c.l.b16 %v2001
    %v2083 = vunpack.c.l.b16 %v2002
    %v2084 = vunpack.c.l.b16 %v2003
    %v2085 = vunpack.c.l.b16 %v2004
    %v2086 = vunpack.c.l.b16 %v2005
    %v2087 = vunpack.c.l.b16 %v2006
    %v2088 = vunpack.c.l.b16 %v2007
    %v2089 = vunpack.c.l.b16 %v2008
    %v2090 = vunpack.c.l.b16 %v2009
    %v2091 = vunpack.c.l.b16 %v2010
    %v2092 = vunpack.c.l.b16 %v2011
    %v2093 = vunpack.c.l.b16 %v2012
    %v2094 = vpack.c.b16 %v2079, %v2078
    %v2095 = vpack.c.b16 %v2081, %v2080
    %v2096 = vpack.c.b16 %v2083, %v2082
    %v2097 = vpack.c.b16 %v2085, %v2084
    %v2098 = vpack.c.b16 %v2087, %v2086
    %v2099 = vpack.c.b16 %v2089, %v2088
    %v2100 = vpack.c.b16 %v2091, %v2090
    %v2101 = vpack.c.b16 %v2093, %v2092
    %2110 = vmatprep.subr.bf16.mxu0 0
    %2111 = vmatpush1.bf16.msra.mxu0 %v2094
    %2112 = vmatprep.subr.bf16.mxu0 0
    %2113 = vmatpush1.bf16.msra.mxu0 %v2095
    %2114 = vmatprep.subr.bf16.mxu0 0
    %2115 = vmatpush1.bf16.msra.mxu0 %v2096
    %2116 = vmatprep.subr.bf16.mxu0 0
    %2117 = vmatpush1.bf16.msra.mxu0 %v2097
    %2118 = vmatprep.subr.bf16.mxu0 0
    %2119 = vmatpush1.bf16.msra.mxu0 %v2098
    %2120 = vmatprep.subr.bf16.mxu0 0
    %2121 = vmatpush1.bf16.msra.mxu0 %v2099
    %2122 = vmatprep.subr.bf16.mxu0 0
    %2123 = vmatpush1.bf16.msra.mxu0 %v2100
    %2124 = vmatprep.subr.bf16.mxu0 0
    %2125 = vmatpush1.bf16.msra.mxu0 %v2101
    %2126 = vmatprep.subr.bf16.mxu0 0
    %2127 = vmatpush1.bf16.msra.mxu0 0
    %2128 = vmatprep.subr.bf16.mxu0 0
    %2129 = vmatpush1.bf16.msra.mxu0 0
    %2130 = vmatprep.subr.bf16.mxu0 0
    %2131 = vmatpush1.bf16.msra.mxu0 0
    %2132 = vmatprep.subr.bf16.mxu0 0
    %2133 = vmatpush1.bf16.msra.mxu0 0
    %2134 = vmatprep.subr.bf16.mxu0 0
    %2135 = vmatpush1.bf16.msra.mxu0 0
    %2136 = vmatprep.subr.bf16.mxu0 0
    %2137 = vmatpush1.bf16.msra.mxu0 0
    %2138 = vmatprep.subr.bf16.mxu0 0
    %2139 = vmatpush1.bf16.msra.mxu0 0
    %2140 = vmatprep.subr.bf16.mxu0 0
    %2141 = vmatpush1.bf16.msra.mxu0 0
    %2142 = vmatprep.mubr.bf16.mxu0 0
    %2143 = vmatmul.mubr.bf16.gmra.mrb[0].mxu0 %v2042
    %v2144 = vpop.f32.mrb[0].mxu0
    %v2145 = vadd.f32 0.0, %v2144
    %v2146 = vpop.f32.mrb[0].mxu0
    %v2147 = vpop.f32.mrb[0].mxu0
    %v2148 = vadd.f32 0.0, %v2147
    %v2149 = vpop.f32.mrb[0].mxu0
    %2150 = vmatprep.mubr.bf16.mxu0 0
    %2151 = vmatmul.mubr.bf16.gmra.mrb[0].mxu0 %v2050
    %v2152 = vpop.f32.mrb[0].mxu0
    %v2153 = vpop.f32.mrb[0].mxu0
    %v2154 = vpop.f32.mrb[0].mxu0
    %v2155 = vpop.f32.mrb[0].mxu0
    %2156 = vmatprep.mubr.bf16.mxu0 0
    %2157 = vmatmul.mubr.bf16.gmra.mrb[0].mxu0 %v2058
    %v2158 = vpop.f32.mrb[0].mxu0
    %v2159 = vadd.f32 0.0, %v2158
    %v2160 = vpop.f32.mrb[0].mxu0
    %v2161 = vpop.f32.mrb[0].mxu0
    %v2162 = vadd.f32 0.0, %v2161
    %v2163 = vpop.f32.mrb[0].mxu0
    %2164 = vdwg.mxu0
    %v2165 = vadd.f32 %v1969, %v2145
    %v2166 = vadd.f32 %v1972, %v2148
    %v2167 = vadd.f32 %v1983, %v2159
    %v2168 = vadd.f32 %v1986, %v2162
    %v2169 = vadd.f32 %v2165, %v1679
    %v2170 = vadd.f32 %v2166, %v1679
    %v2171 = vadd.f32 %v2167, %v1679
    %v2172 = vadd.f32 %v2168, %v1679
    %v2173 = vld [vmem:[#allocation4 + $0x10] sm:$0xff]
    %v2174 = vld [vmem:[#allocation4 + $0x18] sm:$0xff]
    %v2175 = vld [vmem:[#allocation4 + $0x30] sm:$0xff]
    %v2176 = vld [vmem:[#allocation4 + $0x38] sm:$0xff]
    %v2177 = vadd.f32 %v2169, %v2173
    %v2178 = vadd.f32 %v2170, %v2174
    %v2179 = vadd.f32 %v2171, %v2175
    %v2180 = vadd.f32 %v2172, %v2176
    %2181 = vst [vmem:[#allocation4 + $0x10] sm:$0xff] %v2177
    %2182 = vst [vmem:[#allocation4 + $0x18] sm:$0xff] %v2178
    %2183 = vst [vmem:[#allocation4 + $0x30] sm:$0xff] %v2179
    %2184 = vst [vmem:[#allocation4 + $0x38] sm:$0xff] %v2180
    %v2185 = vpack.c.bf16 %v2178, %v2177
    %v2186 = vpack.c.bf16 %v2180, %v2179
    %v2188 = vunpack.c.l.b16 %v2185
    %v2189 = vunpack.c.h.b16 %v2185
    %v2190 = vpack.c.b16 %v2188, %v2188
    %v2191 = vpack.c.b16 %v2189, %v2189
    %2194 = vst [vmem:[#allocation2 + $0x8] sm:$0xf] %v2190
    %2195 = vst [vmem:[#allocation2 + $0xc] sm:$0xf] %v2191
    %v2197 = vunpack.c.l.b16 %v2186
    %v2198 = vunpack.c.h.b16 %v2186
    %v2199 = vpack.c.b16 %v2197, %v2197
    %v2200 = vpack.c.b16 %v2198, %v2198
    %2203 = vst [vmem:[#allocation2 + $0x18] sm:$0xf] %v2199
    %2204 = vst [vmem:[#allocation2 + $0x1c] sm:$0xf] %v2200
    %v2205 = vld [vmem:[#allocation11 + $0x4] ss:$0 sm:$0xff]
    %v2206 = vld [vmem:[#allocation2 + $0x4] sm:$0x8]
    %v2207 = vld [vmem:[#allocation2 + $0x8] sm:$0xf]
    %v2208 = vld [vmem:[#allocation2 + $0xc] sm:$0xf]
    %v2209 = vld [vmem:[#allocation2 + $0x10] sm:$0xf]
    %v2210 = vld [vmem:[#allocation2 + $0x14] sm:$0xf]
    %v2211 = vld [vmem:[#allocation2 + $0x18] sm:$0xf]
    %v2212 = vld [vmem:[#allocation2 + $0x1c] sm:$0xf]
    %s2213 = scalar_lea.vmem [#allocation8], 768
    %v2214 = vld [vmem:[%s2213] sm:$0xf]
    %v2215 = vld [vmem:[%s2213 + $0x4] sm:$0xf]
    %v2216 = vld [vmem:[%s2213 + $0x8] sm:$0xf]
    %v2217 = vld [vmem:[%s2213 + $0xc] sm:$0xf]
    %v2218 = vld [vmem:[%s2213 + $0x10] sm:$0xf]
    %v2219 = vld [vmem:[%s2213 + $0x14] sm:$0xf]
    %v2220 = vld [vmem:[%s2213 + $0x18] sm:$0xf]
    %v2221 = vld [vmem:[%s2213 + $0x1c] sm:$0xf]
    %v2222 = vld [vmem:[%s2213 + $0x20] sm:$0xf]
    %v2223 = vld [vmem:[%s2213 + $0x24] sm:$0xf]
    %v2224 = vld [vmem:[%s2213 + $0x28] sm:$0xf]
    %v2225 = vld [vmem:[%s2213 + $0x2c] sm:$0xf]
    %v2226 = vld [vmem:[%s2213 + $0x30] sm:$0xf]
    %v2227 = vld [vmem:[%s2213 + $0x34] sm:$0xf]
    %v2228 = vld [vmem:[%s2213 + $0x38] sm:$0xf]
    %v2229 = vld [vmem:[%s2213 + $0x3c] sm:$0xf]
    %s2230 = scalar_lea.vmem [#allocation8], 832
    %v2231 = vld [vmem:[%s2230] sm:$0xf]
    %v2232 = vld [vmem:[%s2230 + $0x4] sm:$0xf]
    %v2233 = vld [vmem:[%s2230 + $0x8] sm:$0xf]
    %v2234 = vld [vmem:[%s2230 + $0xc] sm:$0xf]
    %v2235 = vld [vmem:[%s2230 + $0x10] sm:$0xf]
    %v2236 = vld [vmem:[%s2230 + $0x14] sm:$0xf]
    %v2237 = vld [vmem:[%s2230 + $0x18] sm:$0xf]
    %v2238 = vld [vmem:[%s2230 + $0x1c] sm:$0xf]
    %v2239 = vld [vmem:[%s2230 + $0x20] sm:$0xf]
    %v2240 = vld [vmem:[%s2230 + $0x24] sm:$0xf]
    %v2241 = vld [vmem:[%s2230 + $0x28] sm:$0xf]
    %v2242 = vld [vmem:[%s2230 + $0x2c] sm:$0xf]
    %v2243 = vld [vmem:[%s2230 + $0x30] sm:$0xf]
    %v2244 = vld [vmem:[%s2230 + $0x34] sm:$0xf]
    %v2245 = vld [vmem:[%s2230 + $0x38] sm:$0xf]
    %v2246 = vld [vmem:[%s2230 + $0x3c] sm:$0xf]
    %v2253 = vunpack.c.l.b16 %v2207
    %v2254 = vunpack.c.l.b16 %v2208
    %v2255 = vunpack.c.l.b16 %v2209
    %v2256 = vunpack.c.l.b16 %v2210
    %v2257 = vunpack.c.l.b16 %v2211
    %v2258 = vunpack.c.l.b16 %v2212
    %v2259 = vpack.c.b16 %v2254, %v2253
    %v2260 = vpack.c.b16 %v2256, %v2255
    %v2261 = vpack.c.b16 %v2258, %v2257
    %v2281 = vunpack.c.l.b16 %v2231
    %v2282 = vunpack.c.l.b16 %v2232
    %v2283 = vunpack.c.l.b16 %v2233
    %v2284 = vunpack.c.l.b16 %v2234
    %v2285 = vunpack.c.l.b16 %v2235
    %v2286 = vunpack.c.l.b16 %v2236
    %v2287 = vunpack.c.l.b16 %v2237
    %v2288 = vunpack.c.l.b16 %v2238
    %v2289 = vunpack.c.l.b16 %v2239
    %v2290 = vunpack.c.l.b16 %v2240
    %v2291 = vunpack.c.l.b16 %v2241
    %v2292 = vunpack.c.l.b16 %v2242
    %v2293 = vunpack.c.l.b16 %v2243
    %v2294 = vunpack.c.l.b16 %v2244
    %v2295 = vunpack.c.l.b16 %v2245
    %v2296 = vunpack.c.l.b16 %v2246
    %v2297 = vpack.c.b16 %v2282, %v2281
    %v2298 = vpack.c.b16 %v2284, %v2283
    %v2299 = vpack.c.b16 %v2286, %v2285
    %v2300 = vpack.c.b16 %v2288, %v2287
    %v2301 = vpack.c.b16 %v2290, %v2289
    %v2302 = vpack.c.b16 %v2292, %v2291
    %v2303 = vpack.c.b16 %v2294, %v2293
    %v2304 = vpack.c.b16 %v2296, %v2295
    %2313 = vmatprep.subr.bf16.mxu0 0
    %2314 = vmatpush1.bf16.msra.mxu0 %v2297
    %2315 = vmatprep.subr.bf16.mxu0 0
    %2316 = vmatpush1.bf16.msra.mxu0 %v2298
    %2317 = vmatprep.subr.bf16.mxu0 0
    %2318 = vmatpush1.bf16.msra.mxu0 %v2299
    %2319 = vmatprep.subr.bf16.mxu0 0
    %2320 = vmatpush1.bf16.msra.mxu0 %v2300
    %2321 = vmatprep.subr.bf16.mxu0 0
    %2322 = vmatpush1.bf16.msra.mxu0 %v2301
    %2323 = vmatprep.subr.bf16.mxu0 0
    %2324 = vmatpush1.bf16.msra.mxu0 %v2302
    %2325 = vmatprep.subr.bf16.mxu0 0
    %2326 = vmatpush1.bf16.msra.mxu0 %v2303
    %2327 = vmatprep.subr.bf16.mxu0 0
    %2328 = vmatpush1.bf16.msra.mxu0 %v2304
    %2329 = vmatprep.subr.bf16.mxu0 0
    %2330 = vmatpush1.bf16.msra.mxu0 0
    %2331 = vmatprep.subr.bf16.mxu0 0
    %2332 = vmatpush1.bf16.msra.mxu0 0
    %2333 = vmatprep.subr.bf16.mxu0 0
    %2334 = vmatpush1.bf16.msra.mxu0 0
    %2335 = vmatprep.subr.bf16.mxu0 0
    %2336 = vmatpush1.bf16.msra.mxu0 0
    %2337 = vmatprep.subr.bf16.mxu0 0
    %2338 = vmatpush1.bf16.msra.mxu0 0
    %2339 = vmatprep.subr.bf16.mxu0 0
    %2340 = vmatpush1.bf16.msra.mxu0 0
    %2341 = vmatprep.subr.bf16.mxu0 0
    %2342 = vmatpush1.bf16.msra.mxu0 0
    %2343 = vmatprep.subr.bf16.mxu0 0
    %2344 = vmatpush1.bf16.msra.mxu0 0
    %2345 = vmatprep.mubr.bf16.mxu0 0
    %2346 = vmatmul.mubr.bf16.gmra.mrb[0].mxu0 %v2259
    %v2347 = vpop.f32.mrb[0].mxu0
    %v2348 = vadd.f32 0.0, %v2347
    %v2349 = vpop.f32.mrb[0].mxu0
    %v2350 = vpop.f32.mrb[0].mxu0
    %v2351 = vadd.f32 0.0, %v2350
    %v2352 = vpop.f32.mrb[0].mxu0
    %2353 = vmatprep.mubr.bf16.mxu0 0
    %2354 = vmatmul.mubr.bf16.gmra.mrb[0].mxu0 %v2260
    %v2355 = vpop.f32.mrb[0].mxu0
    %v2356 = vpop.f32.mrb[0].mxu0
    %v2357 = vpop.f32.mrb[0].mxu0
    %v2358 = vpop.f32.mrb[0].mxu0
    %2359 = vmatprep.mubr.bf16.mxu0 0
    %2360 = vmatmul.mubr.bf16.gmra.mrb[0].mxu0 %v2261
    %v2361 = vpop.f32.mrb[0].mxu0
    %v2362 = vadd.f32 0.0, %v2361
    %v2363 = vpop.f32.mrb[0].mxu0
    %v2364 = vpop.f32.mrb[0].mxu0
    %v2365 = vadd.f32 0.0, %v2364
    %v2366 = vpop.f32.mrb[0].mxu0
    %2367 = vdwg.mxu0
    %v2369 = vunpack.c.l.b16 %v2206
    %v2370 = vpack.c.b16 %v2253, %v2369
    %v2371 = vpack.c.b16 %v2255, %v2254
    %v2372 = vpack.c.b16 %v2257, %v2256
    %v2373 = vpack.c.b16 %v2258, %v2258
    %v2375 = vshrl.u32 %v2370, 16
    %v2377 = vrot.slane %v2375, 3
    %v2378 = vshll.u32 %v2370, 16
    %v2380 = vrot.slane %v2378, 4
    %v2381 = vor.u32 %v2377, %v2380
    %v2383 = vshrl.u32 %v2371, 16
    %v2385 = vrot.slane %v2383, 3
    %v2386 = vshll.u32 %v2371, 16
    %v2388 = vrot.slane %v2386, 4
    %v2389 = vor.u32 %v2385, %v2388
    %v2390 = vsel %vm284, %v2381, %v2389
    %v2392 = vshrl.u32 %v2372, 16
    %v2394 = vrot.slane %v2392, 3
    %v2395 = vshll.u32 %v2372, 16
    %v2397 = vrot.slane %v2395, 4
    %v2398 = vor.u32 %v2394, %v2397
    %v2399 = vsel %vm284, %v2389, %v2398
    %v2401 = vshrl.u32 %v2373, 16
    %v2403 = vrot.slane %v2401, 3
    %v2404 = vshll.u32 %v2373, 16
    %v2406 = vrot.slane %v2404, 4
    %v2407 = vor.u32 %v2403, %v2406
    %v2408 = vsel %vm284, %v2398, %v2407
    %v2428 = vunpack.c.l.b16 %v2214
    %v2429 = vunpack.c.l.b16 %v2215
    %v2430 = vunpack.c.l.b16 %v2216
    %v2431 = vunpack.c.l.b16 %v2217
    %v2432 = vunpack.c.l.b16 %v2218
    %v2433 = vunpack.c.l.b16 %v2219
    %v2434 = vunpack.c.l.b16 %v2220
    %v2435 = vunpack.c.l.b16 %v2221
    %v2436 = vunpack.c.l.b16 %v2222
    %v2437 = vunpack.c.l.b16 %v2223
    %v2438 = vunpack.c.l.b16 %v2224
    %v2439 = vunpack.c.l.b16 %v2225
    %v2440 = vunpack.c.l.b16 %v2226
    %v2441 = vunpack.c.l.b16 %v2227
    %v2442 = vunpack.c.l.b16 %v2228
    %v2443 = vunpack.c.l.b16 %v2229
    %v2444 = vpack.c.b16 %v2429, %v2428
    %v2445 = vpack.c.b16 %v2431, %v2430
    %v2446 = vpack.c.b16 %v2433, %v2432
    %v2447 = vpack.c.b16 %v2435, %v2434
    %v2448 = vpack.c.b16 %v2437, %v2436
    %v2449 = vpack.c.b16 %v2439, %v2438
    %v2450 = vpack.c.b16 %v2441, %v2440
    %v2451 = vpack.c.b16 %v2443, %v2442
    %2460 = vmatprep.subr.bf16.mxu0 0
    %2461 = vmatpush1.bf16.msra.mxu0 %v2444
    %2462 = vmatprep.subr.bf16.mxu0 0
    %2463 = vmatpush1.bf16.msra.mxu0 %v2445
    %2464 = vmatprep.subr.bf16.mxu0 0
    %2465 = vmatpush1.bf16.msra.mxu0 %v2446
    %2466 = vmatprep.subr.bf16.mxu0 0
    %2467 = vmatpush1.bf16.msra.mxu0 %v2447
    %2468 = vmatprep.subr.bf16.mxu0 0
    %2469 = vmatpush1.bf16.msra.mxu0 %v2448
    %2470 = vmatprep.subr.bf16.mxu0 0
    %2471 = vmatpush1.bf16.msra.mxu0 %v2449
    %2472 = vmatprep.subr.bf16.mxu0 0
    %2473 = vmatpush1.bf16.msra.mxu0 %v2450
    %2474 = vmatprep.subr.bf16.mxu0 0
    %2475 = vmatpush1.bf16.msra.mxu0 %v2451
    %2476 = vmatprep.subr.bf16.mxu0 0
    %2477 = vmatpush1.bf16.msra.mxu0 0
    %2478 = vmatprep.subr.bf16.mxu0 0
    %2479 = vmatpush1.bf16.msra.mxu0 0
    %2480 = vmatprep.subr.bf16.mxu0 0
    %2481 = vmatpush1.bf16.msra.mxu0 0
    %2482 = vmatprep.subr.bf16.mxu0 0
    %2483 = vmatpush1.bf16.msra.mxu0 0
    %2484 = vmatprep.subr.bf16.mxu0 0
    %2485 = vmatpush1.bf16.msra.mxu0 0
    %2486 = vmatprep.subr.bf16.mxu0 0
    %2487 = vmatpush1.bf16.msra.mxu0 0
    %2488 = vmatprep.subr.bf16.mxu0 0
    %2489 = vmatpush1.bf16.msra.mxu0 0
    %2490 = vmatprep.subr.bf16.mxu0 0
    %2491 = vmatpush1.bf16.msra.mxu0 0
    %2492 = vmatprep.mubr.bf16.mxu0 0
    %2493 = vmatmul.mubr.bf16.gmra.mrb[0].mxu0 %v2390
    %v2494 = vpop.f32.mrb[0].mxu0
    %v2495 = vadd.f32 %v2348, %v2494
    %v2496 = vpop.f32.mrb[0].mxu0
    %v2497 = vpop.f32.mrb[0].mxu0
    %v2498 = vadd.f32 %v2351, %v2497
    %v2499 = vpop.f32.mrb[0].mxu0
    %2500 = vmatprep.mubr.bf16.mxu0 0
    %2501 = vmatmul.mubr.bf16.gmra.mrb[0].mxu0 %v2399
    %v2502 = vpop.f32.mrb[0].mxu0
    %v2503 = vpop.f32.mrb[0].mxu0
    %v2504 = vpop.f32.mrb[0].mxu0
    %v2505 = vpop.f32.mrb[0].mxu0
    %2506 = vmatprep.mubr.bf16.mxu0 0
    %2507 = vmatmul.mubr.bf16.gmra.mrb[0].mxu0 %v2408
    %v2508 = vpop.f32.mrb[0].mxu0
    %v2509 = vadd.f32 %v2362, %v2508
    %v2510 = vpop.f32.mrb[0].mxu0
    %v2511 = vpop.f32.mrb[0].mxu0
    %v2512 = vadd.f32 %v2365, %v2511
    %v2513 = vpop.f32.mrb[0].mxu0
    %2514 = vdwg.mxu0
    %v2515 = vld [vmem:[#allocation2 + $0x8] sm:$0xf]
    %v2516 = vld [vmem:[#allocation2 + $0xc] sm:$0xf]
    %v2517 = vld [vmem:[#allocation2 + $0x10] sm:$0xf]
    %v2518 = vld [vmem:[#allocation2 + $0x14] sm:$0xf]
    %v2519 = vld [vmem:[#allocation2 + $0x18] sm:$0xf]
    %v2520 = vld [vmem:[#allocation2 + $0x1c] sm:$0xf]
    %v2521 = vld [vmem:[#allocation2 + $0x20] sm:$0x1]
    %s2522 = scalar_lea.vmem [#allocation8], 896
    %v2523 = vld [vmem:[%s2522] sm:$0xf]
    %v2524 = vld [vmem:[%s2522 + $0x4] sm:$0xf]
    %v2525 = vld [vmem:[%s2522 + $0x8] sm:$0xf]
    %v2526 = vld [vmem:[%s2522 + $0xc] sm:$0xf]
    %v2527 = vld [vmem:[%s2522 + $0x10] sm:$0xf]
    %v2528 = vld [vmem:[%s2522 + $0x14] sm:$0xf]
    %v2529 = vld [vmem:[%s2522 + $0x18] sm:$0xf]
    %v2530 = vld [vmem:[%s2522 + $0x1c] sm:$0xf]
    %v2531 = vld [vmem:[%s2522 + $0x20] sm:$0xf]
    %v2532 = vld [vmem:[%s2522 + $0x24] sm:$0xf]
    %v2533 = vld [vmem:[%s2522 + $0x28] sm:$0xf]
    %v2534 = vld [vmem:[%s2522 + $0x2c] sm:$0xf]
    %v2535 = vld [vmem:[%s2522 + $0x30] sm:$0xf]
    %v2536 = vld [vmem:[%s2522 + $0x34] sm:$0xf]
    %v2537 = vld [vmem:[%s2522 + $0x38] sm:$0xf]
    %v2538 = vld [vmem:[%s2522 + $0x3c] sm:$0xf]
    %v2546 = vunpack.c.l.b16 %v2515
    %v2547 = vunpack.c.l.b16 %v2516
    %v2548 = vunpack.c.l.b16 %v2517
    %v2549 = vunpack.c.l.b16 %v2518
    %v2550 = vunpack.c.l.b16 %v2519
    %v2551 = vunpack.c.l.b16 %v2520
    %v2552 = vunpack.c.l.b16 %v2521
    %v2553 = vpack.c.b16 %v2547, %v2546
    %v2554 = vpack.c.b16 %v2549, %v2548
    %v2555 = vpack.c.b16 %v2551, %v2550
    %v2556 = vpack.c.b16 %v2552, %v2552
    %v2558 = vshrl.u32 %v2553, 16
    %v2560 = vshll.u32 %v2553, 16
    %v2562 = vrot.slane %v2560, 1
    %v2563 = vor.u32 %v2558, %v2562
    %v2565 = vshll.u32 %v2554, 16
    %v2567 = vrot.slane %v2565, 1
    %v2568 = vsel %vm468, %v2563, %v2567
    %v2569 = vshrl.u32 %v2554, 16
    %v2571 = vor.u32 %v2569, %v2567
    %v2573 = vshll.u32 %v2555, 16
    %v2575 = vrot.slane %v2573, 1
    %v2576 = vsel %vm468, %v2571, %v2575
    %v2577 = vshrl.u32 %v2555, 16
    %v2579 = vor.u32 %v2577, %v2575
    %v2581 = vshll.u32 %v2556, 16
    %v2583 = vrot.slane %v2581, 1
    %v2584 = vsel %vm468, %v2579, %v2583
    %v2604 = vunpack.c.l.b16 %v2523
    %v2605 = vunpack.c.l.b16 %v2524
    %v2606 = vunpack.c.l.b16 %v2525
    %v2607 = vunpack.c.l.b16 %v2526
    %v2608 = vunpack.c.l.b16 %v2527
    %v2609 = vunpack.c.l.b16 %v2528
    %v2610 = vunpack.c.l.b16 %v2529
    %v2611 = vunpack.c.l.b16 %v2530
    %v2612 = vunpack.c.l.b16 %v2531
    %v2613 = vunpack.c.l.b16 %v2532
    %v2614 = vunpack.c.l.b16 %v2533
    %v2615 = vunpack.c.l.b16 %v2534
    %v2616 = vunpack.c.l.b16 %v2535
    %v2617 = vunpack.c.l.b16 %v2536
    %v2618 = vunpack.c.l.b16 %v2537
    %v2619 = vunpack.c.l.b16 %v2538
    %v2620 = vpack.c.b16 %v2605, %v2604
    %v2621 = vpack.c.b16 %v2607, %v2606
    %v2622 = vpack.c.b16 %v2609, %v2608
    %v2623 = vpack.c.b16 %v2611, %v2610
    %v2624 = vpack.c.b16 %v2613, %v2612
    %v2625 = vpack.c.b16 %v2615, %v2614
    %v2626 = vpack.c.b16 %v2617, %v2616
    %v2627 = vpack.c.b16 %v2619, %v2618
    %2636 = vmatprep.subr.bf16.mxu0 0
    %2637 = vmatpush1.bf16.msra.mxu0 %v2620
    %2638 = vmatprep.subr.bf16.mxu0 0
    %2639 = vmatpush1.bf16.msra.mxu0 %v2621
    %2640 = vmatprep.subr.bf16.mxu0 0
    %2641 = vmatpush1.bf16.msra.mxu0 %v2622
    %2642 = vmatprep.subr.bf16.mxu0 0
    %2643 = vmatpush1.bf16.msra.mxu0 %v2623
    %2644 = vmatprep.subr.bf16.mxu0 0
    %2645 = vmatpush1.bf16.msra.mxu0 %v2624
    %2646 = vmatprep.subr.bf16.mxu0 0
    %2647 = vmatpush1.bf16.msra.mxu0 %v2625
    %2648 = vmatprep.subr.bf16.mxu0 0
    %2649 = vmatpush1.bf16.msra.mxu0 %v2626
    %2650 = vmatprep.subr.bf16.mxu0 0
    %2651 = vmatpush1.bf16.msra.mxu0 %v2627
    %2652 = vmatprep.subr.bf16.mxu0 0
    %2653 = vmatpush1.bf16.msra.mxu0 0
    %2654 = vmatprep.subr.bf16.mxu0 0
    %2655 = vmatpush1.bf16.msra.mxu0 0
    %2656 = vmatprep.subr.bf16.mxu0 0
    %2657 = vmatpush1.bf16.msra.mxu0 0
    %2658 = vmatprep.subr.bf16.mxu0 0
    %2659 = vmatpush1.bf16.msra.mxu0 0
    %2660 = vmatprep.subr.bf16.mxu0 0
    %2661 = vmatpush1.bf16.msra.mxu0 0
    %2662 = vmatprep.subr.bf16.mxu0 0
    %2663 = vmatpush1.bf16.msra.mxu0 0
    %2664 = vmatprep.subr.bf16.mxu0 0
    %2665 = vmatpush1.bf16.msra.mxu0 0
    %2666 = vmatprep.subr.bf16.mxu0 0
    %2667 = vmatpush1.bf16.msra.mxu0 0
    %2668 = vmatprep.mubr.bf16.mxu0 0
    %2669 = vmatmul.mubr.bf16.gmra.mrb[0].mxu0 %v2568
    %v2670 = vpop.f32.mrb[0].mxu0
    %v2671 = vadd.f32 0.0, %v2670
    %v2672 = vpop.f32.mrb[0].mxu0
    %v2673 = vpop.f32.mrb[0].mxu0
    %v2674 = vadd.f32 0.0, %v2673
    %v2675 = vpop.f32.mrb[0].mxu0
    %2676 = vmatprep.mubr.bf16.mxu0 0
    %2677 = vmatmul.mubr.bf16.gmra.mrb[0].mxu0 %v2576
    %v2678 = vpop.f32.mrb[0].mxu0
    %v2679 = vpop.f32.mrb[0].mxu0
    %v2680 = vpop.f32.mrb[0].mxu0
    %v2681 = vpop.f32.mrb[0].mxu0
    %2682 = vmatprep.mubr.bf16.mxu0 0
    %2683 = vmatmul.mubr.bf16.gmra.mrb[0].mxu0 %v2584
    %v2684 = vpop.f32.mrb[0].mxu0
    %v2685 = vadd.f32 0.0, %v2684
    %v2686 = vpop.f32.mrb[0].mxu0
    %v2687 = vpop.f32.mrb[0].mxu0
    %v2688 = vadd.f32 0.0, %v2687
    %v2689 = vpop.f32.mrb[0].mxu0
    %2690 = vdwg.mxu0
    %v2691 = vadd.f32 %v2495, %v2671
    %v2692 = vadd.f32 %v2498, %v2674
    %v2693 = vadd.f32 %v2509, %v2685
    %v2694 = vadd.f32 %v2512, %v2688
    %v2695 = vadd.f32 %v2691, %v2205
    %v2696 = vadd.f32 %v2692, %v2205
    %v2697 = vadd.f32 %v2693, %v2205
    %v2698 = vadd.f32 %v2694, %v2205
    %v2699 = vmax.f32 %v2695, 0.0
    %v2700 = vmax.f32 %v2696, 0.0
    %v2701 = vmax.f32 %v2697, 0.0
    %v2702 = vmax.f32 %v2698, 0.0
    %v2703 = vpack.c.bf16 %v2700, %v2699
    %v2704 = vpack.c.bf16 %v2702, %v2701
    %v2706 = vunpack.c.l.b16 %v2703
    %v2707 = vunpack.c.h.b16 %v2703
    %v2708 = vpack.c.b16 %v2706, %v2706
    %v2709 = vpack.c.b16 %v2707, %v2707
    %2712 = vst [vmem:[#allocation3 + $0x8] sm:$0xf] %v2708
    %2713 = vst [vmem:[#allocation3 + $0xc] sm:$0xf] %v2709
    %v2715 = vunpack.c.l.b16 %v2704
    %v2716 = vunpack.c.h.b16 %v2704
    %v2717 = vpack.c.b16 %v2715, %v2715
    %v2718 = vpack.c.b16 %v2716, %v2716
    %2721 = vst [vmem:[#allocation3 + $0x18] sm:$0xf] %v2717
    %2722 = vst [vmem:[#allocation3 + $0x1c] sm:$0xf] %v2718
    %v2723 = vld [vmem:[#allocation11 + $0x5] ss:$0 sm:$0xff]
    %v2724 = vld [vmem:[#allocation3 + $0x4] sm:$0x8]
    %v2725 = vld [vmem:[#allocation3 + $0x8] sm:$0xf]
    %v2726 = vld [vmem:[#allocation3 + $0xc] sm:$0xf]
    %v2727 = vld [vmem:[#allocation3 + $0x10] sm:$0xf]
    %v2728 = vld [vmem:[#allocation3 + $0x14] sm:$0xf]
    %v2729 = vld [vmem:[#allocation3 + $0x18] sm:$0xf]
    %v2730 = vld [vmem:[#allocation3 + $0x1c] sm:$0xf]
    %s2731 = scalar_lea.vmem [#allocation8], 960
    %v2732 = vld [vmem:[%s2731] sm:$0xf]
    %v2733 = vld [vmem:[%s2731 + $0x4] sm:$0xf]
    %v2734 = vld [vmem:[%s2731 + $0x8] sm:$0xf]
    %v2735 = vld [vmem:[%s2731 + $0xc] sm:$0xf]
    %v2736 = vld [vmem:[%s2731 + $0x10] sm:$0xf]
    %v2737 = vld [vmem:[%s2731 + $0x14] sm:$0xf]
    %v2738 = vld [vmem:[%s2731 + $0x18] sm:$0xf]
    %v2739 = vld [vmem:[%s2731 + $0x1c] sm:$0xf]
    %v2740 = vld [vmem:[%s2731 + $0x20] sm:$0xf]
    %v2741 = vld [vmem:[%s2731 + $0x24] sm:$0xf]
    %v2742 = vld [vmem:[%s2731 + $0x28] sm:$0xf]
    %v2743 = vld [vmem:[%s2731 + $0x2c] sm:$0xf]
    %v2744 = vld [vmem:[%s2731 + $0x30] sm:$0xf]
    %v2745 = vld [vmem:[%s2731 + $0x34] sm:$0xf]
    %v2746 = vld [vmem:[%s2731 + $0x38] sm:$0xf]
    %v2747 = vld [vmem:[%s2731 + $0x3c] sm:$0xf]
    %s2748 = scalar_lea.vmem [#allocation8], 1024
    %v2749 = vld [vmem:[%s2748] sm:$0xf]
    %v2750 = vld [vmem:[%s2748 + $0x4] sm:$0xf]
    %v2751 = vld [vmem:[%s2748 + $0x8] sm:$0xf]
    %v2752 = vld [vmem:[%s2748 + $0xc] sm:$0xf]
    %v2753 = vld [vmem:[%s2748 + $0x10] sm:$0xf]
    %v2754 = vld [vmem:[%s2748 + $0x14] sm:$0xf]
    %v2755 = vld [vmem:[%s2748 + $0x18] sm:$0xf]
    %v2756 = vld [vmem:[%s2748 + $0x1c] sm:$0xf]
    %v2757 = vld [vmem:[%s2748 + $0x20] sm:$0xf]
    %v2758 = vld [vmem:[%s2748 + $0x24] sm:$0xf]
    %v2759 = vld [vmem:[%s2748 + $0x28] sm:$0xf]
    %v2760 = vld [vmem:[%s2748 + $0x2c] sm:$0xf]
    %v2761 = vld [vmem:[%s2748 + $0x30] sm:$0xf]
    %v2762 = vld [vmem:[%s2748 + $0x34] sm:$0xf]
    %v2763 = vld [vmem:[%s2748 + $0x38] sm:$0xf]
    %v2764 = vld [vmem:[%s2748 + $0x3c] sm:$0xf]
    %v2771 = vunpack.c.l.b16 %v2725
    %v2772 = vunpack.c.l.b16 %v2726
    %v2773 = vunpack.c.l.b16 %v2727
    %v2774 = vunpack.c.l.b16 %v2728
    %v2775 = vunpack.c.l.b16 %v2729
    %v2776 = vunpack.c.l.b16 %v2730
    %v2777 = vpack.c.b16 %v2772, %v2771
    %v2778 = vpack.c.b16 %v2774, %v2773
    %v2779 = vpack.c.b16 %v2776, %v2775
    %v2799 = vunpack.c.l.b16 %v2749
    %v2800 = vunpack.c.l.b16 %v2750
    %v2801 = vunpack.c.l.b16 %v2751
    %v2802 = vunpack.c.l.b16 %v2752
    %v2803 = vunpack.c.l.b16 %v2753
    %v2804 = vunpack.c.l.b16 %v2754
    %v2805 = vunpack.c.l.b16 %v2755
    %v2806 = vunpack.c.l.b16 %v2756
    %v2807 = vunpack.c.l.b16 %v2757
    %v2808 = vunpack.c.l.b16 %v2758
    %v2809 = vunpack.c.l.b16 %v2759
    %v2810 = vunpack.c.l.b16 %v2760
    %v2811 = vunpack.c.l.b16 %v2761
    %v2812 = vunpack.c.l.b16 %v2762
    %v2813 = vunpack.c.l.b16 %v2763
    %v2814 = vunpack.c.l.b16 %v2764
    %v2815 = vpack.c.b16 %v2800, %v2799
    %v2816 = vpack.c.b16 %v2802, %v2801
    %v2817 = vpack.c.b16 %v2804, %v2803
    %v2818 = vpack.c.b16 %v2806, %v2805
    %v2819 = vpack.c.b16 %v2808, %v2807
    %v2820 = vpack.c.b16 %v2810, %v2809
    %v2821 = vpack.c.b16 %v2812, %v2811
    %v2822 = vpack.c.b16 %v2814, %v2813
    %2831 = vmatprep.subr.bf16.mxu0 0
    %2832 = vmatpush1.bf16.msra.mxu0 %v2815
    %2833 = vmatprep.subr.bf16.mxu0 0
    %2834 = vmatpush1.bf16.msra.mxu0 %v2816
    %2835 = vmatprep.subr.bf16.mxu0 0
    %2836 = vmatpush1.bf16.msra.mxu0 %v2817
    %2837 = vmatprep.subr.bf16.mxu0 0
    %2838 = vmatpush1.bf16.msra.mxu0 %v2818
    %2839 = vmatprep.subr.bf16.mxu0 0
    %2840 = vmatpush1.bf16.msra.mxu0 %v2819
    %2841 = vmatprep.subr.bf16.mxu0 0
    %2842 = vmatpush1.bf16.msra.mxu0 %v2820
    %2843 = vmatprep.subr.bf16.mxu0 0
    %2844 = vmatpush1.bf16.msra.mxu0 %v2821
    %2845 = vmatprep.subr.bf16.mxu0 0
    %2846 = vmatpush1.bf16.msra.mxu0 %v2822
    %2847 = vmatprep.subr.bf16.mxu0 0
    %2848 = vmatpush1.bf16.msra.mxu0 0
    %2849 = vmatprep.subr.bf16.mxu0 0
    %2850 = vmatpush1.bf16.msra.mxu0 0
    %2851 = vmatprep.subr.bf16.mxu0 0
    %2852 = vmatpush1.bf16.msra.mxu0 0
    %2853 = vmatprep.subr.bf16.mxu0 0
    %2854 = vmatpush1.bf16.msra.mxu0 0
    %2855 = vmatprep.subr.bf16.mxu0 0
    %2856 = vmatpush1.bf16.msra.mxu0 0
    %2857 = vmatprep.subr.bf16.mxu0 0
    %2858 = vmatpush1.bf16.msra.mxu0 0
    %2859 = vmatprep.subr.bf16.mxu0 0
    %2860 = vmatpush1.bf16.msra.mxu0 0
    %2861 = vmatprep.subr.bf16.mxu0 0
    %2862 = vmatpush1.bf16.msra.mxu0 0
    %2863 = vmatprep.mubr.bf16.mxu0 0
    %2864 = vmatmul.mubr.bf16.gmra.mrb[0].mxu0 %v2777
    %v2865 = vpop.f32.mrb[0].mxu0
    %v2866 = vadd.f32 0.0, %v2865
    %v2867 = vpop.f32.mrb[0].mxu0
    %v2868 = vpop.f32.mrb[0].mxu0
    %v2869 = vadd.f32 0.0, %v2868
    %v2870 = vpop.f32.mrb[0].mxu0
    %2871 = vmatprep.mubr.bf16.mxu0 0
    %2872 = vmatmul.mubr.bf16.gmra.mrb[0].mxu0 %v2778
    %v2873 = vpop.f32.mrb[0].mxu0
    %v2874 = vpop.f32.mrb[0].mxu0
    %v2875 = vpop.f32.mrb[0].mxu0
    %v2876 = vpop.f32.mrb[0].mxu0
    %2877 = vmatprep.mubr.bf16.mxu0 0
    %2878 = vmatmul.mubr.bf16.gmra.mrb[0].mxu0 %v2779
    %v2879 = vpop.f32.mrb[0].mxu0
    %v2880 = vadd.f32 0.0, %v2879
    %v2881 = vpop.f32.mrb[0].mxu0
    %v2882 = vpop.f32.mrb[0].mxu0
    %v2883 = vadd.f32 0.0, %v2882
    %v2884 = vpop.f32.mrb[0].mxu0
    %2885 = vdwg.mxu0
    %v2887 = vunpack.c.l.b16 %v2724
    %v2888 = vpack.c.b16 %v2771, %v2887
    %v2889 = vpack.c.b16 %v2773, %v2772
    %v2890 = vpack.c.b16 %v2775, %v2774
    %v2891 = vpack.c.b16 %v2776, %v2776
    %v2893 = vshrl.u32 %v2888, 16
    %v2895 = vrot.slane %v2893, 3
    %v2896 = vshll.u32 %v2888, 16
    %v2898 = vrot.slane %v2896, 4
    %v2899 = vor.u32 %v2895, %v2898
    %v2901 = vshrl.u32 %v2889, 16
    %v2903 = vrot.slane %v2901, 3
    %v2904 = vshll.u32 %v2889, 16
    %v2906 = vrot.slane %v2904, 4
    %v2907 = vor.u32 %v2903, %v2906
    %v2908 = vsel %vm284, %v2899, %v2907
    %v2910 = vshrl.u32 %v2890, 16
    %v2912 = vrot.slane %v2910, 3
    %v2913 = vshll.u32 %v2890, 16
    %v2915 = vrot.slane %v2913, 4
    %v2916 = vor.u32 %v2912, %v2915
    %v2917 = vsel %vm284, %v2907, %v2916
    %v2919 = vshrl.u32 %v2891, 16
    %v2921 = vrot.slane %v2919, 3
    %v2922 = vshll.u32 %v2891, 16
    %v2924 = vrot.slane %v2922, 4
    %v2925 = vor.u32 %v2921, %v2924
    %v2926 = vsel %vm284, %v2916, %v2925
    %v2946 = vunpack.c.l.b16 %v2732
    %v2947 = vunpack.c.l.b16 %v2733
    %v2948 = vunpack.c.l.b16 %v2734
    %v2949 = vunpack.c.l.b16 %v2735
    %v2950 = vunpack.c.l.b16 %v2736
    %v2951 = vunpack.c.l.b16 %v2737
    %v2952 = vunpack.c.l.b16 %v2738
    %v2953 = vunpack.c.l.b16 %v2739
    %v2954 = vunpack.c.l.b16 %v2740
    %v2955 = vunpack.c.l.b16 %v2741
    %v2956 = vunpack.c.l.b16 %v2742
    %v2957 = vunpack.c.l.b16 %v2743
    %v2958 = vunpack.c.l.b16 %v2744
    %v2959 = vunpack.c.l.b16 %v2745
    %v2960 = vunpack.c.l.b16 %v2746
    %v2961 = vunpack.c.l.b16 %v2747
    %v2962 = vpack.c.b16 %v2947, %v2946
    %v2963 = vpack.c.b16 %v2949, %v2948
    %v2964 = vpack.c.b16 %v2951, %v2950
    %v2965 = vpack.c.b16 %v2953, %v2952
    %v2966 = vpack.c.b16 %v2955, %v2954
    %v2967 = vpack.c.b16 %v2957, %v2956
    %v2968 = vpack.c.b16 %v2959, %v2958
    %v2969 = vpack.c.b16 %v2961, %v2960
    %2978 = vmatprep.subr.bf16.mxu0 0
    %2979 = vmatpush1.bf16.msra.mxu0 %v2962
    %2980 = vmatprep.subr.bf16.mxu0 0
    %2981 = vmatpush1.bf16.msra.mxu0 %v2963
    %2982 = vmatprep.subr.bf16.mxu0 0
    %2983 = vmatpush1.bf16.msra.mxu0 %v2964
    %2984 = vmatprep.subr.bf16.mxu0 0
    %2985 = vmatpush1.bf16.msra.mxu0 %v2965
    %2986 = vmatprep.subr.bf16.mxu0 0
    %2987 = vmatpush1.bf16.msra.mxu0 %v2966
    %2988 = vmatprep.subr.bf16.mxu0 0
    %2989 = vmatpush1.bf16.msra.mxu0 %v2967
    %2990 = vmatprep.subr.bf16.mxu0 0
    %2991 = vmatpush1.bf16.msra.mxu0 %v2968
    %2992 = vmatprep.subr.bf16.mxu0 0
    %2993 = vmatpush1.bf16.msra.mxu0 %v2969
    %2994 = vmatprep.subr.bf16.mxu0 0
    %2995 = vmatpush1.bf16.msra.mxu0 0
    %2996 = vmatprep.subr.bf16.mxu0 0
    %2997 = vmatpush1.bf16.msra.mxu0 0
    %2998 = vmatprep.subr.bf16.mxu0 0
    %2999 = vmatpush1.bf16.msra.mxu0 0
    %3000 = vmatprep.subr.bf16.mxu0 0
    %3001 = vmatpush1.bf16.msra.mxu0 0
    %3002 = vmatprep.subr.bf16.mxu0 0
    %3003 = vmatpush1.bf16.msra.mxu0 0
    %3004 = vmatprep.subr.bf16.mxu0 0
    %3005 = vmatpush1.bf16.msra.mxu0 0
    %3006 = vmatprep.subr.bf16.mxu0 0
    %3007 = vmatpush1.bf16.msra.mxu0 0
    %3008 = vmatprep.subr.bf16.mxu0 0
    %3009 = vmatpush1.bf16.msra.mxu0 0
    %3010 = vmatprep.mubr.bf16.mxu0 0
    %3011 = vmatmul.mubr.bf16.gmra.mrb[0].mxu0 %v2908
    %v3012 = vpop.f32.mrb[0].mxu0
    %v3013 = vadd.f32 %v2866, %v3012
    %v3014 = vpop.f32.mrb[0].mxu0
    %v3015 = vpop.f32.mrb[0].mxu0
    %v3016 = vadd.f32 %v2869, %v3015
    %v3017 = vpop.f32.mrb[0].mxu0
    %3018 = vmatprep.mubr.bf16.mxu0 0
    %3019 = vmatmul.mubr.bf16.gmra.mrb[0].mxu0 %v2917
    %v3020 = vpop.f32.mrb[0].mxu0
    %v3021 = vpop.f32.mrb[0].mxu0
    %v3022 = vpop.f32.mrb[0].mxu0
    %v3023 = vpop.f32.mrb[0].mxu0
    %3024 = vmatprep.mubr.bf16.mxu0 0
    %3025 = vmatmul.mubr.bf16.gmra.mrb[0].mxu0 %v2926
    %v3026 = vpop.f32.mrb[0].mxu0
    %v3027 = vadd.f32 %v2880, %v3026
    %v3028 = vpop.f32.mrb[0].mxu0
    %v3029 = vpop.f32.mrb[0].mxu0
    %v3030 = vadd.f32 %v2883, %v3029
    %v3031 = vpop.f32.mrb[0].mxu0
    %3032 = vdwg.mxu0
    %v3033 = vld [vmem:[#allocation3 + $0x8] sm:$0xf]
    %v3034 = vld [vmem:[#allocation3 + $0xc] sm:$0xf]
    %v3035 = vld [vmem:[#allocation3 + $0x10] sm:$0xf]
    %v3036 = vld [vmem:[#allocation3 + $0x14] sm:$0xf]
    %v3037 = vld [vmem:[#allocation3 + $0x18] sm:$0xf]
    %v3038 = vld [vmem:[#allocation3 + $0x1c] sm:$0xf]
    %v3039 = vld [vmem:[#allocation3 + $0x20] sm:$0x1]
    %s3040 = scalar_lea.vmem [#allocation8], 1088
    %v3041 = vld [vmem:[%s3040] sm:$0xf]
    %v3042 = vld [vmem:[%s3040 + $0x4] sm:$0xf]
    %v3043 = vld [vmem:[%s3040 + $0x8] sm:$0xf]
    %v3044 = vld [vmem:[%s3040 + $0xc] sm:$0xf]
    %v3045 = vld [vmem:[%s3040 + $0x10] sm:$0xf]
    %v3046 = vld [vmem:[%s3040 + $0x14] sm:$0xf]
    %v3047 = vld [vmem:[%s3040 + $0x18] sm:$0xf]
    %v3048 = vld [vmem:[%s3040 + $0x1c] sm:$0xf]
    %v3049 = vld [vmem:[%s3040 + $0x20] sm:$0xf]
    %v3050 = vld [vmem:[%s3040 + $0x24] sm:$0xf]
    %v3051 = vld [vmem:[%s3040 + $0x28] sm:$0xf]
    %v3052 = vld [vmem:[%s3040 + $0x2c] sm:$0xf]
    %v3053 = vld [vmem:[%s3040 + $0x30] sm:$0xf]
    %v3054 = vld [vmem:[%s3040 + $0x34] sm:$0xf]
    %v3055 = vld [vmem:[%s3040 + $0x38] sm:$0xf]
    %v3056 = vld [vmem:[%s3040 + $0x3c] sm:$0xf]
    %v3064 = vunpack.c.l.b16 %v3033
    %v3065 = vunpack.c.l.b16 %v3034
    %v3066 = vunpack.c.l.b16 %v3035
    %v3067 = vunpack.c.l.b16 %v3036
    %v3068 = vunpack.c.l.b16 %v3037
    %v3069 = vunpack.c.l.b16 %v3038
    %v3070 = vunpack.c.l.b16 %v3039
    %v3071 = vpack.c.b16 %v3065, %v3064
    %v3072 = vpack.c.b16 %v3067, %v3066
    %v3073 = vpack.c.b16 %v3069, %v3068
    %v3074 = vpack.c.b16 %v3070, %v3070
    %v3076 = vshrl.u32 %v3071, 16
    %v3078 = vshll.u32 %v3071, 16
    %v3080 = vrot.slane %v3078, 1
    %v3081 = vor.u32 %v3076, %v3080
    %v3083 = vshll.u32 %v3072, 16
    %v3085 = vrot.slane %v3083, 1
    %v3086 = vsel %vm468, %v3081, %v3085
    %v3087 = vshrl.u32 %v3072, 16
    %v3089 = vor.u32 %v3087, %v3085
    %v3091 = vshll.u32 %v3073, 16
    %v3093 = vrot.slane %v3091, 1
    %v3094 = vsel %vm468, %v3089, %v3093
    %v3095 = vshrl.u32 %v3073, 16
    %v3097 = vor.u32 %v3095, %v3093
    %v3099 = vshll.u32 %v3074, 16
    %v3101 = vrot.slane %v3099, 1
    %v3102 = vsel %vm468, %v3097, %v3101
    %v3122 = vunpack.c.l.b16 %v3041
    %v3123 = vunpack.c.l.b16 %v3042
    %v3124 = vunpack.c.l.b16 %v3043
    %v3125 = vunpack.c.l.b16 %v3044
    %v3126 = vunpack.c.l.b16 %v3045
    %v3127 = vunpack.c.l.b16 %v3046
    %v3128 = vunpack.c.l.b16 %v3047
    %v3129 = vunpack.c.l.b16 %v3048
    %v3130 = vunpack.c.l.b16 %v3049
    %v3131 = vunpack.c.l.b16 %v3050
    %v3132 = vunpack.c.l.b16 %v3051
    %v3133 = vunpack.c.l.b16 %v3052
    %v3134 = vunpack.c.l.b16 %v3053
    %v3135 = vunpack.c.l.b16 %v3054
    %v3136 = vunpack.c.l.b16 %v3055
    %v3137 = vunpack.c.l.b16 %v3056
    %v3138 = vpack.c.b16 %v3123, %v3122
    %v3139 = vpack.c.b16 %v3125, %v3124
    %v3140 = vpack.c.b16 %v3127, %v3126
    %v3141 = vpack.c.b16 %v3129, %v3128
    %v3142 = vpack.c.b16 %v3131, %v3130
    %v3143 = vpack.c.b16 %v3133, %v3132
    %v3144 = vpack.c.b16 %v3135, %v3134
    %v3145 = vpack.c.b16 %v3137, %v3136
    %3154 = vmatprep.subr.bf16.mxu0 0
    %3155 = vmatpush1.bf16.msra.mxu0 %v3138
    %3156 = vmatprep.subr.bf16.mxu0 0
    %3157 = vmatpush1.bf16.msra.mxu0 %v3139
    %3158 = vmatprep.subr.bf16.mxu0 0
    %3159 = vmatpush1.bf16.msra.mxu0 %v3140
    %3160 = vmatprep.subr.bf16.mxu0 0
    %3161 = vmatpush1.bf16.msra.mxu0 %v3141
    %3162 = vmatprep.subr.bf16.mxu0 0
    %3163 = vmatpush1.bf16.msra.mxu0 %v3142
    %3164 = vmatprep.subr.bf16.mxu0 0
    %3165 = vmatpush1.bf16.msra.mxu0 %v3143
    %3166 = vmatprep.subr.bf16.mxu0 0
    %3167 = vmatpush1.bf16.msra.mxu0 %v3144
    %3168 = vmatprep.subr.bf16.mxu0 0
    %3169 = vmatpush1.bf16.msra.mxu0 %v3145
    %3170 = vmatprep.subr.bf16.mxu0 0
    %3171 = vmatpush1.bf16.msra.mxu0 0
    %3172 = vmatprep.subr.bf16.mxu0 0
    %3173 = vmatpush1.bf16.msra.mxu0 0
    %3174 = vmatprep.subr.bf16.mxu0 0
    %3175 = vmatpush1.bf16.msra.mxu0 0
    %3176 = vmatprep.subr.bf16.mxu0 0
    %3177 = vmatpush1.bf16.msra.mxu0 0
    %3178 = vmatprep.subr.bf16.mxu0 0
    %3179 = vmatpush1.bf16.msra.mxu0 0
    %3180 = vmatprep.subr.bf16.mxu0 0
    %3181 = vmatpush1.bf16.msra.mxu0 0
    %3182 = vmatprep.subr.bf16.mxu0 0
    %3183 = vmatpush1.bf16.msra.mxu0 0
    %3184 = vmatprep.subr.bf16.mxu0 0
    %3185 = vmatpush1.bf16.msra.mxu0 0
    %3186 = vmatprep.mubr.bf16.mxu0 0
    %3187 = vmatmul.mubr.bf16.gmra.mrb[0].mxu0 %v3086
    %v3188 = vpop.f32.mrb[0].mxu0
    %v3189 = vadd.f32 0.0, %v3188
    %v3190 = vpop.f32.mrb[0].mxu0
    %v3191 = vpop.f32.mrb[0].mxu0
    %v3192 = vadd.f32 0.0, %v3191
    %v3193 = vpop.f32.mrb[0].mxu0
    %3194 = vmatprep.mubr.bf16.mxu0 0
    %3195 = vmatmul.mubr.bf16.gmra.mrb[0].mxu0 %v3094
    %v3196 = vpop.f32.mrb[0].mxu0
    %v3197 = vpop.f32.mrb[0].mxu0
    %v3198 = vpop.f32.mrb[0].mxu0
    %v3199 = vpop.f32.mrb[0].mxu0
    %3200 = vmatprep.mubr.bf16.mxu0 0
    %3201 = vmatmul.mubr.bf16.gmra.mrb[0].mxu0 %v3102
    %v3202 = vpop.f32.mrb[0].mxu0
    %v3203 = vadd.f32 0.0, %v3202
    %v3204 = vpop.f32.mrb[0].mxu0
    %v3205 = vpop.f32.mrb[0].mxu0
    %v3206 = vadd.f32 0.0, %v3205
    %v3207 = vpop.f32.mrb[0].mxu0
    %3208 = vdwg.mxu0
    %v3209 = vadd.f32 %v3013, %v3189
    %v3210 = vadd.f32 %v3016, %v3192
    %v3211 = vadd.f32 %v3027, %v3203
    %v3212 = vadd.f32 %v3030, %v3206
    %v3213 = vadd.f32 %v3209, %v2723
    %v3214 = vadd.f32 %v3210, %v2723
    %v3215 = vadd.f32 %v3211, %v2723
    %v3216 = vadd.f32 %v3212, %v2723
    %v3217 = vld [vmem:[#allocation4 + $0x10] sm:$0xff]
    %v3218 = vld [vmem:[#allocation4 + $0x18] sm:$0xff]
    %v3219 = vld [vmem:[#allocation4 + $0x30] sm:$0xff]
    %v3220 = vld [vmem:[#allocation4 + $0x38] sm:$0xff]
    %v3221 = vadd.f32 %v3213, %v3217
    %v3222 = vadd.f32 %v3214, %v3218
    %v3223 = vadd.f32 %v3215, %v3219
    %v3224 = vadd.f32 %v3216, %v3220
    %3225 = vst [vmem:[#allocation4 + $0x10] sm:$0xff] %v3221
    %3226 = vst [vmem:[#allocation4 + $0x18] sm:$0xff] %v3222
    %3227 = vst [vmem:[#allocation4 + $0x30] sm:$0xff] %v3223
    %3228 = vst [vmem:[#allocation4 + $0x38] sm:$0xff] %v3224
    %v3229 = vpack.c.bf16 %v3222, %v3221
    %v3230 = vpack.c.bf16 %v3224, %v3223
    %v3232 = vunpack.c.l.b16 %v3229
    %v3233 = vunpack.c.h.b16 %v3229
    %v3234 = vpack.c.b16 %v3232, %v3232
    %v3235 = vpack.c.b16 %v3233, %v3233
    %3238 = vst [vmem:[#allocation2 + $0x8] sm:$0xf] %v3234
    %3239 = vst [vmem:[#allocation2 + $0xc] sm:$0xf] %v3235
    %v3241 = vunpack.c.l.b16 %v3230
    %v3242 = vunpack.c.h.b16 %v3230
    %v3243 = vpack.c.b16 %v3241, %v3241
    %v3244 = vpack.c.b16 %v3242, %v3242
    %3247 = vst [vmem:[#allocation2 + $0x18] sm:$0xf] %v3243
    %3248 = vst [vmem:[#allocation2 + $0x1c] sm:$0xf] %v3244
    %s3249 = scalar_lea.vmem [#allocation11], 6
    %v3250 = vld [vmem:[%s3249] ss:$8 sm:$0x3]
    %v3251 = vld [vmem:[#allocation2 + $0x4] sm:$0x8]
    %v3252 = vld [vmem:[#allocation2 + $0x8] sm:$0xf]
    %v3253 = vld [vmem:[#allocation2 + $0xc] sm:$0xf]
    %v3254 = vld [vmem:[#allocation2 + $0x10] sm:$0xf]
    %v3255 = vld [vmem:[#allocation2 + $0x14] sm:$0xf]
    %v3256 = vld [vmem:[#allocation2 + $0x18] sm:$0xf]
    %v3257 = vld [vmem:[#allocation2 + $0x1c] sm:$0xf]
    %v3258 = vld [vmem:[#allocation10] sm:$0xff]
    %v3259 = vld [vmem:[#allocation10 + $0x8] sm:$0xff]
    %v3260 = vld [vmem:[#allocation10 + $0x10] sm:$0xff]
    %v3261 = vld [vmem:[#allocation10 + $0x18] sm:$0xff]
    %v3262 = vld [vmem:[#allocation10 + $0x20] sm:$0xff]
    %v3263 = vld [vmem:[#allocation10 + $0x28] sm:$0xff]
    %v3264 = vld [vmem:[#allocation10 + $0x30] sm:$0xff]
    %v3265 = vld [vmem:[#allocation10 + $0x38] sm:$0xff]
    %v3266 = vld [vmem:[#allocation10 + $0x40] sm:$0xff]
    %v3267 = vld [vmem:[#allocation10 + $0x48] sm:$0xff]
    %v3268 = vld [vmem:[#allocation10 + $0x50] sm:$0xff]
    %v3269 = vld [vmem:[#allocation10 + $0x58] sm:$0xff]
    %v3270 = vld [vmem:[#allocation10 + $0x60] sm:$0xff]
    %v3271 = vld [vmem:[#allocation10 + $0x68] sm:$0xff]
    %v3272 = vld [vmem:[#allocation10 + $0x70] sm:$0xff]
    %v3273 = vld [vmem:[#allocation10 + $0x78] sm:$0xff]
    %s3274 = scalar_lea.vmem [#allocation10], 128
    %v3275 = vld [vmem:[%s3274] sm:$0xff]
    %v3276 = vld [vmem:[%s3274 + $0x8] sm:$0xff]
    %v3277 = vld [vmem:[%s3274 + $0x10] sm:$0xff]
    %v3278 = vld [vmem:[%s3274 + $0x18] sm:$0xff]
    %v3279 = vld [vmem:[%s3274 + $0x20] sm:$0xff]
    %v3280 = vld [vmem:[%s3274 + $0x28] sm:$0xff]
    %v3281 = vld [vmem:[%s3274 + $0x30] sm:$0xff]
    %v3282 = vld [vmem:[%s3274 + $0x38] sm:$0xff]
    %v3283 = vld [vmem:[%s3274 + $0x40] sm:$0xff]
    %v3284 = vld [vmem:[%s3274 + $0x48] sm:$0xff]
    %v3285 = vld [vmem:[%s3274 + $0x50] sm:$0xff]
    %v3286 = vld [vmem:[%s3274 + $0x58] sm:$0xff]
    %v3287 = vld [vmem:[%s3274 + $0x60] sm:$0xff]
    %v3288 = vld [vmem:[%s3274 + $0x68] sm:$0xff]
    %v3289 = vld [vmem:[%s3274 + $0x70] sm:$0xff]
    %v3290 = vld [vmem:[%s3274 + $0x78] sm:$0xff]
    %v3297 = vunpack.c.l.b16 %v3252
    %v3298 = vunpack.c.l.b16 %v3253
    %v3299 = vunpack.c.l.b16 %v3254
    %v3300 = vunpack.c.l.b16 %v3255
    %v3301 = vunpack.c.l.b16 %v3256
    %v3302 = vunpack.c.l.b16 %v3257
    %v3303 = vpack.c.b16 %v3298, %v3297
    %v3304 = vpack.c.b16 %v3300, %v3299
    %v3305 = vpack.c.b16 %v3302, %v3301
    %v3325 = vunpack.c.l.b16 %v3275
    %v3326 = vunpack.c.h.b16 %v3275
    %v3327 = vunpack.c.l.b16 %v3276
    %v3328 = vunpack.c.h.b16 %v3276
    %v3329 = vunpack.c.l.b16 %v3277
    %v3330 = vunpack.c.h.b16 %v3277
    %v3331 = vunpack.c.l.b16 %v3278
    %v3332 = vunpack.c.h.b16 %v3278
    %v3333 = vunpack.c.l.b16 %v3279
    %v3334 = vunpack.c.h.b16 %v3279
    %v3335 = vunpack.c.l.b16 %v3280
    %v3336 = vunpack.c.h.b16 %v3280
    %v3337 = vunpack.c.l.b16 %v3281
    %v3338 = vunpack.c.h.b16 %v3281
    %v3339 = vunpack.c.l.b16 %v3282
    %v3340 = vunpack.c.h.b16 %v3282
    %v3341 = vunpack.c.l.b16 %v3283
    %v3342 = vunpack.c.h.b16 %v3283
    %v3343 = vunpack.c.l.b16 %v3284
    %v3344 = vunpack.c.h.b16 %v3284
    %v3345 = vunpack.c.l.b16 %v3285
    %v3346 = vunpack.c.h.b16 %v3285
    %v3347 = vunpack.c.l.b16 %v3286
    %v3348 = vunpack.c.h.b16 %v3286
    %v3349 = vunpack.c.l.b16 %v3287
    %v3350 = vunpack.c.h.b16 %v3287
    %v3351 = vunpack.c.l.b16 %v3288
    %v3352 = vunpack.c.h.b16 %v3288
    %v3353 = vunpack.c.l.b16 %v3289
    %v3354 = vunpack.c.h.b16 %v3289
    %v3355 = vunpack.c.l.b16 %v3290
    %v3356 = vunpack.c.h.b16 %v3290
    %v3357 = vpack.c.b16 %v3327, %v3325
    %v3358 = vpack.c.b16 %v3328, %v3326
    %v3359 = vpack.c.b16 %v3331, %v3329
    %v3360 = vpack.c.b16 %v3332, %v3330
    %v3361 = vpack.c.b16 %v3335, %v3333
    %v3362 = vpack.c.b16 %v3336, %v3334
    %v3363 = vpack.c.b16 %v3339, %v3337
    %v3364 = vpack.c.b16 %v3340, %v3338
    %v3365 = vpack.c.b16 %v3343, %v3341
    %v3366 = vpack.c.b16 %v3344, %v3342
    %v3367 = vpack.c.b16 %v3347, %v3345
    %v3368 = vpack.c.b16 %v3348, %v3346
    %v3369 = vpack.c.b16 %v3351, %v3349
    %v3370 = vpack.c.b16 %v3352, %v3350
    %v3371 = vpack.c.b16 %v3355, %v3353
    %v3372 = vpack.c.b16 %v3356, %v3354
    %3389 = vmatprep.subr.bf16.mxu0 %v3358
    %3390 = vmatpush1.bf16.msra.mxu0 %v3357
    %3391 = vmatprep.subr.bf16.mxu0 %v3360
    %3392 = vmatpush1.bf16.msra.mxu0 %v3359
    %3393 = vmatprep.subr.bf16.mxu0 %v3362
    %3394 = vmatpush1.bf16.msra.mxu0 %v3361
    %3395 = vmatprep.subr.bf16.mxu0 %v3364
    %3396 = vmatpush1.bf16.msra.mxu0 %v3363
    %3397 = vmatprep.subr.bf16.mxu0 %v3366
    %3398 = vmatpush1.bf16.msra.mxu0 %v3365
    %3399 = vmatprep.subr.bf16.mxu0 %v3368
    %3400 = vmatpush1.bf16.msra.mxu0 %v3367
    %3401 = vmatprep.subr.bf16.mxu0 %v3370
    %3402 = vmatpush1.bf16.msra.mxu0 %v3369
    %3403 = vmatprep.subr.bf16.mxu0 %v3372
    %3404 = vmatpush1.bf16.msra.mxu0 %v3371
    %3405 = vmatprep.subr.bf16.mxu0 0
    %3406 = vmatpush1.bf16.msra.mxu0 0
    %3407 = vmatprep.subr.bf16.mxu0 0
    %3408 = vmatpush1.bf16.msra.mxu0 0
    %3409 = vmatprep.subr.bf16.mxu0 0
    %3410 = vmatpush1.bf16.msra.mxu0 0
    %3411 = vmatprep.subr.bf16.mxu0 0
    %3412 = vmatpush1.bf16.msra.mxu0 0
    %3413 = vmatprep.subr.bf16.mxu0 0
    %3414 = vmatpush1.bf16.msra.mxu0 0
    %3415 = vmatprep.subr.bf16.mxu0 0
    %3416 = vmatpush1.bf16.msra.mxu0 0
    %3417 = vmatprep.subr.bf16.mxu0 0
    %3418 = vmatpush1.bf16.msra.mxu0 0
    %3419 = vmatprep.subr.bf16.mxu0 0
    %3420 = vmatpush1.bf16.msra.mxu0 0
    %3421 = vmatprep.mubr.bf16.mxu0 0
    %3422 = vmatmul.mubr.bf16.gmra.mrb[0].mxu0 %v3303
    %v3423 = vpop.f32.mrb[0].mxu0
    %v3424 = vadd.f32 0.0, %v3423
    %v3425 = vpop.f32.mrb[0].mxu0
    %v3426 = vadd.f32 0.0, %v3425
    %v3427 = vpop.f32.mrb[0].mxu0
    %v3428 = vadd.f32 0.0, %v3427
    %v3429 = vpop.f32.mrb[0].mxu0
    %v3430 = vadd.f32 0.0, %v3429
    %3431 = vmatprep.mubr.bf16.mxu0 0
    %3432 = vmatmul.mubr.bf16.gmra.mrb[0].mxu0 %v3304
    %v3433 = vpop.f32.mrb[0].mxu0
    %v3434 = vpop.f32.mrb[0].mxu0
    %v3435 = vpop.f32.mrb[0].mxu0
    %v3436 = vpop.f32.mrb[0].mxu0
    %3437 = vmatprep.mubr.bf16.mxu0 0
    %3438 = vmatmul.mubr.bf16.gmra.mrb[0].mxu0 %v3305
    %v3439 = vpop.f32.mrb[0].mxu0
    %v3440 = vadd.f32 0.0, %v3439
    %v3441 = vpop.f32.mrb[0].mxu0
    %v3442 = vadd.f32 0.0, %v3441
    %v3443 = vpop.f32.mrb[0].mxu0
    %v3444 = vadd.f32 0.0, %v3443
    %v3445 = vpop.f32.mrb[0].mxu0
    %v3446 = vadd.f32 0.0, %v3445
    %3447 = vdwg.mxu0
    %v3449 = vunpack.c.l.b16 %v3251
    %v3450 = vpack.c.b16 %v3297, %v3449
    %v3451 = vpack.c.b16 %v3299, %v3298
    %v3452 = vpack.c.b16 %v3301, %v3300
    %v3453 = vpack.c.b16 %v3302, %v3302
    %v3455 = vshrl.u32 %v3450, 16
    %v3457 = vrot.slane %v3455, 3
    %v3458 = vshll.u32 %v3450, 16
    %v3460 = vrot.slane %v3458, 4
    %v3461 = vor.u32 %v3457, %v3460
    %v3463 = vshrl.u32 %v3451, 16
    %v3465 = vrot.slane %v3463, 3
    %v3466 = vshll.u32 %v3451, 16
    %v3468 = vrot.slane %v3466, 4
    %v3469 = vor.u32 %v3465, %v3468
    %v3470 = vsel %vm284, %v3461, %v3469
    %v3472 = vshrl.u32 %v3452, 16
    %v3474 = vrot.slane %v3472, 3
    %v3475 = vshll.u32 %v3452, 16
    %v3477 = vrot.slane %v3475, 4
    %v3478 = vor.u32 %v3474, %v3477
    %v3479 = vsel %vm284, %v3469, %v3478
    %v3481 = vshrl.u32 %v3453, 16
    %v3483 = vrot.slane %v3481, 3
    %v3484 = vshll.u32 %v3453, 16
    %v3486 = vrot.slane %v3484, 4
    %v3487 = vor.u32 %v3483, %v3486
    %v3488 = vsel %vm284, %v3478, %v3487
    %v3508 = vunpack.c.l.b16 %v3258
    %v3509 = vunpack.c.h.b16 %v3258
    %v3510 = vunpack.c.l.b16 %v3259
    %v3511 = vunpack.c.h.b16 %v3259
    %v3512 = vunpack.c.l.b16 %v3260
    %v3513 = vunpack.c.h.b16 %v3260
    %v3514 = vunpack.c.l.b16 %v3261
    %v3515 = vunpack.c.h.b16 %v3261
    %v3516 = vunpack.c.l.b16 %v3262
    %v3517 = vunpack.c.h.b16 %v3262
    %v3518 = vunpack.c.l.b16 %v3263
    %v3519 = vunpack.c.h.b16 %v3263
    %v3520 = vunpack.c.l.b16 %v3264
    %v3521 = vunpack.c.h.b16 %v3264
    %v3522 = vunpack.c.l.b16 %v3265
    %v3523 = vunpack.c.h.b16 %v3265
    %v3524 = vunpack.c.l.b16 %v3266
    %v3525 = vunpack.c.h.b16 %v3266
    %v3526 = vunpack.c.l.b16 %v3267
    %v3527 = vunpack.c.h.b16 %v3267
    %v3528 = vunpack.c.l.b16 %v3268
    %v3529 = vunpack.c.h.b16 %v3268
    %v3530 = vunpack.c.l.b16 %v3269
    %v3531 = vunpack.c.h.b16 %v3269
    %v3532 = vunpack.c.l.b16 %v3270
    %v3533 = vunpack.c.h.b16 %v3270
    %v3534 = vunpack.c.l.b16 %v3271
    %v3535 = vunpack.c.h.b16 %v3271
    %v3536 = vunpack.c.l.b16 %v3272
    %v3537 = vunpack.c.h.b16 %v3272
    %v3538 = vunpack.c.l.b16 %v3273
    %v3539 = vunpack.c.h.b16 %v3273
    %v3540 = vpack.c.b16 %v3510, %v3508
    %v3541 = vpack.c.b16 %v3511, %v3509
    %v3542 = vpack.c.b16 %v3514, %v3512
    %v3543 = vpack.c.b16 %v3515, %v3513
    %v3544 = vpack.c.b16 %v3518, %v3516
    %v3545 = vpack.c.b16 %v3519, %v3517
    %v3546 = vpack.c.b16 %v3522, %v3520
    %v3547 = vpack.c.b16 %v3523, %v3521
    %v3548 = vpack.c.b16 %v3526, %v3524
    %v3549 = vpack.c.b16 %v3527, %v3525
    %v3550 = vpack.c.b16 %v3530, %v3528
    %v3551 = vpack.c.b16 %v3531, %v3529
    %v3552 = vpack.c.b16 %v3534, %v3532
    %v3553 = vpack.c.b16 %v3535, %v3533
    %v3554 = vpack.c.b16 %v3538, %v3536
    %v3555 = vpack.c.b16 %v3539, %v3537
    %3572 = vmatprep.subr.bf16.mxu0 %v3541
    %3573 = vmatpush1.bf16.msra.mxu0 %v3540
    %3574 = vmatprep.subr.bf16.mxu0 %v3543
    %3575 = vmatpush1.bf16.msra.mxu0 %v3542
    %3576 = vmatprep.subr.bf16.mxu0 %v3545
    %3577 = vmatpush1.bf16.msra.mxu0 %v3544
    %3578 = vmatprep.subr.bf16.mxu0 %v3547
    %3579 = vmatpush1.bf16.msra.mxu0 %v3546
    %3580 = vmatprep.subr.bf16.mxu0 %v3549
    %3581 = vmatpush1.bf16.msra.mxu0 %v3548
    %3582 = vmatprep.subr.bf16.mxu0 %v3551
    %3583 = vmatpush1.bf16.msra.mxu0 %v3550
    %3584 = vmatprep.subr.bf16.mxu0 %v3553
    %3585 = vmatpush1.bf16.msra.mxu0 %v3552
    %3586 = vmatprep.subr.bf16.mxu0 %v3555
    %3587 = vmatpush1.bf16.msra.mxu0 %v3554
    %3588 = vmatprep.subr.bf16.mxu0 0
    %3589 = vmatpush1.bf16.msra.mxu0 0
    %3590 = vmatprep.subr.bf16.mxu0 0
    %3591 = vmatpush1.bf16.msra.mxu0 0
    %3592 = vmatprep.subr.bf16.mxu0 0
    %3593 = vmatpush1.bf16.msra.mxu0 0
    %3594 = vmatprep.subr.bf16.mxu0 0
    %3595 = vmatpush1.bf16.msra.mxu0 0
    %3596 = vmatprep.subr.bf16.mxu0 0
    %3597 = vmatpush1.bf16.msra.mxu0 0
    %3598 = vmatprep.subr.bf16.mxu0 0
    %3599 = vmatpush1.bf16.msra.mxu0 0
    %3600 = vmatprep.subr.bf16.mxu0 0
    %3601 = vmatpush1.bf16.msra.mxu0 0
    %3602 = vmatprep.subr.bf16.mxu0 0
    %3603 = vmatpush1.bf16.msra.mxu0 0
    %3604 = vmatprep.mubr.bf16.mxu0 0
    %3605 = vmatmul.mubr.bf16.gmra.mrb[0].mxu0 %v3470
    %v3606 = vpop.f32.mrb[0].mxu0
    %v3607 = vadd.f32 %v3424, %v3606
    %v3608 = vpop.f32.mrb[0].mxu0
    %v3609 = vadd.f32 %v3426, %v3608
    %v3610 = vpop.f32.mrb[0].mxu0
    %v3611 = vadd.f32 %v3428, %v3610
    %v3612 = vpop.f32.mrb[0].mxu0
    %v3613 = vadd.f32 %v3430, %v3612
    %3614 = vmatprep.mubr.bf16.mxu0 0
    %3615 = vmatmul.mubr.bf16.gmra.mrb[0].mxu0 %v3479
    %v3616 = vpop.f32.mrb[0].mxu0
    %v3617 = vpop.f32.mrb[0].mxu0
    %v3618 = vpop.f32.mrb[0].mxu0
    %v3619 = vpop.f32.mrb[0].mxu0
    %3620 = vmatprep.mubr.bf16.mxu0 0
    %3621 = vmatmul.mubr.bf16.gmra.mrb[0].mxu0 %v3488
    %v3622 = vpop.f32.mrb[0].mxu0
    %v3623 = vadd.f32 %v3440, %v3622
    %v3624 = vpop.f32.mrb[0].mxu0
    %v3625 = vadd.f32 %v3442, %v3624
    %v3626 = vpop.f32.mrb[0].mxu0
    %v3627 = vadd.f32 %v3444, %v3626
    %v3628 = vpop.f32.mrb[0].mxu0
    %v3629 = vadd.f32 %v3446, %v3628
    %3630 = vdwg.mxu0
    %v3631 = vld [vmem:[#allocation2 + $0x8] sm:$0xf]
    %v3632 = vld [vmem:[#allocation2 + $0xc] sm:$0xf]
    %v3633 = vld [vmem:[#allocation2 + $0x10] sm:$0xf]
    %v3634 = vld [vmem:[#allocation2 + $0x14] sm:$0xf]
    %v3635 = vld [vmem:[#allocation2 + $0x18] sm:$0xf]
    %v3636 = vld [vmem:[#allocation2 + $0x1c] sm:$0xf]
    %v3637 = vld [vmem:[#allocation2 + $0x20] sm:$0x1]
    %s3638 = scalar_lea.vmem [#allocation10], 256
    %v3639 = vld [vmem:[%s3638] sm:$0xff]
    %v3640 = vld [vmem:[%s3638 + $0x8] sm:$0xff]
    %v3641 = vld [vmem:[%s3638 + $0x10] sm:$0xff]
    %v3642 = vld [vmem:[%s3638 + $0x18] sm:$0xff]
    %v3643 = vld [vmem:[%s3638 + $0x20] sm:$0xff]
    %v3644 = vld [vmem:[%s3638 + $0x28] sm:$0xff]
    %v3645 = vld [vmem:[%s3638 + $0x30] sm:$0xff]
    %v3646 = vld [vmem:[%s3638 + $0x38] sm:$0xff]
    %v3647 = vld [vmem:[%s3638 + $0x40] sm:$0xff]
    %v3648 = vld [vmem:[%s3638 + $0x48] sm:$0xff]
    %v3649 = vld [vmem:[%s3638 + $0x50] sm:$0xff]
    %v3650 = vld [vmem:[%s3638 + $0x58] sm:$0xff]
    %v3651 = vld [vmem:[%s3638 + $0x60] sm:$0xff]
    %v3652 = vld [vmem:[%s3638 + $0x68] sm:$0xff]
    %v3653 = vld [vmem:[%s3638 + $0x70] sm:$0xff]
    %v3654 = vld [vmem:[%s3638 + $0x78] sm:$0xff]
    %v3662 = vunpack.c.l.b16 %v3631
    %v3663 = vunpack.c.l.b16 %v3632
    %v3664 = vunpack.c.l.b16 %v3633
    %v3665 = vunpack.c.l.b16 %v3634
    %v3666 = vunpack.c.l.b16 %v3635
    %v3667 = vunpack.c.l.b16 %v3636
    %v3668 = vunpack.c.l.b16 %v3637
    %v3669 = vpack.c.b16 %v3663, %v3662
    %v3670 = vpack.c.b16 %v3665, %v3664
    %v3671 = vpack.c.b16 %v3667, %v3666
    %v3672 = vpack.c.b16 %v3668, %v3668
    %v3674 = vshrl.u32 %v3669, 16
    %v3676 = vshll.u32 %v3669, 16
    %v3678 = vrot.slane %v3676, 1
    %v3679 = vor.u32 %v3674, %v3678
    %v3681 = vshll.u32 %v3670, 16
    %v3683 = vrot.slane %v3681, 1
    %v3684 = vsel %vm468, %v3679, %v3683
    %v3685 = vshrl.u32 %v3670, 16
    %v3687 = vor.u32 %v3685, %v3683
    %v3689 = vshll.u32 %v3671, 16
    %v3691 = vrot.slane %v3689, 1
    %v3692 = vsel %vm468, %v3687, %v3691
    %v3693 = vshrl.u32 %v3671, 16
    %v3695 = vor.u32 %v3693, %v3691
    %v3697 = vshll.u32 %v3672, 16
    %v3699 = vrot.slane %v3697, 1
    %v3700 = vsel %vm468, %v3695, %v3699
    %v3720 = vunpack.c.l.b16 %v3639
    %v3721 = vunpack.c.h.b16 %v3639
    %v3722 = vunpack.c.l.b16 %v3640
    %v3723 = vunpack.c.h.b16 %v3640
    %v3724 = vunpack.c.l.b16 %v3641
    %v3725 = vunpack.c.h.b16 %v3641
    %v3726 = vunpack.c.l.b16 %v3642
    %v3727 = vunpack.c.h.b16 %v3642
    %v3728 = vunpack.c.l.b16 %v3643
    %v3729 = vunpack.c.h.b16 %v3643
    %v3730 = vunpack.c.l.b16 %v3644
    %v3731 = vunpack.c.h.b16 %v3644
    %v3732 = vunpack.c.l.b16 %v3645
    %v3733 = vunpack.c.h.b16 %v3645
    %v3734 = vunpack.c.l.b16 %v3646
    %v3735 = vunpack.c.h.b16 %v3646
    %v3736 = vunpack.c.l.b16 %v3647
    %v3737 = vunpack.c.h.b16 %v3647
    %v3738 = vunpack.c.l.b16 %v3648
    %v3739 = vunpack.c.h.b16 %v3648
    %v3740 = vunpack.c.l.b16 %v3649
    %v3741 = vunpack.c.h.b16 %v3649
    %v3742 = vunpack.c.l.b16 %v3650
    %v3743 = vunpack.c.h.b16 %v3650
    %v3744 = vunpack.c.l.b16 %v3651
    %v3745 = vunpack.c.h.b16 %v3651
    %v3746 = vunpack.c.l.b16 %v3652
    %v3747 = vunpack.c.h.b16 %v3652
    %v3748 = vunpack.c.l.b16 %v3653
    %v3749 = vunpack.c.h.b16 %v3653
    %v3750 = vunpack.c.l.b16 %v3654
    %v3751 = vunpack.c.h.b16 %v3654
    %v3752 = vpack.c.b16 %v3722, %v3720
    %v3753 = vpack.c.b16 %v3723, %v3721
    %v3754 = vpack.c.b16 %v3726, %v3724
    %v3755 = vpack.c.b16 %v3727, %v3725
    %v3756 = vpack.c.b16 %v3730, %v3728
    %v3757 = vpack.c.b16 %v3731, %v3729
    %v3758 = vpack.c.b16 %v3734, %v3732
    %v3759 = vpack.c.b16 %v3735, %v3733
    %v3760 = vpack.c.b16 %v3738, %v3736
    %v3761 = vpack.c.b16 %v3739, %v3737
    %v3762 = vpack.c.b16 %v3742, %v3740
    %v3763 = vpack.c.b16 %v3743, %v3741
    %v3764 = vpack.c.b16 %v3746, %v3744
    %v3765 = vpack.c.b16 %v3747, %v3745
    %v3766 = vpack.c.b16 %v3750, %v3748
    %v3767 = vpack.c.b16 %v3751, %v3749
    %3784 = vmatprep.subr.bf16.mxu0 %v3753
    %3785 = vmatpush1.bf16.msra.mxu0 %v3752
    %3786 = vmatprep.subr.bf16.mxu0 %v3755
    %3787 = vmatpush1.bf16.msra.mxu0 %v3754
    %3788 = vmatprep.subr.bf16.mxu0 %v3757
    %3789 = vmatpush1.bf16.msra.mxu0 %v3756
    %3790 = vmatprep.subr.bf16.mxu0 %v3759
    %3791 = vmatpush1.bf16.msra.mxu0 %v3758
    %3792 = vmatprep.subr.bf16.mxu0 %v3761
    %3793 = vmatpush1.bf16.msra.mxu0 %v3760
    %3794 = vmatprep.subr.bf16.mxu0 %v3763
    %3795 = vmatpush1.bf16.msra.mxu0 %v3762
    %3796 = vmatprep.subr.bf16.mxu0 %v3765
    %3797 = vmatpush1.bf16.msra.mxu0 %v3764
    %3798 = vmatprep.subr.bf16.mxu0 %v3767
    %3799 = vmatpush1.bf16.msra.mxu0 %v3766
    %3800 = vmatprep.subr.bf16.mxu0 0
    %3801 = vmatpush1.bf16.msra.mxu0 0
    %3802 = vmatprep.subr.bf16.mxu0 0
    %3803 = vmatpush1.bf16.msra.mxu0 0
    %3804 = vmatprep.subr.bf16.mxu0 0
    %3805 = vmatpush1.bf16.msra.mxu0 0
    %3806 = vmatprep.subr.bf16.mxu0 0
    %3807 = vmatpush1.bf16.msra.mxu0 0
    %3808 = vmatprep.subr.bf16.mxu0 0
    %3809 = vmatpush1.bf16.msra.mxu0 0
    %3810 = vmatprep.subr.bf16.mxu0 0
    %3811 = vmatpush1.bf16.msra.mxu0 0
    %3812 = vmatprep.subr.bf16.mxu0 0
    %3813 = vmatpush1.bf16.msra.mxu0 0
    %3814 = vmatprep.subr.bf16.mxu0 0
    %3815 = vmatpush1.bf16.msra.mxu0 0
    %3816 = vmatprep.mubr.bf16.mxu0 0
    %3817 = vmatmul.mubr.bf16.gmra.mrb[0].mxu0 %v3684
    %v3818 = vpop.f32.mrb[0].mxu0
    %v3819 = vadd.f32 0.0, %v3818
    %v3820 = vpop.f32.mrb[0].mxu0
    %v3821 = vadd.f32 0.0, %v3820
    %v3822 = vpop.f32.mrb[0].mxu0
    %v3823 = vadd.f32 0.0, %v3822
    %v3824 = vpop.f32.mrb[0].mxu0
    %v3825 = vadd.f32 0.0, %v3824
    %3826 = vmatprep.mubr.bf16.mxu0 0
    %3827 = vmatmul.mubr.bf16.gmra.mrb[0].mxu0 %v3692
    %v3828 = vpop.f32.mrb[0].mxu0
    %v3829 = vpop.f32.mrb[0].mxu0
    %v3830 = vpop.f32.mrb[0].mxu0
    %v3831 = vpop.f32.mrb[0].mxu0
    %3832 = vmatprep.mubr.bf16.mxu0 0
    %3833 = vmatmul.mubr.bf16.gmra.mrb[0].mxu0 %v3700
    %v3834 = vpop.f32.mrb[0].mxu0
    %v3835 = vadd.f32 0.0, %v3834
    %v3836 = vpop.f32.mrb[0].mxu0
    %v3837 = vadd.f32 0.0, %v3836
    %v3838 = vpop.f32.mrb[0].mxu0
    %v3839 = vadd.f32 0.0, %v3838
    %v3840 = vpop.f32.mrb[0].mxu0
    %v3841 = vadd.f32 0.0, %v3840
    %3842 = vdwg.mxu0
    %v3843 = vadd.f32 %v3607, %v3819
    %v3844 = vadd.f32 %v3609, %v3821
    %v3845 = vadd.f32 %v3611, %v3823
    %v3846 = vadd.f32 %v3613, %v3825
    %v3847 = vadd.f32 %v3623, %v3835
    %v3848 = vadd.f32 %v3625, %v3837
    %v3849 = vadd.f32 %v3627, %v3839
    %v3850 = vadd.f32 %v3629, %v3841
    %v3852 = vlaneseq
    %v3853 = vshrl.u32 %v3852, 7
    %v3854 = vsub.s32 0, %v3853
    %v3855 = vrot.slane %v3250, %v3854
    %v3856 = vlaneseq
    %v3857 = vshrl.u32 %v3856, 7
    %v3858 = vsub.s32 1, %v3857
    %v3859 = vrot.slane %v3250, %v3858
    %v3862 = vadd.f32 %v3843, %v3855
    %v3863 = vadd.f32 %v3844, %v3859
    %v3864 = vadd.f32 %v3845, %v3855
    %v3865 = vadd.f32 %v3846, %v3859
    %v3866 = vadd.f32 %v3847, %v3855
    %v3867 = vadd.f32 %v3848, %v3859
    %v3868 = vadd.f32 %v3849, %v3855
    %v3869 = vadd.f32 %v3850, %v3859
    %3870 = vst [vmem:[#allocation13] sm:$0xff] %v3862
    %3871 = vst [vmem:[#allocation13 + $0x8] sm:$0xff] %v3863
    %3872 = vst [vmem:[#allocation13 + $0x10] sm:$0xff] %v3864
    %3873 = vst [vmem:[#allocation13 + $0x18] sm:$0xff] %v3865
    %s3874 = scalar_lea.vmem [#allocation13], 32
    %3875 = vst [vmem:[%s3874] sm:$0xff] %v3866
    %3876 = vst [vmem:[%s3874 + $0x8] sm:$0xff] %v3867
    %3877 = vst [vmem:[%s3874 + $0x10] sm:$0xff] %v3868
    %3878 = vst [vmem:[%s3874 + $0x18] sm:$0xff] %v3869
    // Predicated region
    $region34: #{tpu_custom_call.1} parent=1 // pred_check
      _
    $region35: #{tpu_custom_call.1} parent=1 // pred_check_branch
      %3880 = sbr.rel (0) target = $region37
    $region36: #{tpu_custom_call.1} parent=1 // pred_region
      %s3882 = ssub.s32 1024, 1024
      %3883 = vsyncadd [#allocation7], %s3882
      %s3884 = sshll.u32 [#allocation13], 4
      %s3885 = int_to_ptr.vmem [resolvable:$true] %s3884
      %3890 = dma.vmem_to_hbm [thread:$0]  %s3885, 1024, %s4, [#allocation7], 256, 256, 16
    $region37: #{tpu_custom_call.1} parent=1 // pred_fallthru
      _
    // Predicated region
    $region38: #{tpu_custom_call.1} parent=1 // pred_check
      _
    $region39: #{tpu_custom_call.1} parent=1 // pred_check_branch
      %3892 = sbr.rel (0) target = $region41
    $region40: #{tpu_custom_call.1} parent=1 // pred_region
      %3893 = dma.done [#allocation7], 1024
    $region41: #{tpu_custom_call.1} parent=1 // pred_fallthru
      _
    %3894 = vsyncpa [#allocation6], 1
    %3895 = vsyncpa [#allocation9], 1
    %3896 = vsyncpa [#allocation12], 1
    %3897 = vsyncpa [#allocation7], 1

</llo_original>
